<compile_context>
chip_gen: v7x
topology: tpu7x:2x2x1
jax: 0.10.0
libtpu: 0.0.40
codegen_flags: <defaults>
</compile_context>

<pallas_src>
import functools

import jax
import jax.numpy as jnp
from jax import lax
from jax.experimental import pallas as pl
from jax.experimental.pallas import tpu as pltpu


def _midi_rnn_kernel(
    len_ref,      # [Bt, 1] int32  valid lengths (0 for padded batch rows)
    x_ref,        # [T, Bt, I] f32
    wenc_ref,     # [I, H]   f32  notes_encoder.weight^T
    benc_ref,     # [1, H]   f32  notes_encoder.bias
    wih_ref,      # [L, H, 4H] f32  lstm weight_ih_l{l}^T
    whh_ref,      # [L, H, 4H] f32  lstm weight_hh_l{l}^T
    bias_ref,     # [L, 1, 4H] f32  (bias_ih + bias_hh)
    wfc_ref,      # [H, Cp]  f32  logits_fc.weight^T, zero-padded to 128 lanes
    bfc_ref,      # [1, Cp]  f32  logits_fc.bias, zero-padded
    logits_ref,   # [T, Bt, Cp] f32  out (lane-dense)
    hn_ref,       # [L, Bt, H] f32  out
    cn_ref,       # [L, Bt, H] f32  out
    xbuf,         # [T*Bt, H]  f32 VMEM scratch: current layer input / output
    gxbuf,        # [T*Bt, 4H] f32 VMEM scratch: hoisted input projection + bias
    *,
    time_unroll,
):
    T, Bt, I = x_ref.shape
    L, H, H4 = wih_ref.shape
    Cp = wfc_ref.shape[1]
    TB = T * Bt

    # ---------------- notes_encoder: one [T*Bt, I] @ [I, H] matmul -----------
    x2d = x_ref[...].reshape(TB, I)
    xbuf[...] = (
        jnp.dot(x2d, wenc_ref[...], preferred_element_type=jnp.float32)
        + benc_ref[...]
    )

    lens = len_ref[...]                              # [Bt, 1] int32, loaded once
    zeros_bh = jnp.zeros((Bt, H), jnp.float32)       # h_0 / c_0 (h_0=None -> 0)

    # Lane-column mask selecting the g (cell-candidate) gate columns; hoisted
    # out of all loops (broadcast_in_dim is not CSE'd by JAX).
    gate_col = lax.broadcasted_iota(jnp.int32, (Bt, H4), 1)
    g_cols = jnp.logical_and(gate_col >= 2 * H, gate_col < 3 * H)

    # ---------------- multi-layer LSTM with length masking -------------------
    for l in range(L):                               # layers: static unroll
        # Hoist input projection + combined bias out of the recurrence:
        # one [T*Bt, H] @ [H, 4H] MXU matmul per layer.
        gxbuf[...] = (
            jnp.dot(xbuf[...], wih_ref[l], preferred_element_type=jnp.float32)
            + bias_ref[l]
        )
        w_hh = whh_ref[l]                            # [H, 4H], hoisted load

        def time_body(t, carry, w_hh=w_hh):
            h_prev, c_prev = carry                   # [Bt, H] each, in vregs
            row = pl.multiple_of(t * Bt, Bt)
            gates = gxbuf[pl.ds(row, Bt), :] + jnp.dot(
                h_prev, w_hh, preferred_element_type=jnp.float32
            )                                        # [Bt, 4H], gate order i,f,g,o
            # Two full-width EUP passes (sigmoid + tanh over the whole gates
            # vreg) blended by the lane mask, instead of 4 sliced quarter-width
            # nonlinearities; slices below only feed the elementwise update.
            sig = jax.nn.sigmoid(gates)
            tnh = jnp.tanh(gates)
            act = jnp.where(g_cols, tnh, sig)
            i_g = act[:, 0 * H:1 * H]
            f_g = act[:, 1 * H:2 * H]
            g_g = act[:, 2 * H:3 * H]
            o_g = act[:, 3 * H:4 * H]
            c_new = f_g * c_prev + i_g * g_g
            h_new = o_g * jnp.tanh(c_new)
            mask = t < lens                          # [Bt, 1] bool
            h = jnp.where(mask, h_new, h_prev)
            c = jnp.where(mask, c_new, c_prev)
            # padded time positions -> 0 (pad_packed_sequence behavior)
            xbuf[pl.ds(row, Bt), :] = jnp.where(mask, h_new, 0.0)
            return (h, c)

        h_l, c_l = lax.fori_loop(0, T, time_body, (zeros_bh, zeros_bh),
                                 unroll=time_unroll)
        hn_ref[l] = h_l
        cn_ref[l] = c_l

    # ---------------- logits_fc: one [T*Bt, H] @ [H, Cp] matmul --------------
    # Cp is a multiple of 128 -> lane-dense (unmasked) output stores.
    logits = (
        jnp.dot(xbuf[...], wfc_ref[...], preferred_element_type=jnp.float32)
        + bfc_ref[...]
    )
    logits_ref[...] = logits.reshape(T, Bt, Cp)


def _const_spec(shape):
    nd = len(shape)
    return pl.BlockSpec(shape, lambda b, _nd=nd: (0,) * _nd)


def _choose_batch_tile(B, batch_tile):
    """Pick a batch tile (multiple of 8) and the padded batch size.

    Prefers >= 2 grid programs whenever the 8-padded batch permits so the
    "parallel" grid axis can use both TensorCores on v7x.
    """
    B8 = -(-B // 8) * 8
    Bt = max(8, min(int(batch_tile), B8))
    Bt = max(8, (Bt // 8) * 8)
    if B8 // Bt < 2 and B8 >= 16:
        Bt = max(8, ((B8 // 2) // 8) * 8)
    B_pad = -(-B8 // Bt) * Bt
    return Bt, B_pad


def midi_rnn_forward(x_seq, x_len, params, *, batch_tile=128):
    """x_seq: [T, B, input_size] f32 (time-major); x_len: [B] int."""
    T, B, I = x_seq.shape
    H = params["w_enc"].shape[1]
    L = params["w_ih"].shape[0]
    C = params["w_fc"].shape[1]
    Cp = -(-C // 128) * 128                          # lane-dense head width

    # Pad batch; padded rows get length 0 so their state stays zero and their
    # outputs are dropped below.
    Bt, B_pad = _choose_batch_tile(B, batch_tile)
    pad = B_pad - B
    x_p = jnp.pad(x_seq.astype(jnp.float32), ((0, 0), (0, pad), (0, 0)))
    len_p = jnp.pad(x_len.astype(jnp.int32), (0, pad)).reshape(B_pad, 1)

    # Lane-dense logits_fc weights: padded columns are zero, sliced away below.
    w_fc_p = jnp.pad(params["w_fc"].astype(jnp.float32), ((0, 0), (0, Cp - C)))
    b_fc_p = jnp.pad(params["b_fc"].astype(jnp.float32), ((0, 0), (0, Cp - C)))

    grid = (B_pad // Bt,)

    # Fully unroll the time loop only while the h/c carries + per-step gate
    # temporaries comfortably fit the 64-vreg file; otherwise partial unroll.
    time_unroll = True if Bt * 4 * H <= 4096 else 2

    in_specs = [
        pl.BlockSpec((Bt, 1), lambda b: (b, 0)),          # lengths
        pl.BlockSpec((T, Bt, I), lambda b: (0, b, 0)),    # x
        _const_spec((I, H)),                              # w_enc
        _const_spec((1, H)),                              # b_enc
        _const_spec((L, H, 4 * H)),                       # w_ih
        _const_spec((L, H, 4 * H)),                       # w_hh
        _const_spec((L, 1, 4 * H)),                       # bias
        _const_spec((H, Cp)),                             # w_fc (padded)
        _const_spec((1, Cp)),                             # b_fc (padded)
    ]
    out_specs = (
        pl.BlockSpec((T, Bt, Cp), lambda b: (0, b, 0)),   # logits (lane-dense)
        pl.BlockSpec((L, Bt, H), lambda b: (0, b, 0)),    # h_n
        pl.BlockSpec((L, Bt, H), lambda b: (0, b, 0)),    # c_n
    )
    out_shape = (
        jax.ShapeDtypeStruct((T, B_pad, Cp), jnp.float32),
        jax.ShapeDtypeStruct((L, B_pad, H), jnp.float32),
        jax.ShapeDtypeStruct((L, B_pad, H), jnp.float32),
    )
    scratch_shapes = [
        pltpu.VMEM((T * Bt, H), jnp.float32),
        pltpu.VMEM((T * Bt, 4 * H), jnp.float32),
    ]

    # Explicit VMEM budget: double-buffered I/O blocks + (default double-
    # buffered) weights + scratch + headroom, capped at 90% of the chip's
    # physical VMEM (64 MiB on v7x, 128 MiB on v5e/v6e).
    def _nbytes(shape, itemsize=4):
        n = itemsize
        for s in shape:
            n *= s
        return n

    io_blocks = [(Bt, 1), (T, Bt, I), (T, Bt, Cp), (L, Bt, H), (L, Bt, H)]
    w_blocks = [(I, H), (1, H), (L, H, 4 * H), (L, H, 4 * H), (L, 1, 4 * H),
                (H, Cp), (1, Cp)]
    needed = (2 * sum(_nbytes(s) for s in io_blocks)
              + 2 * sum(_nbytes(s) for s in w_blocks)
              + sum(_nbytes(s) for s in [(T * Bt, H), (T * Bt, 4 * H)])
              + (2 << 20))
    try:
        vmem_cap = int(getattr(pltpu.get_tpu_info(), "vmem_capacity_bytes",
                               64 * 1024 * 1024))
    except Exception:  # pragma: no cover - defensive fallback
        vmem_cap = 64 * 1024 * 1024
    vmem_limit = min(max(needed, 32 * 1024 * 1024), int(0.9 * vmem_cap))

    kernel = functools.partial(_midi_rnn_kernel, time_unroll=time_unroll)

    logits, h_n, c_n = pl.pallas_call(
        kernel,
        out_shape=out_shape,
        grid=grid,
        in_specs=in_specs,
        out_specs=out_specs,
        scratch_shapes=scratch_shapes,
        compiler_params=pltpu.CompilerParams(
            dimension_semantics=("parallel",),
            vmem_limit_bytes=vmem_limit,
        ),
    )(
        len_p, x_p,
        params["w_enc"], params["b_enc"],
        params["w_ih"], params["w_hh"], params["bias"],
        w_fc_p, b_fc_p,
    )

    logits = logits[:, :B, :C]
    h_n = h_n[:, :B, :]
    c_n = c_n[:, :B, :]

    # glue: torch.stack((logits, 1 - logits), dim=3).view(-1, 2)
    binary_logits = jnp.stack((logits, 1.0 - logits), axis=3)   # [T, B, C, 2]
    logits_flatten = binary_logits.reshape(-1, 2)
    return logits_flatten, (h_n, c_n)


def init_params(key, input_size, hidden_size, num_classes, layers):
    ks = jax.random.split(key, 8)
    H = hidden_size

    def xavier(k, fan_in, fan_out):                  # stored transposed [in, out]
        bound = (6.0 / (fan_in + fan_out)) ** 0.5
        return jax.random.uniform(k, (fan_in, fan_out), jnp.float32, -bound, bound)

    klstm = 1.0 / (H ** 0.5)
    kenc = 1.0 / (input_size ** 0.5)
    kfc = 1.0 / (H ** 0.5)
    w_enc = xavier(ks[0], input_size, H)
    b_enc = jax.random.uniform(ks[1], (1, H), jnp.float32, -kenc, kenc)
    w_ih = jax.random.uniform(ks[2], (layers, H, 4 * H), jnp.float32, -klstm, klstm)
    w_hh = jax.random.uniform(ks[3], (layers, H, 4 * H), jnp.float32, -klstm, klstm)
    b_ih = jax.random.uniform(ks[4], (layers, 1, 4 * H), jnp.float32, -klstm, klstm)
    b_hh = jax.random.uniform(ks[5], (layers, 1, 4 * H), jnp.float32, -klstm, klstm)
    w_fc = xavier(ks[6], H, num_classes)
    b_fc = jax.random.uniform(ks[7], (1, num_classes), jnp.float32, -kfc, kfc)
    return dict(w_enc=w_enc, b_enc=b_enc, w_ih=w_ih, w_hh=w_hh,
                bias=b_ih + b_hh, w_fc=w_fc, b_fc=b_fc)


def reference_forward(x_seq, x_len, params):
    """Pure-JAX reference (same math, XLA compute) for correctness checking."""
    T, B, _ = x_seq.shape
    H = params["w_enc"].shape[1]
    L = params["w_ih"].shape[0]
    layer_in = x_seq @ params["w_enc"] + params["b_enc"]  # [T, B, H]
    hs, cs = [], []
    for l in range(L):
        h = jnp.zeros((B, H), jnp.float32)
        c = jnp.zeros((B, H), jnp.float32)
        outs = []
        for t in range(T):
            gates = (layer_in[t] @ params["w_ih"][l]
                     + h @ params["w_hh"][l] + params["bias"][l])
            i_g = jax.nn.sigmoid(gates[:, :H])
            f_g = jax.nn.sigmoid(gates[:, H:2 * H])
            g_g = jnp.tanh(gates[:, 2 * H:3 * H])
            o_g = jax.nn.sigmoid(gates[:, 3 * H:])
            c_new = f_g * c + i_g * g_g
            h_new = o_g * jnp.tanh(c_new)
            mask = (t < x_len)[:, None].astype(jnp.float32)
            h = mask * h_new + (1.0 - mask) * h
            c = mask * c_new + (1.0 - mask) * c
            outs.append(mask * h_new)
        layer_in = jnp.stack(outs, 0)
        hs.append(h)
        cs.append(c)
    logits = layer_in @ params["w_fc"] + params["b_fc"]
    binary = jnp.stack((logits, 1.0 - logits), axis=3)
    return binary.reshape(-1, 2), (jnp.stack(hs, 0), jnp.stack(cs, 0))


if __name__ == "__main__":
    input_size, hidden_size, num_classes, layers = 16, 32, 16, 2
    T, B = 8, 2

    key = jax.random.PRNGKey(0)
    kp, kx = jax.random.split(key)
    params = init_params(kp, input_size, hidden_size, num_classes, layers)
    x_seq = jax.random.uniform(kx, (T, B, input_size), jnp.float32)     # [T, B, I]
    x_len = jnp.array([T, T - 2], dtype=jnp.int32)                      # sorted desc

    logits_flat, (h_n, c_n) = midi_rnn_forward(x_seq, x_len, params)
    jax.block_until_ready((logits_flat, h_n, c_n))

    ref_flat, (ref_h, ref_c) = reference_forward(x_seq, x_len, params)
    assert logits_flat.shape == (T * B * num_classes, 2)
    assert h_n.shape == (layers, B, hidden_size)
    assert bool(jnp.allclose(logits_flat, ref_flat, atol=1e-3, rtol=1e-3))
    assert bool(jnp.allclose(h_n, ref_h, atol=1e-3, rtol=1e-3))
    assert bool(jnp.allclose(c_n, ref_c, atol=1e-3, rtol=1e-3))

    print("KERNEL_OK")
</pallas_src>

<mosaic_0001>
module attributes {stable_mosaic.version = 11 : i64} {
  func.func @_midi_rnn_kernel(%arg0: i32, %arg1: memref<8x1xi32, #tpu.memory_space<vmem>>, %arg2: memref<8x8x16xf32, #tpu.memory_space<vmem>>, %arg3: memref<16x32xf32, #tpu.memory_space<vmem>>, %arg4: memref<1x32xf32, #tpu.memory_space<vmem>>, %arg5: memref<2x32x128xf32, #tpu.memory_space<vmem>>, %arg6: memref<2x32x128xf32, #tpu.memory_space<vmem>>, %arg7: memref<2x1x128xf32, #tpu.memory_space<vmem>>, %arg8: memref<32x128xf32, #tpu.memory_space<vmem>>, %arg9: memref<1x128xf32, #tpu.memory_space<vmem>>, %arg10: memref<8x8x128xf32, #tpu.memory_space<vmem>>, %arg11: memref<2x8x32xf32, #tpu.memory_space<vmem>>, %arg12: memref<2x8x32xf32, #tpu.memory_space<vmem>>, %arg13: memref<64x32xf32, #tpu.memory_space<vmem>>, %arg14: memref<64x128xf32, #tpu.memory_space<vmem>>) attributes {dimension_semantics = [#tpu.dimension_semantics<parallel>], iteration_bounds = array<i64: 1>, scalar_prefetch = 0 : i64, scratch_operands = 2 : i64, tpu.core_type = #tpu.core_type<tc>, window_params = [{transform_indices = @transform_0, window_bounds = array<i64: 8, 1>}, {transform_indices = @transform_1, window_bounds = array<i64: 8, 8, 16>}, {pipeline_mode = #tpu.pipeline_mode<synchronous>, transform_indices = @transform_2, window_bounds = array<i64: 16, 32>}, {pipeline_mode = #tpu.pipeline_mode<synchronous>, transform_indices = @transform_3, window_bounds = array<i64: 1, 32>}, {pipeline_mode = #tpu.pipeline_mode<synchronous>, transform_indices = @transform_4, window_bounds = array<i64: 2, 32, 128>}, {pipeline_mode = #tpu.pipeline_mode<synchronous>, transform_indices = @transform_5, window_bounds = array<i64: 2, 32, 128>}, {pipeline_mode = #tpu.pipeline_mode<synchronous>, transform_indices = @transform_6, window_bounds = array<i64: 2, 1, 128>}, {pipeline_mode = #tpu.pipeline_mode<synchronous>, transform_indices = @transform_7, window_bounds = array<i64: 32, 128>}, {pipeline_mode = #tpu.pipeline_mode<synchronous>, transform_indices = @transform_8, window_bounds = array<i64: 1, 128>}, {transform_indices = @transform_9, window_bounds = array<i64: 8, 8, 128>}, {transform_indices = @transform_10, window_bounds = array<i64: 2, 8, 32>}, {transform_indices = @transform_11, window_bounds = array<i64: 2, 8, 32>}]} {
    %c0 = arith.constant 0 : index
    %c0_0 = arith.constant 0 : index
    %c0_1 = arith.constant 0 : index
    %0 = vector.load %arg2[%c0, %c0_0, %c0_1] : memref<8x8x16xf32, #tpu.memory_space<vmem>>, vector<8x8x16xf32>
    %1 = vector.shape_cast %0 : vector<8x8x16xf32> to vector<64x16xf32>
    %c0_2 = arith.constant 0 : index
    %c0_3 = arith.constant 0 : index
    %2 = vector.load %arg3[%c0_2, %c0_3] : memref<16x32xf32, #tpu.memory_space<vmem>>, vector<16x32xf32>
    %cst = arith.constant dense<0.000000e+00> : vector<64x32xf32>
    %3 = tpu.matmul %1, %2, %cst {dimension_numbers = #tpu.dot_dimension_numbers<[1], [0], [0], [1], [0, 0, 1, 1], [], []>} : vector<64x16xf32>, vector<16x32xf32>, vector<64x32xf32> -> vector<64x32xf32>
    %c0_4 = arith.constant 0 : index
    %c0_5 = arith.constant 0 : index
    %4 = vector.load %arg4[%c0_4, %c0_5] : memref<1x32xf32, #tpu.memory_space<vmem>>, vector<1x32xf32>
    %5 = vector.broadcast %4 : vector<1x32xf32> to vector<64x32xf32>
    %6 = arith.addf %3, %5 : vector<64x32xf32>
    %c0_6 = arith.constant 0 : index
    %c0_7 = arith.constant 0 : index
    %7 = vector.load %arg13[%c0_6, %c0_7] : memref<64x32xf32, #tpu.memory_space<vmem>>, vector<64x32xf32>
    tpu.vector_store %arg13[%c0_6, %c0_7], %6 {strides = array<i32>} : memref<64x32xf32, #tpu.memory_space<vmem>>, vector<64x32xf32>,
    %c0_8 = arith.constant 0 : index
    %c0_9 = arith.constant 0 : index
    %8 = vector.load %arg1[%c0_8, %c0_9] : memref<8x1xi32, #tpu.memory_space<vmem>>, vector<8x1xi32>
    %cst_10 = arith.constant 0.000000e+00 : f32
    %9 = vector.broadcast %cst_10 : f32 to vector<8x32xf32>
    %10 = tpu.iota {dimensions = array<i32: 1>} : vector<8x128xi32>
    %c64_i32 = arith.constant 64 : i32
    %11 = vector.broadcast %c64_i32 : i32 to vector<8x128xi32>
    %12 = arith.cmpi sge, %10, %11 : vector<8x128xi32>
    %c96_i32 = arith.constant 96 : i32
    %13 = vector.broadcast %c96_i32 : i32 to vector<8x128xi32>
    %14 = arith.cmpi slt, %10, %13 : vector<8x128xi32>
    %15 = arith.andi %12, %14 : vector<8x128xi1>
    %c0_11 = arith.constant 0 : index
    %c0_12 = arith.constant 0 : index
    %16 = vector.load %arg13[%c0_11, %c0_12] : memref<64x32xf32, #tpu.memory_space<vmem>>, vector<64x32xf32>
    %c0_13 = arith.constant 0 : index
    %c0_14 = arith.constant 0 : index
    %c0_15 = arith.constant 0 : index
    %17 = vector.load %arg5[%c0_13, %c0_14, %c0_15] : memref<2x32x128xf32, #tpu.memory_space<vmem>>, vector<1x32x128xf32>
    %18 = vector.shape_cast %17 : vector<1x32x128xf32> to vector<32x128xf32>
    %cst_16 = arith.constant dense<0.000000e+00> : vector<64x128xf32>
    %19 = tpu.matmul %16, %18, %cst_16 {dimension_numbers = #tpu.dot_dimension_numbers<[1], [0], [0], [1], [0, 0, 1, 1], [], []>} : vector<64x32xf32>, vector<32x128xf32>, vector<64x128xf32> -> vector<64x128xf32>
    %c0_17 = arith.constant 0 : index
    %c0_18 = arith.constant 0 : index
    %c0_19 = arith.constant 0 : index
    %20 = vector.load %arg7[%c0_17, %c0_18, %c0_19] : memref<2x1x128xf32, #tpu.memory_space<vmem>>, vector<1x1x128xf32>
    %21 = vector.shape_cast %20 : vector<1x1x128xf32> to vector<1x128xf32>
    %22 = vector.broadcast %21 : vector<1x128xf32> to vector<64x128xf32>
    %23 = arith.addf %19, %22 : vector<64x128xf32>
    %c0_20 = arith.constant 0 : index
    %c0_21 = arith.constant 0 : index
    %24 = vector.load %arg14[%c0_20, %c0_21] : memref<64x128xf32, #tpu.memory_space<vmem>>, vector<64x128xf32>
    tpu.vector_store %arg14[%c0_20, %c0_21], %23 {strides = array<i32>} : memref<64x128xf32, #tpu.memory_space<vmem>>, vector<64x128xf32>,
    %c0_22 = arith.constant 0 : index
    %c0_23 = arith.constant 0 : index
    %c0_24 = arith.constant 0 : index
    %25 = vector.load %arg6[%c0_22, %c0_23, %c0_24] : memref<2x32x128xf32, #tpu.memory_space<vmem>>, vector<1x32x128xf32>
    %26 = vector.shape_cast %25 : vector<1x32x128xf32> to vector<32x128xf32>
    %c0_i32 = arith.constant 0 : i32
    %c8_i32 = arith.constant 8 : i32
    %27 = arith.muli %c0_i32, %c8_i32 : i32
    %28 = tpu.assume_multiple %27, 8 : i32
    %29 = arith.index_cast %28 : i32 to index
    %c0_25 = arith.constant 0 : index
    %30 = vector.load %arg14[%29, %c0_25] : memref<64x128xf32, #tpu.memory_space<vmem>>, vector<8x128xf32>
    %cst_26 = arith.constant dense<0.000000e+00> : vector<8x128xf32>
    %31 = tpu.matmul %9, %26, %cst_26 {dimension_numbers = #tpu.dot_dimension_numbers<[1], [0], [0], [1], [0, 0, 1, 1], [], []>} : vector<8x32xf32>, vector<32x128xf32>, vector<8x128xf32> -> vector<8x128xf32>
    %32 = arith.addf %30, %31 : vector<8x128xf32>
    %33 = arith.negf %32 : vector<8x128xf32>
    %34 = math.exp %33 : vector<8x128xf32>
    %cst_27 = arith.constant 1.000000e+00 : f32
    %35 = vector.broadcast %cst_27 : f32 to vector<8x128xf32>
    %36 = arith.addf %35, %34 : vector<8x128xf32>
    %37 = arith.divf %35, %36 : vector<8x128xf32>
    %38 = math.tanh %32 : vector<8x128xf32>
    %39 = arith.select %15, %38, %37 : vector<8x128xi1>, vector<8x128xf32>
    %40 = vector.extract_strided_slice %39 {offsets = [0, 0], sizes = [8, 32], strides = [1, 1]} : vector<8x128xf32> to vector<8x32xf32>
    %41 = vector.extract_strided_slice %39 {offsets = [0, 32], sizes = [8, 32], strides = [1, 1]} : vector<8x128xf32> to vector<8x32xf32>
    %42 = vector.extract_strided_slice %39 {offsets = [0, 64], sizes = [8, 32], strides = [1, 1]} : vector<8x128xf32> to vector<8x32xf32>
    %43 = vector.extract_strided_slice %39 {offsets = [0, 96], sizes = [8, 32], strides = [1, 1]} : vector<8x128xf32> to vector<8x32xf32>
    %44 = arith.mulf %41, %9 : vector<8x32xf32>
    %45 = arith.mulf %40, %42 : vector<8x32xf32>
    %46 = arith.addf %44, %45 : vector<8x32xf32>
    %47 = math.tanh %46 : vector<8x32xf32>
    %48 = arith.mulf %43, %47 : vector<8x32xf32>
    %49 = vector.broadcast %c0_i32 : i32 to vector<8x1xi32>
    %50 = arith.cmpi slt, %49, %8 : vector<8x1xi32>
    %51 = vector.shape_cast %50 : vector<8x1xi1> to vector<8x1xi1>
    %52 = vector.broadcast %51 : vector<8x1xi1> to vector<8x32xi1>
    %53 = arith.select %52, %48, %9 : vector<8x32xi1>, vector<8x32xf32>
    %54 = vector.shape_cast %50 : vector<8x1xi1> to vector<8x1xi1>
    %55 = vector.broadcast %54 : vector<8x1xi1> to vector<8x32xi1>
    %56 = arith.select %55, %46, %9 : vector<8x32xi1>, vector<8x32xf32>
    %cst_28 = arith.constant 0.000000e+00 : f32
    %57 = vector.shape_cast %50 : vector<8x1xi1> to vector<8x1xi1>
    %58 = vector.broadcast %57 : vector<8x1xi1> to vector<8x32xi1>
    %59 = vector.broadcast %cst_28 : f32 to vector<8x32xf32>
    %60 = arith.select %58, %48, %59 : vector<8x32xi1>, vector<8x32xf32>
    %61 = arith.index_cast %28 : i32 to index
    %c0_29 = arith.constant 0 : index
    %62 = vector.load %arg13[%61, %c0_29] : memref<64x32xf32, #tpu.memory_space<vmem>>, vector<8x32xf32>
    tpu.vector_store %arg13[%61, %c0_29], %60 {strides = array<i32>} : memref<64x32xf32, #tpu.memory_space<vmem>>, vector<8x32xf32>,
    %c1_i32 = arith.constant 1 : i32
    %c8_i32_30 = arith.constant 8 : i32
    %63 = arith.muli %c1_i32, %c8_i32_30 : i32
    %64 = tpu.assume_multiple %63, 8 : i32
    %65 = arith.index_cast %64 : i32 to index
    %c0_31 = arith.constant 0 : index
    %66 = vector.load %arg14[%65, %c0_31] : memref<64x128xf32, #tpu.memory_space<vmem>>, vector<8x128xf32>
    %cst_32 = arith.constant dense<0.000000e+00> : vector<8x128xf32>
    %67 = tpu.matmul %53, %26, %cst_32 {dimension_numbers = #tpu.dot_dimension_numbers<[1], [0], [0], [1], [0, 0, 1, 1], [], []>} : vector<8x32xf32>, vector<32x128xf32>, vector<8x128xf32> -> vector<8x128xf32>
    %68 = arith.addf %66, %67 : vector<8x128xf32>
    %69 = arith.negf %68 : vector<8x128xf32>
    %70 = math.exp %69 : vector<8x128xf32>
    %cst_33 = arith.constant 1.000000e+00 : f32
    %71 = vector.broadcast %cst_33 : f32 to vector<8x128xf32>
    %72 = arith.addf %71, %70 : vector<8x128xf32>
    %73 = arith.divf %71, %72 : vector<8x128xf32>
    %74 = math.tanh %68 : vector<8x128xf32>
    %75 = arith.select %15, %74, %73 : vector<8x128xi1>, vector<8x128xf32>
    %76 = vector.extract_strided_slice %75 {offsets = [0, 0], sizes = [8, 32], strides = [1, 1]} : vector<8x128xf32> to vector<8x32xf32>
    %77 = vector.extract_strided_slice %75 {offsets = [0, 32], sizes = [8, 32], strides = [1, 1]} : vector<8x128xf32> to vector<8x32xf32>
    %78 = vector.extract_strided_slice %75 {offsets = [0, 64], sizes = [8, 32], strides = [1, 1]} : vector<8x128xf32> to vector<8x32xf32>
    %79 = vector.extract_strided_slice %75 {offsets = [0, 96], sizes = [8, 32], strides = [1, 1]} : vector<8x128xf32> to vector<8x32xf32>
    %80 = arith.mulf %77, %56 : vector<8x32xf32>
    %81 = arith.mulf %76, %78 : vector<8x32xf32>
    %82 = arith.addf %80, %81 : vector<8x32xf32>
    %83 = math.tanh %82 : vector<8x32xf32>
    %84 = arith.mulf %79, %83 : vector<8x32xf32>
    %85 = vector.broadcast %c1_i32 : i32 to vector<8x1xi32>
    %86 = arith.cmpi slt, %85, %8 : vector<8x1xi32>
    %87 = vector.shape_cast %86 : vector<8x1xi1> to vector<8x1xi1>
    %88 = vector.broadcast %87 : vector<8x1xi1> to vector<8x32xi1>
    %89 = arith.select %88, %84, %53 : vector<8x32xi1>, vector<8x32xf32>
    %90 = vector.shape_cast %86 : vector<8x1xi1> to vector<8x1xi1>
    %91 = vector.broadcast %90 : vector<8x1xi1> to vector<8x32xi1>
    %92 = arith.select %91, %82, %56 : vector<8x32xi1>, vector<8x32xf32>
    %cst_34 = arith.constant 0.000000e+00 : f32
    %93 = vector.shape_cast %86 : vector<8x1xi1> to vector<8x1xi1>
    %94 = vector.broadcast %93 : vector<8x1xi1> to vector<8x32xi1>
    %95 = vector.broadcast %cst_34 : f32 to vector<8x32xf32>
    %96 = arith.select %94, %84, %95 : vector<8x32xi1>, vector<8x32xf32>
    %97 = arith.index_cast %64 : i32 to index
    %c0_35 = arith.constant 0 : index
    %98 = vector.load %arg13[%97, %c0_35] : memref<64x32xf32, #tpu.memory_space<vmem>>, vector<8x32xf32>
    tpu.vector_store %arg13[%97, %c0_35], %96 {strides = array<i32>} : memref<64x32xf32, #tpu.memory_space<vmem>>, vector<8x32xf32>,
    %c2_i32 = arith.constant 2 : i32
    %c8_i32_36 = arith.constant 8 : i32
    %99 = arith.muli %c2_i32, %c8_i32_36 : i32
    %100 = tpu.assume_multiple %99, 8 : i32
    %101 = arith.index_cast %100 : i32 to index
    %c0_37 = arith.constant 0 : index
    %102 = vector.load %arg14[%101, %c0_37] : memref<64x128xf32, #tpu.memory_space<vmem>>, vector<8x128xf32>
    %cst_38 = arith.constant dense<0.000000e+00> : vector<8x128xf32>
    %103 = tpu.matmul %89, %26, %cst_38 {dimension_numbers = #tpu.dot_dimension_numbers<[1], [0], [0], [1], [0, 0, 1, 1], [], []>} : vector<8x32xf32>, vector<32x128xf32>, vector<8x128xf32> -> vector<8x128xf32>
    %104 = arith.addf %102, %103 : vector<8x128xf32>
    %105 = arith.negf %104 : vector<8x128xf32>
    %106 = math.exp %105 : vector<8x128xf32>
    %cst_39 = arith.constant 1.000000e+00 : f32
    %107 = vector.broadcast %cst_39 : f32 to vector<8x128xf32>
    %108 = arith.addf %107, %106 : vector<8x128xf32>
    %109 = arith.divf %107, %108 : vector<8x128xf32>
    %110 = math.tanh %104 : vector<8x128xf32>
    %111 = arith.select %15, %110, %109 : vector<8x128xi1>, vector<8x128xf32>
    %112 = vector.extract_strided_slice %111 {offsets = [0, 0], sizes = [8, 32], strides = [1, 1]} : vector<8x128xf32> to vector<8x32xf32>
    %113 = vector.extract_strided_slice %111 {offsets = [0, 32], sizes = [8, 32], strides = [1, 1]} : vector<8x128xf32> to vector<8x32xf32>
    %114 = vector.extract_strided_slice %111 {offsets = [0, 64], sizes = [8, 32], strides = [1, 1]} : vector<8x128xf32> to vector<8x32xf32>
    %115 = vector.extract_strided_slice %111 {offsets = [0, 96], sizes = [8, 32], strides = [1, 1]} : vector<8x128xf32> to vector<8x32xf32>
    %116 = arith.mulf %113, %92 : vector<8x32xf32>
    %117 = arith.mulf %112, %114 : vector<8x32xf32>
    %118 = arith.addf %116, %117 : vector<8x32xf32>
    %119 = math.tanh %118 : vector<8x32xf32>
    %120 = arith.mulf %115, %119 : vector<8x32xf32>
    %121 = vector.broadcast %c2_i32 : i32 to vector<8x1xi32>
    %122 = arith.cmpi slt, %121, %8 : vector<8x1xi32>
    %123 = vector.shape_cast %122 : vector<8x1xi1> to vector<8x1xi1>
    %124 = vector.broadcast %123 : vector<8x1xi1> to vector<8x32xi1>
    %125 = arith.select %124, %120, %89 : vector<8x32xi1>, vector<8x32xf32>
    %126 = vector.shape_cast %122 : vector<8x1xi1> to vector<8x1xi1>
    %127 = vector.broadcast %126 : vector<8x1xi1> to vector<8x32xi1>
    %128 = arith.select %127, %118, %92 : vector<8x32xi1>, vector<8x32xf32>
    %cst_40 = arith.constant 0.000000e+00 : f32
    %129 = vector.shape_cast %122 : vector<8x1xi1> to vector<8x1xi1>
    %130 = vector.broadcast %129 : vector<8x1xi1> to vector<8x32xi1>
    %131 = vector.broadcast %cst_40 : f32 to vector<8x32xf32>
    %132 = arith.select %130, %120, %131 : vector<8x32xi1>, vector<8x32xf32>
    %133 = arith.index_cast %100 : i32 to index
    %c0_41 = arith.constant 0 : index
    %134 = vector.load %arg13[%133, %c0_41] : memref<64x32xf32, #tpu.memory_space<vmem>>, vector<8x32xf32>
    tpu.vector_store %arg13[%133, %c0_41], %132 {strides = array<i32>} : memref<64x32xf32, #tpu.memory_space<vmem>>, vector<8x32xf32>,
    %c3_i32 = arith.constant 3 : i32
    %c8_i32_42 = arith.constant 8 : i32
    %135 = arith.muli %c3_i32, %c8_i32_42 : i32
    %136 = tpu.assume_multiple %135, 8 : i32
    %137 = arith.index_cast %136 : i32 to index
    %c0_43 = arith.constant 0 : index
    %138 = vector.load %arg14[%137, %c0_43] : memref<64x128xf32, #tpu.memory_space<vmem>>, vector<8x128xf32>
    %cst_44 = arith.constant dense<0.000000e+00> : vector<8x128xf32>
    %139 = tpu.matmul %125, %26, %cst_44 {dimension_numbers = #tpu.dot_dimension_numbers<[1], [0], [0], [1], [0, 0, 1, 1], [], []>} : vector<8x32xf32>, vector<32x128xf32>, vector<8x128xf32> -> vector<8x128xf32>
    %140 = arith.addf %138, %139 : vector<8x128xf32>
    %141 = arith.negf %140 : vector<8x128xf32>
    %142 = math.exp %141 : vector<8x128xf32>
    %cst_45 = arith.constant 1.000000e+00 : f32
    %143 = vector.broadcast %cst_45 : f32 to vector<8x128xf32>
    %144 = arith.addf %143, %142 : vector<8x128xf32>
    %145 = arith.divf %143, %144 : vector<8x128xf32>
    %146 = math.tanh %140 : vector<8x128xf32>
    %147 = arith.select %15, %146, %145 : vector<8x128xi1>, vector<8x128xf32>
    %148 = vector.extract_strided_slice %147 {offsets = [0, 0], sizes = [8, 32], strides = [1, 1]} : vector<8x128xf32> to vector<8x32xf32>
    %149 = vector.extract_strided_slice %147 {offsets = [0, 32], sizes = [8, 32], strides = [1, 1]} : vector<8x128xf32> to vector<8x32xf32>
    %150 = vector.extract_strided_slice %147 {offsets = [0, 64], sizes = [8, 32], strides = [1, 1]} : vector<8x128xf32> to vector<8x32xf32>
    %151 = vector.extract_strided_slice %147 {offsets = [0, 96], sizes = [8, 32], strides = [1, 1]} : vector<8x128xf32> to vector<8x32xf32>
    %152 = arith.mulf %149, %128 : vector<8x32xf32>
    %153 = arith.mulf %148, %150 : vector<8x32xf32>
    %154 = arith.addf %152, %153 : vector<8x32xf32>
    %155 = math.tanh %154 : vector<8x32xf32>
    %156 = arith.mulf %151, %155 : vector<8x32xf32>
    %157 = vector.broadcast %c3_i32 : i32 to vector<8x1xi32>
    %158 = arith.cmpi slt, %157, %8 : vector<8x1xi32>
    %159 = vector.shape_cast %158 : vector<8x1xi1> to vector<8x1xi1>
    %160 = vector.broadcast %159 : vector<8x1xi1> to vector<8x32xi1>
    %161 = arith.select %160, %156, %125 : vector<8x32xi1>, vector<8x32xf32>
    %162 = vector.shape_cast %158 : vector<8x1xi1> to vector<8x1xi1>
    %163 = vector.broadcast %162 : vector<8x1xi1> to vector<8x32xi1>
    %164 = arith.select %163, %154, %128 : vector<8x32xi1>, vector<8x32xf32>
    %cst_46 = arith.constant 0.000000e+00 : f32
    %165 = vector.shape_cast %158 : vector<8x1xi1> to vector<8x1xi1>
    %166 = vector.broadcast %165 : vector<8x1xi1> to vector<8x32xi1>
    %167 = vector.broadcast %cst_46 : f32 to vector<8x32xf32>
    %168 = arith.select %166, %156, %167 : vector<8x32xi1>, vector<8x32xf32>
    %169 = arith.index_cast %136 : i32 to index
    %c0_47 = arith.constant 0 : index
    %170 = vector.load %arg13[%169, %c0_47] : memref<64x32xf32, #tpu.memory_space<vmem>>, vector<8x32xf32>
    tpu.vector_store %arg13[%169, %c0_47], %168 {strides = array<i32>} : memref<64x32xf32, #tpu.memory_space<vmem>>, vector<8x32xf32>,
    %c4_i32 = arith.constant 4 : i32
    %c8_i32_48 = arith.constant 8 : i32
    %171 = arith.muli %c4_i32, %c8_i32_48 : i32
    %172 = tpu.assume_multiple %171, 8 : i32
    %173 = arith.index_cast %172 : i32 to index
    %c0_49 = arith.constant 0 : index
    %174 = vector.load %arg14[%173, %c0_49] : memref<64x128xf32, #tpu.memory_space<vmem>>, vector<8x128xf32>
    %cst_50 = arith.constant dense<0.000000e+00> : vector<8x128xf32>
    %175 = tpu.matmul %161, %26, %cst_50 {dimension_numbers = #tpu.dot_dimension_numbers<[1], [0], [0], [1], [0, 0, 1, 1], [], []>} : vector<8x32xf32>, vector<32x128xf32>, vector<8x128xf32> -> vector<8x128xf32>
    %176 = arith.addf %174, %175 : vector<8x128xf32>
    %177 = arith.negf %176 : vector<8x128xf32>
    %178 = math.exp %177 : vector<8x128xf32>
    %cst_51 = arith.constant 1.000000e+00 : f32
    %179 = vector.broadcast %cst_51 : f32 to vector<8x128xf32>
    %180 = arith.addf %179, %178 : vector<8x128xf32>
    %181 = arith.divf %179, %180 : vector<8x128xf32>
    %182 = math.tanh %176 : vector<8x128xf32>
    %183 = arith.select %15, %182, %181 : vector<8x128xi1>, vector<8x128xf32>
    %184 = vector.extract_strided_slice %183 {offsets = [0, 0], sizes = [8, 32], strides = [1, 1]} : vector<8x128xf32> to vector<8x32xf32>
    %185 = vector.extract_strided_slice %183 {offsets = [0, 32], sizes = [8, 32], strides = [1, 1]} : vector<8x128xf32> to vector<8x32xf32>
    %186 = vector.extract_strided_slice %183 {offsets = [0, 64], sizes = [8, 32], strides = [1, 1]} : vector<8x128xf32> to vector<8x32xf32>
    %187 = vector.extract_strided_slice %183 {offsets = [0, 96], sizes = [8, 32], strides = [1, 1]} : vector<8x128xf32> to vector<8x32xf32>
    %188 = arith.mulf %185, %164 : vector<8x32xf32>
    %189 = arith.mulf %184, %186 : vector<8x32xf32>
    %190 = arith.addf %188, %189 : vector<8x32xf32>
    %191 = math.tanh %190 : vector<8x32xf32>
    %192 = arith.mulf %187, %191 : vector<8x32xf32>
    %193 = vector.broadcast %c4_i32 : i32 to vector<8x1xi32>
    %194 = arith.cmpi slt, %193, %8 : vector<8x1xi32>
    %195 = vector.shape_cast %194 : vector<8x1xi1> to vector<8x1xi1>
    %196 = vector.broadcast %195 : vector<8x1xi1> to vector<8x32xi1>
    %197 = arith.select %196, %192, %161 : vector<8x32xi1>, vector<8x32xf32>
    %198 = vector.shape_cast %194 : vector<8x1xi1> to vector<8x1xi1>
    %199 = vector.broadcast %198 : vector<8x1xi1> to vector<8x32xi1>
    %200 = arith.select %199, %190, %164 : vector<8x32xi1>, vector<8x32xf32>
    %cst_52 = arith.constant 0.000000e+00 : f32
    %201 = vector.shape_cast %194 : vector<8x1xi1> to vector<8x1xi1>
    %202 = vector.broadcast %201 : vector<8x1xi1> to vector<8x32xi1>
    %203 = vector.broadcast %cst_52 : f32 to vector<8x32xf32>
    %204 = arith.select %202, %192, %203 : vector<8x32xi1>, vector<8x32xf32>
    %205 = arith.index_cast %172 : i32 to index
    %c0_53 = arith.constant 0 : index
    %206 = vector.load %arg13[%205, %c0_53] : memref<64x32xf32, #tpu.memory_space<vmem>>, vector<8x32xf32>
    tpu.vector_store %arg13[%205, %c0_53], %204 {strides = array<i32>} : memref<64x32xf32, #tpu.memory_space<vmem>>, vector<8x32xf32>,
    %c5_i32 = arith.constant 5 : i32
    %c8_i32_54 = arith.constant 8 : i32
    %207 = arith.muli %c5_i32, %c8_i32_54 : i32
    %208 = tpu.assume_multiple %207, 8 : i32
    %209 = arith.index_cast %208 : i32 to index
    %c0_55 = arith.constant 0 : index
    %210 = vector.load %arg14[%209, %c0_55] : memref<64x128xf32, #tpu.memory_space<vmem>>, vector<8x128xf32>
    %cst_56 = arith.constant dense<0.000000e+00> : vector<8x128xf32>
    %211 = tpu.matmul %197, %26, %cst_56 {dimension_numbers = #tpu.dot_dimension_numbers<[1], [0], [0], [1], [0, 0, 1, 1], [], []>} : vector<8x32xf32>, vector<32x128xf32>, vector<8x128xf32> -> vector<8x128xf32>
    %212 = arith.addf %210, %211 : vector<8x128xf32>
    %213 = arith.negf %212 : vector<8x128xf32>
    %214 = math.exp %213 : vector<8x128xf32>
    %cst_57 = arith.constant 1.000000e+00 : f32
    %215 = vector.broadcast %cst_57 : f32 to vector<8x128xf32>
    %216 = arith.addf %215, %214 : vector<8x128xf32>
    %217 = arith.divf %215, %216 : vector<8x128xf32>
    %218 = math.tanh %212 : vector<8x128xf32>
    %219 = arith.select %15, %218, %217 : vector<8x128xi1>, vector<8x128xf32>
    %220 = vector.extract_strided_slice %219 {offsets = [0, 0], sizes = [8, 32], strides = [1, 1]} : vector<8x128xf32> to vector<8x32xf32>
    %221 = vector.extract_strided_slice %219 {offsets = [0, 32], sizes = [8, 32], strides = [1, 1]} : vector<8x128xf32> to vector<8x32xf32>
    %222 = vector.extract_strided_slice %219 {offsets = [0, 64], sizes = [8, 32], strides = [1, 1]} : vector<8x128xf32> to vector<8x32xf32>
    %223 = vector.extract_strided_slice %219 {offsets = [0, 96], sizes = [8, 32], strides = [1, 1]} : vector<8x128xf32> to vector<8x32xf32>
    %224 = arith.mulf %221, %200 : vector<8x32xf32>
    %225 = arith.mulf %220, %222 : vector<8x32xf32>
    %226 = arith.addf %224, %225 : vector<8x32xf32>
    %227 = math.tanh %226 : vector<8x32xf32>
    %228 = arith.mulf %223, %227 : vector<8x32xf32>
    %229 = vector.broadcast %c5_i32 : i32 to vector<8x1xi32>
    %230 = arith.cmpi slt, %229, %8 : vector<8x1xi32>
    %231 = vector.shape_cast %230 : vector<8x1xi1> to vector<8x1xi1>
    %232 = vector.broadcast %231 : vector<8x1xi1> to vector<8x32xi1>
    %233 = arith.select %232, %228, %197 : vector<8x32xi1>, vector<8x32xf32>
    %234 = vector.shape_cast %230 : vector<8x1xi1> to vector<8x1xi1>
    %235 = vector.broadcast %234 : vector<8x1xi1> to vector<8x32xi1>
    %236 = arith.select %235, %226, %200 : vector<8x32xi1>, vector<8x32xf32>
    %cst_58 = arith.constant 0.000000e+00 : f32
    %237 = vector.shape_cast %230 : vector<8x1xi1> to vector<8x1xi1>
    %238 = vector.broadcast %237 : vector<8x1xi1> to vector<8x32xi1>
    %239 = vector.broadcast %cst_58 : f32 to vector<8x32xf32>
    %240 = arith.select %238, %228, %239 : vector<8x32xi1>, vector<8x32xf32>
    %241 = arith.index_cast %208 : i32 to index
    %c0_59 = arith.constant 0 : index
    %242 = vector.load %arg13[%241, %c0_59] : memref<64x32xf32, #tpu.memory_space<vmem>>, vector<8x32xf32>
    tpu.vector_store %arg13[%241, %c0_59], %240 {strides = array<i32>} : memref<64x32xf32, #tpu.memory_space<vmem>>, vector<8x32xf32>,
    %c6_i32 = arith.constant 6 : i32
    %c8_i32_60 = arith.constant 8 : i32
    %243 = arith.muli %c6_i32, %c8_i32_60 : i32
    %244 = tpu.assume_multiple %243, 8 : i32
    %245 = arith.index_cast %244 : i32 to index
    %c0_61 = arith.constant 0 : index
    %246 = vector.load %arg14[%245, %c0_61] : memref<64x128xf32, #tpu.memory_space<vmem>>, vector<8x128xf32>
    %cst_62 = arith.constant dense<0.000000e+00> : vector<8x128xf32>
    %247 = tpu.matmul %233, %26, %cst_62 {dimension_numbers = #tpu.dot_dimension_numbers<[1], [0], [0], [1], [0, 0, 1, 1], [], []>} : vector<8x32xf32>, vector<32x128xf32>, vector<8x128xf32> -> vector<8x128xf32>
    %248 = arith.addf %246, %247 : vector<8x128xf32>
    %249 = arith.negf %248 : vector<8x128xf32>
    %250 = math.exp %249 : vector<8x128xf32>
    %cst_63 = arith.constant 1.000000e+00 : f32
    %251 = vector.broadcast %cst_63 : f32 to vector<8x128xf32>
    %252 = arith.addf %251, %250 : vector<8x128xf32>
    %253 = arith.divf %251, %252 : vector<8x128xf32>
    %254 = math.tanh %248 : vector<8x128xf32>
    %255 = arith.select %15, %254, %253 : vector<8x128xi1>, vector<8x128xf32>
    %256 = vector.extract_strided_slice %255 {offsets = [0, 0], sizes = [8, 32], strides = [1, 1]} : vector<8x128xf32> to vector<8x32xf32>
    %257 = vector.extract_strided_slice %255 {offsets = [0, 32], sizes = [8, 32], strides = [1, 1]} : vector<8x128xf32> to vector<8x32xf32>
    %258 = vector.extract_strided_slice %255 {offsets = [0, 64], sizes = [8, 32], strides = [1, 1]} : vector<8x128xf32> to vector<8x32xf32>
    %259 = vector.extract_strided_slice %255 {offsets = [0, 96], sizes = [8, 32], strides = [1, 1]} : vector<8x128xf32> to vector<8x32xf32>
    %260 = arith.mulf %257, %236 : vector<8x32xf32>
    %261 = arith.mulf %256, %258 : vector<8x32xf32>
    %262 = arith.addf %260, %261 : vector<8x32xf32>
    %263 = math.tanh %262 : vector<8x32xf32>
    %264 = arith.mulf %259, %263 : vector<8x32xf32>
    %265 = vector.broadcast %c6_i32 : i32 to vector<8x1xi32>
    %266 = arith.cmpi slt, %265, %8 : vector<8x1xi32>
    %267 = vector.shape_cast %266 : vector<8x1xi1> to vector<8x1xi1>
    %268 = vector.broadcast %267 : vector<8x1xi1> to vector<8x32xi1>
    %269 = arith.select %268, %264, %233 : vector<8x32xi1>, vector<8x32xf32>
    %270 = vector.shape_cast %266 : vector<8x1xi1> to vector<8x1xi1>
    %271 = vector.broadcast %270 : vector<8x1xi1> to vector<8x32xi1>
    %272 = arith.select %271, %262, %236 : vector<8x32xi1>, vector<8x32xf32>
    %cst_64 = arith.constant 0.000000e+00 : f32
    %273 = vector.shape_cast %266 : vector<8x1xi1> to vector<8x1xi1>
    %274 = vector.broadcast %273 : vector<8x1xi1> to vector<8x32xi1>
    %275 = vector.broadcast %cst_64 : f32 to vector<8x32xf32>
    %276 = arith.select %274, %264, %275 : vector<8x32xi1>, vector<8x32xf32>
    %277 = arith.index_cast %244 : i32 to index
    %c0_65 = arith.constant 0 : index
    %278 = vector.load %arg13[%277, %c0_65] : memref<64x32xf32, #tpu.memory_space<vmem>>, vector<8x32xf32>
    tpu.vector_store %arg13[%277, %c0_65], %276 {strides = array<i32>} : memref<64x32xf32, #tpu.memory_space<vmem>>, vector<8x32xf32>,
    %c7_i32 = arith.constant 7 : i32
    %c8_i32_66 = arith.constant 8 : i32
    %279 = arith.muli %c7_i32, %c8_i32_66 : i32
    %280 = tpu.assume_multiple %279, 8 : i32
    %281 = arith.index_cast %280 : i32 to index
    %c0_67 = arith.constant 0 : index
    %282 = vector.load %arg14[%281, %c0_67] : memref<64x128xf32, #tpu.memory_space<vmem>>, vector<8x128xf32>
    %cst_68 = arith.constant dense<0.000000e+00> : vector<8x128xf32>
    %283 = tpu.matmul %269, %26, %cst_68 {dimension_numbers = #tpu.dot_dimension_numbers<[1], [0], [0], [1], [0, 0, 1, 1], [], []>} : vector<8x32xf32>, vector<32x128xf32>, vector<8x128xf32> -> vector<8x128xf32>
    %284 = arith.addf %282, %283 : vector<8x128xf32>
    %285 = arith.negf %284 : vector<8x128xf32>
    %286 = math.exp %285 : vector<8x128xf32>
    %cst_69 = arith.constant 1.000000e+00 : f32
    %287 = vector.broadcast %cst_69 : f32 to vector<8x128xf32>
    %288 = arith.addf %287, %286 : vector<8x128xf32>
    %289 = arith.divf %287, %288 : vector<8x128xf32>
    %290 = math.tanh %284 : vector<8x128xf32>
    %291 = arith.select %15, %290, %289 : vector<8x128xi1>, vector<8x128xf32>
    %292 = vector.extract_strided_slice %291 {offsets = [0, 0], sizes = [8, 32], strides = [1, 1]} : vector<8x128xf32> to vector<8x32xf32>
    %293 = vector.extract_strided_slice %291 {offsets = [0, 32], sizes = [8, 32], strides = [1, 1]} : vector<8x128xf32> to vector<8x32xf32>
    %294 = vector.extract_strided_slice %291 {offsets = [0, 64], sizes = [8, 32], strides = [1, 1]} : vector<8x128xf32> to vector<8x32xf32>
    %295 = vector.extract_strided_slice %291 {offsets = [0, 96], sizes = [8, 32], strides = [1, 1]} : vector<8x128xf32> to vector<8x32xf32>
    %296 = arith.mulf %293, %272 : vector<8x32xf32>
    %297 = arith.mulf %292, %294 : vector<8x32xf32>
    %298 = arith.addf %296, %297 : vector<8x32xf32>
    %299 = math.tanh %298 : vector<8x32xf32>
    %300 = arith.mulf %295, %299 : vector<8x32xf32>
    %301 = vector.broadcast %c7_i32 : i32 to vector<8x1xi32>
    %302 = arith.cmpi slt, %301, %8 : vector<8x1xi32>
    %303 = vector.shape_cast %302 : vector<8x1xi1> to vector<8x1xi1>
    %304 = vector.broadcast %303 : vector<8x1xi1> to vector<8x32xi1>
    %305 = arith.select %304, %300, %269 : vector<8x32xi1>, vector<8x32xf32>
    %306 = vector.shape_cast %302 : vector<8x1xi1> to vector<8x1xi1>
    %307 = vector.broadcast %306 : vector<8x1xi1> to vector<8x32xi1>
    %308 = arith.select %307, %298, %272 : vector<8x32xi1>, vector<8x32xf32>
    %cst_70 = arith.constant 0.000000e+00 : f32
    %309 = vector.shape_cast %302 : vector<8x1xi1> to vector<8x1xi1>
    %310 = vector.broadcast %309 : vector<8x1xi1> to vector<8x32xi1>
    %311 = vector.broadcast %cst_70 : f32 to vector<8x32xf32>
    %312 = arith.select %310, %300, %311 : vector<8x32xi1>, vector<8x32xf32>
    %313 = arith.index_cast %280 : i32 to index
    %c0_71 = arith.constant 0 : index
    %314 = vector.load %arg13[%313, %c0_71] : memref<64x32xf32, #tpu.memory_space<vmem>>, vector<8x32xf32>
    tpu.vector_store %arg13[%313, %c0_71], %312 {strides = array<i32>} : memref<64x32xf32, #tpu.memory_space<vmem>>, vector<8x32xf32>,
    %c8_i32_72 = arith.constant 8 : i32
    %c0_73 = arith.constant 0 : index
    %c0_74 = arith.constant 0 : index
    %c0_75 = arith.constant 0 : index
    %315 = vector.load %arg11[%c0_73, %c0_74, %c0_75] : memref<2x8x32xf32, #tpu.memory_space<vmem>>, vector<1x8x32xf32>
    %316 = vector.shape_cast %315 : vector<1x8x32xf32> to vector<8x32xf32>
    %317 = vector.shape_cast %305 : vector<8x32xf32> to vector<1x8x32xf32>
    tpu.vector_store %arg11[%c0_73, %c0_74, %c0_75], %317 {strides = array<i32>} : memref<2x8x32xf32, #tpu.memory_space<vmem>>, vector<1x8x32xf32>,
    %c0_76 = arith.constant 0 : index
    %c0_77 = arith.constant 0 : index
    %c0_78 = arith.constant 0 : index
    %318 = vector.load %arg12[%c0_76, %c0_77, %c0_78] : memref<2x8x32xf32, #tpu.memory_space<vmem>>, vector<1x8x32xf32>
    %319 = vector.shape_cast %318 : vector<1x8x32xf32> to vector<8x32xf32>
    %320 = vector.shape_cast %308 : vector<8x32xf32> to vector<1x8x32xf32>
    tpu.vector_store %arg12[%c0_76, %c0_77, %c0_78], %320 {strides = array<i32>} : memref<2x8x32xf32, #tpu.memory_space<vmem>>, vector<1x8x32xf32>,
    %c0_79 = arith.constant 0 : index
    %c0_80 = arith.constant 0 : index
    %321 = vector.load %arg13[%c0_79, %c0_80] : memref<64x32xf32, #tpu.memory_space<vmem>>, vector<64x32xf32>
    %c1 = arith.constant 1 : index
    %c0_81 = arith.constant 0 : index
    %c0_82 = arith.constant 0 : index
    %322 = vector.load %arg5[%c1, %c0_81, %c0_82] : memref<2x32x128xf32, #tpu.memory_space<vmem>>, vector<1x32x128xf32>
    %323 = vector.shape_cast %322 : vector<1x32x128xf32> to vector<32x128xf32>
    %cst_83 = arith.constant dense<0.000000e+00> : vector<64x128xf32>
    %324 = tpu.matmul %321, %323, %cst_83 {dimension_numbers = #tpu.dot_dimension_numbers<[1], [0], [0], [1], [0, 0, 1, 1], [], []>} : vector<64x32xf32>, vector<32x128xf32>, vector<64x128xf32> -> vector<64x128xf32>
    %c1_84 = arith.constant 1 : index
    %c0_85 = arith.constant 0 : index
    %c0_86 = arith.constant 0 : index
    %325 = vector.load %arg7[%c1_84, %c0_85, %c0_86] : memref<2x1x128xf32, #tpu.memory_space<vmem>>, vector<1x1x128xf32>
    %326 = vector.shape_cast %325 : vector<1x1x128xf32> to vector<1x128xf32>
    %327 = vector.broadcast %326 : vector<1x128xf32> to vector<64x128xf32>
    %328 = arith.addf %324, %327 : vector<64x128xf32>
    %c0_87 = arith.constant 0 : index
    %c0_88 = arith.constant 0 : index
    %329 = vector.load %arg14[%c0_87, %c0_88] : memref<64x128xf32, #tpu.memory_space<vmem>>, vector<64x128xf32>
    tpu.vector_store %arg14[%c0_87, %c0_88], %328 {strides = array<i32>} : memref<64x128xf32, #tpu.memory_space<vmem>>, vector<64x128xf32>,
    %c1_89 = arith.constant 1 : index
    %c0_90 = arith.constant 0 : index
    %c0_91 = arith.constant 0 : index
    %330 = vector.load %arg6[%c1_89, %c0_90, %c0_91] : memref<2x32x128xf32, #tpu.memory_space<vmem>>, vector<1x32x128xf32>
    %331 = vector.shape_cast %330 : vector<1x32x128xf32> to vector<32x128xf32>
    %c0_i32_92 = arith.constant 0 : i32
    %c8_i32_93 = arith.constant 8 : i32
    %332 = arith.muli %c0_i32_92, %c8_i32_93 : i32
    %333 = tpu.assume_multiple %332, 8 : i32
    %334 = arith.index_cast %333 : i32 to index
    %c0_94 = arith.constant 0 : index
    %335 = vector.load %arg14[%334, %c0_94] : memref<64x128xf32, #tpu.memory_space<vmem>>, vector<8x128xf32>
    %cst_95 = arith.constant dense<0.000000e+00> : vector<8x128xf32>
    %336 = tpu.matmul %9, %331, %cst_95 {dimension_numbers = #tpu.dot_dimension_numbers<[1], [0], [0], [1], [0, 0, 1, 1], [], []>} : vector<8x32xf32>, vector<32x128xf32>, vector<8x128xf32> -> vector<8x128xf32>
    %337 = arith.addf %335, %336 : vector<8x128xf32>
    %338 = arith.negf %337 : vector<8x128xf32>
    %339 = math.exp %338 : vector<8x128xf32>
    %cst_96 = arith.constant 1.000000e+00 : f32
    %340 = vector.broadcast %cst_96 : f32 to vector<8x128xf32>
    %341 = arith.addf %340, %339 : vector<8x128xf32>
    %342 = arith.divf %340, %341 : vector<8x128xf32>
    %343 = math.tanh %337 : vector<8x128xf32>
    %344 = arith.select %15, %343, %342 : vector<8x128xi1>, vector<8x128xf32>
    %345 = vector.extract_strided_slice %344 {offsets = [0, 0], sizes = [8, 32], strides = [1, 1]} : vector<8x128xf32> to vector<8x32xf32>
    %346 = vector.extract_strided_slice %344 {offsets = [0, 32], sizes = [8, 32], strides = [1, 1]} : vector<8x128xf32> to vector<8x32xf32>
    %347 = vector.extract_strided_slice %344 {offsets = [0, 64], sizes = [8, 32], strides = [1, 1]} : vector<8x128xf32> to vector<8x32xf32>
    %348 = vector.extract_strided_slice %344 {offsets = [0, 96], sizes = [8, 32], strides = [1, 1]} : vector<8x128xf32> to vector<8x32xf32>
    %349 = arith.mulf %346, %9 : vector<8x32xf32>
    %350 = arith.mulf %345, %347 : vector<8x32xf32>
    %351 = arith.addf %349, %350 : vector<8x32xf32>
    %352 = math.tanh %351 : vector<8x32xf32>
    %353 = arith.mulf %348, %352 : vector<8x32xf32>
    %354 = vector.broadcast %c0_i32_92 : i32 to vector<8x1xi32>
    %355 = arith.cmpi slt, %354, %8 : vector<8x1xi32>
    %356 = vector.shape_cast %355 : vector<8x1xi1> to vector<8x1xi1>
    %357 = vector.broadcast %356 : vector<8x1xi1> to vector<8x32xi1>
    %358 = arith.select %357, %353, %9 : vector<8x32xi1>, vector<8x32xf32>
    %359 = vector.shape_cast %355 : vector<8x1xi1> to vector<8x1xi1>
    %360 = vector.broadcast %359 : vector<8x1xi1> to vector<8x32xi1>
    %361 = arith.select %360, %351, %9 : vector<8x32xi1>, vector<8x32xf32>
    %cst_97 = arith.constant 0.000000e+00 : f32
    %362 = vector.shape_cast %355 : vector<8x1xi1> to vector<8x1xi1>
    %363 = vector.broadcast %362 : vector<8x1xi1> to vector<8x32xi1>
    %364 = vector.broadcast %cst_97 : f32 to vector<8x32xf32>
    %365 = arith.select %363, %353, %364 : vector<8x32xi1>, vector<8x32xf32>
    %366 = arith.index_cast %333 : i32 to index
    %c0_98 = arith.constant 0 : index
    %367 = vector.load %arg13[%366, %c0_98] : memref<64x32xf32, #tpu.memory_space<vmem>>, vector<8x32xf32>
    tpu.vector_store %arg13[%366, %c0_98], %365 {strides = array<i32>} : memref<64x32xf32, #tpu.memory_space<vmem>>, vector<8x32xf32>,
    %c1_i32_99 = arith.constant 1 : i32
    %c8_i32_100 = arith.constant 8 : i32
    %368 = arith.muli %c1_i32_99, %c8_i32_100 : i32
    %369 = tpu.assume_multiple %368, 8 : i32
    %370 = arith.index_cast %369 : i32 to index
    %c0_101 = arith.constant 0 : index
    %371 = vector.load %arg14[%370, %c0_101] : memref<64x128xf32, #tpu.memory_space<vmem>>, vector<8x128xf32>
    %cst_102 = arith.constant dense<0.000000e+00> : vector<8x128xf32>
    %372 = tpu.matmul %358, %331, %cst_102 {dimension_numbers = #tpu.dot_dimension_numbers<[1], [0], [0], [1], [0, 0, 1, 1], [], []>} : vector<8x32xf32>, vector<32x128xf32>, vector<8x128xf32> -> vector<8x128xf32>
    %373 = arith.addf %371, %372 : vector<8x128xf32>
    %374 = arith.negf %373 : vector<8x128xf32>
    %375 = math.exp %374 : vector<8x128xf32>
    %cst_103 = arith.constant 1.000000e+00 : f32
    %376 = vector.broadcast %cst_103 : f32 to vector<8x128xf32>
    %377 = arith.addf %376, %375 : vector<8x128xf32>
    %378 = arith.divf %376, %377 : vector<8x128xf32>
    %379 = math.tanh %373 : vector<8x128xf32>
    %380 = arith.select %15, %379, %378 : vector<8x128xi1>, vector<8x128xf32>
    %381 = vector.extract_strided_slice %380 {offsets = [0, 0], sizes = [8, 32], strides = [1, 1]} : vector<8x128xf32> to vector<8x32xf32>
    %382 = vector.extract_strided_slice %380 {offsets = [0, 32], sizes = [8, 32], strides = [1, 1]} : vector<8x128xf32> to vector<8x32xf32>
    %383 = vector.extract_strided_slice %380 {offsets = [0, 64], sizes = [8, 32], strides = [1, 1]} : vector<8x128xf32> to vector<8x32xf32>
    %384 = vector.extract_strided_slice %380 {offsets = [0, 96], sizes = [8, 32], strides = [1, 1]} : vector<8x128xf32> to vector<8x32xf32>
    %385 = arith.mulf %382, %361 : vector<8x32xf32>
    %386 = arith.mulf %381, %383 : vector<8x32xf32>
    %387 = arith.addf %385, %386 : vector<8x32xf32>
    %388 = math.tanh %387 : vector<8x32xf32>
    %389 = arith.mulf %384, %388 : vector<8x32xf32>
    %390 = vector.broadcast %c1_i32_99 : i32 to vector<8x1xi32>
    %391 = arith.cmpi slt, %390, %8 : vector<8x1xi32>
    %392 = vector.shape_cast %391 : vector<8x1xi1> to vector<8x1xi1>
    %393 = vector.broadcast %392 : vector<8x1xi1> to vector<8x32xi1>
    %394 = arith.select %393, %389, %358 : vector<8x32xi1>, vector<8x32xf32>
    %395 = vector.shape_cast %391 : vector<8x1xi1> to vector<8x1xi1>
    %396 = vector.broadcast %395 : vector<8x1xi1> to vector<8x32xi1>
    %397 = arith.select %396, %387, %361 : vector<8x32xi1>, vector<8x32xf32>
    %cst_104 = arith.constant 0.000000e+00 : f32
    %398 = vector.shape_cast %391 : vector<8x1xi1> to vector<8x1xi1>
    %399 = vector.broadcast %398 : vector<8x1xi1> to vector<8x32xi1>
    %400 = vector.broadcast %cst_104 : f32 to vector<8x32xf32>
    %401 = arith.select %399, %389, %400 : vector<8x32xi1>, vector<8x32xf32>
    %402 = arith.index_cast %369 : i32 to index
    %c0_105 = arith.constant 0 : index
    %403 = vector.load %arg13[%402, %c0_105] : memref<64x32xf32, #tpu.memory_space<vmem>>, vector<8x32xf32>
    tpu.vector_store %arg13[%402, %c0_105], %401 {strides = array<i32>} : memref<64x32xf32, #tpu.memory_space<vmem>>, vector<8x32xf32>,
    %c2_i32_106 = arith.constant 2 : i32
    %c8_i32_107 = arith.constant 8 : i32
    %404 = arith.muli %c2_i32_106, %c8_i32_107 : i32
    %405 = tpu.assume_multiple %404, 8 : i32
    %406 = arith.index_cast %405 : i32 to index
    %c0_108 = arith.constant 0 : index
    %407 = vector.load %arg14[%406, %c0_108] : memref<64x128xf32, #tpu.memory_space<vmem>>, vector<8x128xf32>
    %cst_109 = arith.constant dense<0.000000e+00> : vector<8x128xf32>
    %408 = tpu.matmul %394, %331, %cst_109 {dimension_numbers = #tpu.dot_dimension_numbers<[1], [0], [0], [1], [0, 0, 1, 1], [], []>} : vector<8x32xf32>, vector<32x128xf32>, vector<8x128xf32> -> vector<8x128xf32>
    %409 = arith.addf %407, %408 : vector<8x128xf32>
    %410 = arith.negf %409 : vector<8x128xf32>
    %411 = math.exp %410 : vector<8x128xf32>
    %cst_110 = arith.constant 1.000000e+00 : f32
    %412 = vector.broadcast %cst_110 : f32 to vector<8x128xf32>
    %413 = arith.addf %412, %411 : vector<8x128xf32>
    %414 = arith.divf %412, %413 : vector<8x128xf32>
    %415 = math.tanh %409 : vector<8x128xf32>
    %416 = arith.select %15, %415, %414 : vector<8x128xi1>, vector<8x128xf32>
    %417 = vector.extract_strided_slice %416 {offsets = [0, 0], sizes = [8, 32], strides = [1, 1]} : vector<8x128xf32> to vector<8x32xf32>
    %418 = vector.extract_strided_slice %416 {offsets = [0, 32], sizes = [8, 32], strides = [1, 1]} : vector<8x128xf32> to vector<8x32xf32>
    %419 = vector.extract_strided_slice %416 {offsets = [0, 64], sizes = [8, 32], strides = [1, 1]} : vector<8x128xf32> to vector<8x32xf32>
    %420 = vector.extract_strided_slice %416 {offsets = [0, 96], sizes = [8, 32], strides = [1, 1]} : vector<8x128xf32> to vector<8x32xf32>
    %421 = arith.mulf %418, %397 : vector<8x32xf32>
    %422 = arith.mulf %417, %419 : vector<8x32xf32>
    %423 = arith.addf %421, %422 : vector<8x32xf32>
    %424 = math.tanh %423 : vector<8x32xf32>
    %425 = arith.mulf %420, %424 : vector<8x32xf32>
    %426 = vector.broadcast %c2_i32_106 : i32 to vector<8x1xi32>
    %427 = arith.cmpi slt, %426, %8 : vector<8x1xi32>
    %428 = vector.shape_cast %427 : vector<8x1xi1> to vector<8x1xi1>
    %429 = vector.broadcast %428 : vector<8x1xi1> to vector<8x32xi1>
    %430 = arith.select %429, %425, %394 : vector<8x32xi1>, vector<8x32xf32>
    %431 = vector.shape_cast %427 : vector<8x1xi1> to vector<8x1xi1>
    %432 = vector.broadcast %431 : vector<8x1xi1> to vector<8x32xi1>
    %433 = arith.select %432, %423, %397 : vector<8x32xi1>, vector<8x32xf32>
    %cst_111 = arith.constant 0.000000e+00 : f32
    %434 = vector.shape_cast %427 : vector<8x1xi1> to vector<8x1xi1>
    %435 = vector.broadcast %434 : vector<8x1xi1> to vector<8x32xi1>
    %436 = vector.broadcast %cst_111 : f32 to vector<8x32xf32>
    %437 = arith.select %435, %425, %436 : vector<8x32xi1>, vector<8x32xf32>
    %438 = arith.index_cast %405 : i32 to index
    %c0_112 = arith.constant 0 : index
    %439 = vector.load %arg13[%438, %c0_112] : memref<64x32xf32, #tpu.memory_space<vmem>>, vector<8x32xf32>
    tpu.vector_store %arg13[%438, %c0_112], %437 {strides = array<i32>} : memref<64x32xf32, #tpu.memory_space<vmem>>, vector<8x32xf32>,
    %c3_i32_113 = arith.constant 3 : i32
    %c8_i32_114 = arith.constant 8 : i32
    %440 = arith.muli %c3_i32_113, %c8_i32_114 : i32
    %441 = tpu.assume_multiple %440, 8 : i32
    %442 = arith.index_cast %441 : i32 to index
    %c0_115 = arith.constant 0 : index
    %443 = vector.load %arg14[%442, %c0_115] : memref<64x128xf32, #tpu.memory_space<vmem>>, vector<8x128xf32>
    %cst_116 = arith.constant dense<0.000000e+00> : vector<8x128xf32>
    %444 = tpu.matmul %430, %331, %cst_116 {dimension_numbers = #tpu.dot_dimension_numbers<[1], [0], [0], [1], [0, 0, 1, 1], [], []>} : vector<8x32xf32>, vector<32x128xf32>, vector<8x128xf32> -> vector<8x128xf32>
    %445 = arith.addf %443, %444 : vector<8x128xf32>
    %446 = arith.negf %445 : vector<8x128xf32>
    %447 = math.exp %446 : vector<8x128xf32>
    %cst_117 = arith.constant 1.000000e+00 : f32
    %448 = vector.broadcast %cst_117 : f32 to vector<8x128xf32>
    %449 = arith.addf %448, %447 : vector<8x128xf32>
    %450 = arith.divf %448, %449 : vector<8x128xf32>
    %451 = math.tanh %445 : vector<8x128xf32>
    %452 = arith.select %15, %451, %450 : vector<8x128xi1>, vector<8x128xf32>
    %453 = vector.extract_strided_slice %452 {offsets = [0, 0], sizes = [8, 32], strides = [1, 1]} : vector<8x128xf32> to vector<8x32xf32>
    %454 = vector.extract_strided_slice %452 {offsets = [0, 32], sizes = [8, 32], strides = [1, 1]} : vector<8x128xf32> to vector<8x32xf32>
    %455 = vector.extract_strided_slice %452 {offsets = [0, 64], sizes = [8, 32], strides = [1, 1]} : vector<8x128xf32> to vector<8x32xf32>
    %456 = vector.extract_strided_slice %452 {offsets = [0, 96], sizes = [8, 32], strides = [1, 1]} : vector<8x128xf32> to vector<8x32xf32>
    %457 = arith.mulf %454, %433 : vector<8x32xf32>
    %458 = arith.mulf %453, %455 : vector<8x32xf32>
    %459 = arith.addf %457, %458 : vector<8x32xf32>
    %460 = math.tanh %459 : vector<8x32xf32>
    %461 = arith.mulf %456, %460 : vector<8x32xf32>
    %462 = vector.broadcast %c3_i32_113 : i32 to vector<8x1xi32>
    %463 = arith.cmpi slt, %462, %8 : vector<8x1xi32>
    %464 = vector.shape_cast %463 : vector<8x1xi1> to vector<8x1xi1>
    %465 = vector.broadcast %464 : vector<8x1xi1> to vector<8x32xi1>
    %466 = arith.select %465, %461, %430 : vector<8x32xi1>, vector<8x32xf32>
    %467 = vector.shape_cast %463 : vector<8x1xi1> to vector<8x1xi1>
    %468 = vector.broadcast %467 : vector<8x1xi1> to vector<8x32xi1>
    %469 = arith.select %468, %459, %433 : vector<8x32xi1>, vector<8x32xf32>
    %cst_118 = arith.constant 0.000000e+00 : f32
    %470 = vector.shape_cast %463 : vector<8x1xi1> to vector<8x1xi1>
    %471 = vector.broadcast %470 : vector<8x1xi1> to vector<8x32xi1>
    %472 = vector.broadcast %cst_118 : f32 to vector<8x32xf32>
    %473 = arith.select %471, %461, %472 : vector<8x32xi1>, vector<8x32xf32>
    %474 = arith.index_cast %441 : i32 to index
    %c0_119 = arith.constant 0 : index
    %475 = vector.load %arg13[%474, %c0_119] : memref<64x32xf32, #tpu.memory_space<vmem>>, vector<8x32xf32>
    tpu.vector_store %arg13[%474, %c0_119], %473 {strides = array<i32>} : memref<64x32xf32, #tpu.memory_space<vmem>>, vector<8x32xf32>,
    %c4_i32_120 = arith.constant 4 : i32
    %c8_i32_121 = arith.constant 8 : i32
    %476 = arith.muli %c4_i32_120, %c8_i32_121 : i32
    %477 = tpu.assume_multiple %476, 8 : i32
    %478 = arith.index_cast %477 : i32 to index
    %c0_122 = arith.constant 0 : index
    %479 = vector.load %arg14[%478, %c0_122] : memref<64x128xf32, #tpu.memory_space<vmem>>, vector<8x128xf32>
    %cst_123 = arith.constant dense<0.000000e+00> : vector<8x128xf32>
    %480 = tpu.matmul %466, %331, %cst_123 {dimension_numbers = #tpu.dot_dimension_numbers<[1], [0], [0], [1], [0, 0, 1, 1], [], []>} : vector<8x32xf32>, vector<32x128xf32>, vector<8x128xf32> -> vector<8x128xf32>
    %481 = arith.addf %479, %480 : vector<8x128xf32>
    %482 = arith.negf %481 : vector<8x128xf32>
    %483 = math.exp %482 : vector<8x128xf32>
    %cst_124 = arith.constant 1.000000e+00 : f32
    %484 = vector.broadcast %cst_124 : f32 to vector<8x128xf32>
    %485 = arith.addf %484, %483 : vector<8x128xf32>
    %486 = arith.divf %484, %485 : vector<8x128xf32>
    %487 = math.tanh %481 : vector<8x128xf32>
    %488 = arith.select %15, %487, %486 : vector<8x128xi1>, vector<8x128xf32>
    %489 = vector.extract_strided_slice %488 {offsets = [0, 0], sizes = [8, 32], strides = [1, 1]} : vector<8x128xf32> to vector<8x32xf32>
    %490 = vector.extract_strided_slice %488 {offsets = [0, 32], sizes = [8, 32], strides = [1, 1]} : vector<8x128xf32> to vector<8x32xf32>
    %491 = vector.extract_strided_slice %488 {offsets = [0, 64], sizes = [8, 32], strides = [1, 1]} : vector<8x128xf32> to vector<8x32xf32>
    %492 = vector.extract_strided_slice %488 {offsets = [0, 96], sizes = [8, 32], strides = [1, 1]} : vector<8x128xf32> to vector<8x32xf32>
    %493 = arith.mulf %490, %469 : vector<8x32xf32>
    %494 = arith.mulf %489, %491 : vector<8x32xf32>
    %495 = arith.addf %493, %494 : vector<8x32xf32>
    %496 = math.tanh %495 : vector<8x32xf32>
    %497 = arith.mulf %492, %496 : vector<8x32xf32>
    %498 = vector.broadcast %c4_i32_120 : i32 to vector<8x1xi32>
    %499 = arith.cmpi slt, %498, %8 : vector<8x1xi32>
    %500 = vector.shape_cast %499 : vector<8x1xi1> to vector<8x1xi1>
    %501 = vector.broadcast %500 : vector<8x1xi1> to vector<8x32xi1>
    %502 = arith.select %501, %497, %466 : vector<8x32xi1>, vector<8x32xf32>
    %503 = vector.shape_cast %499 : vector<8x1xi1> to vector<8x1xi1>
    %504 = vector.broadcast %503 : vector<8x1xi1> to vector<8x32xi1>
    %505 = arith.select %504, %495, %469 : vector<8x32xi1>, vector<8x32xf32>
    %cst_125 = arith.constant 0.000000e+00 : f32
    %506 = vector.shape_cast %499 : vector<8x1xi1> to vector<8x1xi1>
    %507 = vector.broadcast %506 : vector<8x1xi1> to vector<8x32xi1>
    %508 = vector.broadcast %cst_125 : f32 to vector<8x32xf32>
    %509 = arith.select %507, %497, %508 : vector<8x32xi1>, vector<8x32xf32>
    %510 = arith.index_cast %477 : i32 to index
    %c0_126 = arith.constant 0 : index
    %511 = vector.load %arg13[%510, %c0_126] : memref<64x32xf32, #tpu.memory_space<vmem>>, vector<8x32xf32>
    tpu.vector_store %arg13[%510, %c0_126], %509 {strides = array<i32>} : memref<64x32xf32, #tpu.memory_space<vmem>>, vector<8x32xf32>,
    %c5_i32_127 = arith.constant 5 : i32
    %c8_i32_128 = arith.constant 8 : i32
    %512 = arith.muli %c5_i32_127, %c8_i32_128 : i32
    %513 = tpu.assume_multiple %512, 8 : i32
    %514 = arith.index_cast %513 : i32 to index
    %c0_129 = arith.constant 0 : index
    %515 = vector.load %arg14[%514, %c0_129] : memref<64x128xf32, #tpu.memory_space<vmem>>, vector<8x128xf32>
    %cst_130 = arith.constant dense<0.000000e+00> : vector<8x128xf32>
    %516 = tpu.matmul %502, %331, %cst_130 {dimension_numbers = #tpu.dot_dimension_numbers<[1], [0], [0], [1], [0, 0, 1, 1], [], []>} : vector<8x32xf32>, vector<32x128xf32>, vector<8x128xf32> -> vector<8x128xf32>
    %517 = arith.addf %515, %516 : vector<8x128xf32>
    %518 = arith.negf %517 : vector<8x128xf32>
    %519 = math.exp %518 : vector<8x128xf32>
    %cst_131 = arith.constant 1.000000e+00 : f32
    %520 = vector.broadcast %cst_131 : f32 to vector<8x128xf32>
    %521 = arith.addf %520, %519 : vector<8x128xf32>
    %522 = arith.divf %520, %521 : vector<8x128xf32>
    %523 = math.tanh %517 : vector<8x128xf32>
    %524 = arith.select %15, %523, %522 : vector<8x128xi1>, vector<8x128xf32>
    %525 = vector.extract_strided_slice %524 {offsets = [0, 0], sizes = [8, 32], strides = [1, 1]} : vector<8x128xf32> to vector<8x32xf32>
    %526 = vector.extract_strided_slice %524 {offsets = [0, 32], sizes = [8, 32], strides = [1, 1]} : vector<8x128xf32> to vector<8x32xf32>
    %527 = vector.extract_strided_slice %524 {offsets = [0, 64], sizes = [8, 32], strides = [1, 1]} : vector<8x128xf32> to vector<8x32xf32>
    %528 = vector.extract_strided_slice %524 {offsets = [0, 96], sizes = [8, 32], strides = [1, 1]} : vector<8x128xf32> to vector<8x32xf32>
    %529 = arith.mulf %526, %505 : vector<8x32xf32>
    %530 = arith.mulf %525, %527 : vector<8x32xf32>
    %531 = arith.addf %529, %530 : vector<8x32xf32>
    %532 = math.tanh %531 : vector<8x32xf32>
    %533 = arith.mulf %528, %532 : vector<8x32xf32>
    %534 = vector.broadcast %c5_i32_127 : i32 to vector<8x1xi32>
    %535 = arith.cmpi slt, %534, %8 : vector<8x1xi32>
    %536 = vector.shape_cast %535 : vector<8x1xi1> to vector<8x1xi1>
    %537 = vector.broadcast %536 : vector<8x1xi1> to vector<8x32xi1>
    %538 = arith.select %537, %533, %502 : vector<8x32xi1>, vector<8x32xf32>
    %539 = vector.shape_cast %535 : vector<8x1xi1> to vector<8x1xi1>
    %540 = vector.broadcast %539 : vector<8x1xi1> to vector<8x32xi1>
    %541 = arith.select %540, %531, %505 : vector<8x32xi1>, vector<8x32xf32>
    %cst_132 = arith.constant 0.000000e+00 : f32
    %542 = vector.shape_cast %535 : vector<8x1xi1> to vector<8x1xi1>
    %543 = vector.broadcast %542 : vector<8x1xi1> to vector<8x32xi1>
    %544 = vector.broadcast %cst_132 : f32 to vector<8x32xf32>
    %545 = arith.select %543, %533, %544 : vector<8x32xi1>, vector<8x32xf32>
    %546 = arith.index_cast %513 : i32 to index
    %c0_133 = arith.constant 0 : index
    %547 = vector.load %arg13[%546, %c0_133] : memref<64x32xf32, #tpu.memory_space<vmem>>, vector<8x32xf32>
    tpu.vector_store %arg13[%546, %c0_133], %545 {strides = array<i32>} : memref<64x32xf32, #tpu.memory_space<vmem>>, vector<8x32xf32>,
    %c6_i32_134 = arith.constant 6 : i32
    %c8_i32_135 = arith.constant 8 : i32
    %548 = arith.muli %c6_i32_134, %c8_i32_135 : i32
    %549 = tpu.assume_multiple %548, 8 : i32
    %550 = arith.index_cast %549 : i32 to index
    %c0_136 = arith.constant 0 : index
    %551 = vector.load %arg14[%550, %c0_136] : memref<64x128xf32, #tpu.memory_space<vmem>>, vector<8x128xf32>
    %cst_137 = arith.constant dense<0.000000e+00> : vector<8x128xf32>
    %552 = tpu.matmul %538, %331, %cst_137 {dimension_numbers = #tpu.dot_dimension_numbers<[1], [0], [0], [1], [0, 0, 1, 1], [], []>} : vector<8x32xf32>, vector<32x128xf32>, vector<8x128xf32> -> vector<8x128xf32>
    %553 = arith.addf %551, %552 : vector<8x128xf32>
    %554 = arith.negf %553 : vector<8x128xf32>
    %555 = math.exp %554 : vector<8x128xf32>
    %cst_138 = arith.constant 1.000000e+00 : f32
    %556 = vector.broadcast %cst_138 : f32 to vector<8x128xf32>
    %557 = arith.addf %556, %555 : vector<8x128xf32>
    %558 = arith.divf %556, %557 : vector<8x128xf32>
    %559 = math.tanh %553 : vector<8x128xf32>
    %560 = arith.select %15, %559, %558 : vector<8x128xi1>, vector<8x128xf32>
    %561 = vector.extract_strided_slice %560 {offsets = [0, 0], sizes = [8, 32], strides = [1, 1]} : vector<8x128xf32> to vector<8x32xf32>
    %562 = vector.extract_strided_slice %560 {offsets = [0, 32], sizes = [8, 32], strides = [1, 1]} : vector<8x128xf32> to vector<8x32xf32>
    %563 = vector.extract_strided_slice %560 {offsets = [0, 64], sizes = [8, 32], strides = [1, 1]} : vector<8x128xf32> to vector<8x32xf32>
    %564 = vector.extract_strided_slice %560 {offsets = [0, 96], sizes = [8, 32], strides = [1, 1]} : vector<8x128xf32> to vector<8x32xf32>
    %565 = arith.mulf %562, %541 : vector<8x32xf32>
    %566 = arith.mulf %561, %563 : vector<8x32xf32>
    %567 = arith.addf %565, %566 : vector<8x32xf32>
    %568 = math.tanh %567 : vector<8x32xf32>
    %569 = arith.mulf %564, %568 : vector<8x32xf32>
    %570 = vector.broadcast %c6_i32_134 : i32 to vector<8x1xi32>
    %571 = arith.cmpi slt, %570, %8 : vector<8x1xi32>
    %572 = vector.shape_cast %571 : vector<8x1xi1> to vector<8x1xi1>
    %573 = vector.broadcast %572 : vector<8x1xi1> to vector<8x32xi1>
    %574 = arith.select %573, %569, %538 : vector<8x32xi1>, vector<8x32xf32>
    %575 = vector.shape_cast %571 : vector<8x1xi1> to vector<8x1xi1>
    %576 = vector.broadcast %575 : vector<8x1xi1> to vector<8x32xi1>
    %577 = arith.select %576, %567, %541 : vector<8x32xi1>, vector<8x32xf32>
    %cst_139 = arith.constant 0.000000e+00 : f32
    %578 = vector.shape_cast %571 : vector<8x1xi1> to vector<8x1xi1>
    %579 = vector.broadcast %578 : vector<8x1xi1> to vector<8x32xi1>
    %580 = vector.broadcast %cst_139 : f32 to vector<8x32xf32>
    %581 = arith.select %579, %569, %580 : vector<8x32xi1>, vector<8x32xf32>
    %582 = arith.index_cast %549 : i32 to index
    %c0_140 = arith.constant 0 : index
    %583 = vector.load %arg13[%582, %c0_140] : memref<64x32xf32, #tpu.memory_space<vmem>>, vector<8x32xf32>
    tpu.vector_store %arg13[%582, %c0_140], %581 {strides = array<i32>} : memref<64x32xf32, #tpu.memory_space<vmem>>, vector<8x32xf32>,
    %c7_i32_141 = arith.constant 7 : i32
    %c8_i32_142 = arith.constant 8 : i32
    %584 = arith.muli %c7_i32_141, %c8_i32_142 : i32
    %585 = tpu.assume_multiple %584, 8 : i32
    %586 = arith.index_cast %585 : i32 to index
    %c0_143 = arith.constant 0 : index
    %587 = vector.load %arg14[%586, %c0_143] : memref<64x128xf32, #tpu.memory_space<vmem>>, vector<8x128xf32>
    %cst_144 = arith.constant dense<0.000000e+00> : vector<8x128xf32>
    %588 = tpu.matmul %574, %331, %cst_144 {dimension_numbers = #tpu.dot_dimension_numbers<[1], [0], [0], [1], [0, 0, 1, 1], [], []>} : vector<8x32xf32>, vector<32x128xf32>, vector<8x128xf32> -> vector<8x128xf32>
    %589 = arith.addf %587, %588 : vector<8x128xf32>
    %590 = arith.negf %589 : vector<8x128xf32>
    %591 = math.exp %590 : vector<8x128xf32>
    %cst_145 = arith.constant 1.000000e+00 : f32
    %592 = vector.broadcast %cst_145 : f32 to vector<8x128xf32>
    %593 = arith.addf %592, %591 : vector<8x128xf32>
    %594 = arith.divf %592, %593 : vector<8x128xf32>
    %595 = math.tanh %589 : vector<8x128xf32>
    %596 = arith.select %15, %595, %594 : vector<8x128xi1>, vector<8x128xf32>
    %597 = vector.extract_strided_slice %596 {offsets = [0, 0], sizes = [8, 32], strides = [1, 1]} : vector<8x128xf32> to vector<8x32xf32>
    %598 = vector.extract_strided_slice %596 {offsets = [0, 32], sizes = [8, 32], strides = [1, 1]} : vector<8x128xf32> to vector<8x32xf32>
    %599 = vector.extract_strided_slice %596 {offsets = [0, 64], sizes = [8, 32], strides = [1, 1]} : vector<8x128xf32> to vector<8x32xf32>
    %600 = vector.extract_strided_slice %596 {offsets = [0, 96], sizes = [8, 32], strides = [1, 1]} : vector<8x128xf32> to vector<8x32xf32>
    %601 = arith.mulf %598, %577 : vector<8x32xf32>
    %602 = arith.mulf %597, %599 : vector<8x32xf32>
    %603 = arith.addf %601, %602 : vector<8x32xf32>
    %604 = math.tanh %603 : vector<8x32xf32>
    %605 = arith.mulf %600, %604 : vector<8x32xf32>
    %606 = vector.broadcast %c7_i32_141 : i32 to vector<8x1xi32>
    %607 = arith.cmpi slt, %606, %8 : vector<8x1xi32>
    %608 = vector.shape_cast %607 : vector<8x1xi1> to vector<8x1xi1>
    %609 = vector.broadcast %608 : vector<8x1xi1> to vector<8x32xi1>
    %610 = arith.select %609, %605, %574 : vector<8x32xi1>, vector<8x32xf32>
    %611 = vector.shape_cast %607 : vector<8x1xi1> to vector<8x1xi1>
    %612 = vector.broadcast %611 : vector<8x1xi1> to vector<8x32xi1>
    %613 = arith.select %612, %603, %577 : vector<8x32xi1>, vector<8x32xf32>
    %cst_146 = arith.constant 0.000000e+00 : f32
    %614 = vector.shape_cast %607 : vector<8x1xi1> to vector<8x1xi1>
    %615 = vector.broadcast %614 : vector<8x1xi1> to vector<8x32xi1>
    %616 = vector.broadcast %cst_146 : f32 to vector<8x32xf32>
    %617 = arith.select %615, %605, %616 : vector<8x32xi1>, vector<8x32xf32>
    %618 = arith.index_cast %585 : i32 to index
    %c0_147 = arith.constant 0 : index
    %619 = vector.load %arg13[%618, %c0_147] : memref<64x32xf32, #tpu.memory_space<vmem>>, vector<8x32xf32>
    tpu.vector_store %arg13[%618, %c0_147], %617 {strides = array<i32>} : memref<64x32xf32, #tpu.memory_space<vmem>>, vector<8x32xf32>,
    %c8_i32_148 = arith.constant 8 : i32
    %c1_149 = arith.constant 1 : index
    %c0_150 = arith.constant 0 : index
    %c0_151 = arith.constant 0 : index
    %620 = vector.load %arg11[%c1_149, %c0_150, %c0_151] : memref<2x8x32xf32, #tpu.memory_space<vmem>>, vector<1x8x32xf32>
    %621 = vector.shape_cast %620 : vector<1x8x32xf32> to vector<8x32xf32>
    %622 = vector.shape_cast %610 : vector<8x32xf32> to vector<1x8x32xf32>
    tpu.vector_store %arg11[%c1_149, %c0_150, %c0_151], %622 {strides = array<i32>} : memref<2x8x32xf32, #tpu.memory_space<vmem>>, vector<1x8x32xf32>,
    %c1_152 = arith.constant 1 : index
    %c0_153 = arith.constant 0 : index
    %c0_154 = arith.constant 0 : index
    %623 = vector.load %arg12[%c1_152, %c0_153, %c0_154] : memref<2x8x32xf32, #tpu.memory_space<vmem>>, vector<1x8x32xf32>
    %624 = vector.shape_cast %623 : vector<1x8x32xf32> to vector<8x32xf32>
    %625 = vector.shape_cast %613 : vector<8x32xf32> to vector<1x8x32xf32>
    tpu.vector_store %arg12[%c1_152, %c0_153, %c0_154], %625 {strides = array<i32>} : memref<2x8x32xf32, #tpu.memory_space<vmem>>, vector<1x8x32xf32>,
    %c0_155 = arith.constant 0 : index
    %c0_156 = arith.constant 0 : index
    %626 = vector.load %arg13[%c0_155, %c0_156] : memref<64x32xf32, #tpu.memory_space<vmem>>, vector<64x32xf32>
    %c0_157 = arith.constant 0 : index
    %c0_158 = arith.constant 0 : index
    %627 = vector.load %arg8[%c0_157, %c0_158] : memref<32x128xf32, #tpu.memory_space<vmem>>, vector<32x128xf32>
    %cst_159 = arith.constant dense<0.000000e+00> : vector<64x128xf32>
    %628 = tpu.matmul %626, %627, %cst_159 {dimension_numbers = #tpu.dot_dimension_numbers<[1], [0], [0], [1], [0, 0, 1, 1], [], []>} : vector<64x32xf32>, vector<32x128xf32>, vector<64x128xf32> -> vector<64x128xf32>
    %c0_160 = arith.constant 0 : index
    %c0_161 = arith.constant 0 : index
    %629 = vector.load %arg9[%c0_160, %c0_161] : memref<1x128xf32, #tpu.memory_space<vmem>>, vector<1x128xf32>
    %630 = vector.broadcast %629 : vector<1x128xf32> to vector<64x128xf32>
    %631 = arith.addf %628, %630 : vector<64x128xf32>
    %632 = vector.shape_cast %631 : vector<64x128xf32> to vector<8x8x128xf32>
    %c0_162 = arith.constant 0 : index
    %c0_163 = arith.constant 0 : index
    %c0_164 = arith.constant 0 : index
    %633 = vector.load %arg10[%c0_162, %c0_163, %c0_164] : memref<8x8x128xf32, #tpu.memory_space<vmem>>, vector<8x8x128xf32>
    tpu.vector_store %arg10[%c0_162, %c0_163, %c0_164], %632 {strides = array<i32>} : memref<8x8x128xf32, #tpu.memory_space<vmem>>, vector<8x8x128xf32>,
    return
  }
  func.func @transform_0(%arg0: i32) -> (i32, i32) {
    %c0_i32 = arith.constant 0 : i32
    %c0_i32_0 = arith.constant 0 : i32
    return %arg0, %c0_i32 : i32, i32
  }
  func.func @transform_1(%arg0: i32) -> (i32, i32, i32) {
    %c0_i32 = arith.constant 0 : i32
    %c0_i32_0 = arith.constant 0 : i32
    %c0_i32_1 = arith.constant 0 : i32
    return %c0_i32, %arg0, %c0_i32_0 : i32, i32, i32
  }
  func.func @transform_2(%arg0: i32) -> (i32, i32) {
    %c0_i32 = arith.constant 0 : i32
    %c0_i32_0 = arith.constant 0 : i32
    %c0_i32_1 = arith.constant 0 : i32
    return %c0_i32, %c0_i32_0 : i32, i32
  }
  func.func @transform_3(%arg0: i32) -> (i32, i32) {
    %c0_i32 = arith.constant 0 : i32
    %c0_i32_0 = arith.constant 0 : i32
    %c0_i32_1 = arith.constant 0 : i32
    return %c0_i32, %c0_i32_0 : i32, i32
  }
  func.func @transform_4(%arg0: i32) -> (i32, i32, i32) {
    %c0_i32 = arith.constant 0 : i32
    %c0_i32_0 = arith.constant 0 : i32
    %c0_i32_1 = arith.constant 0 : i32
    %c0_i32_2 = arith.constant 0 : i32
    return %c0_i32, %c0_i32_0, %c0_i32_1 : i32, i32, i32
  }
  func.func @transform_5(%arg0: i32) -> (i32, i32, i32) {
    %c0_i32 = arith.constant 0 : i32
    %c0_i32_0 = arith.constant 0 : i32
    %c0_i32_1 = arith.constant 0 : i32
    %c0_i32_2 = arith.constant 0 : i32
    return %c0_i32, %c0_i32_0, %c0_i32_1 : i32, i32, i32
  }
  func.func @transform_6(%arg0: i32) -> (i32, i32, i32) {
    %c0_i32 = arith.constant 0 : i32
    %c0_i32_0 = arith.constant 0 : i32
    %c0_i32_1 = arith.constant 0 : i32
    %c0_i32_2 = arith.constant 0 : i32
    return %c0_i32, %c0_i32_0, %c0_i32_1 : i32, i32, i32
  }
  func.func @transform_7(%arg0: i32) -> (i32, i32) {
    %c0_i32 = arith.constant 0 : i32
    %c0_i32_0 = arith.constant 0 : i32
    %c0_i32_1 = arith.constant 0 : i32
    return %c0_i32, %c0_i32_0 : i32, i32
  }
  func.func @transform_8(%arg0: i32) -> (i32, i32) {
    %c0_i32 = arith.constant 0 : i32
    %c0_i32_0 = arith.constant 0 : i32
    %c0_i32_1 = arith.constant 0 : i32
    return %c0_i32, %c0_i32_0 : i32, i32
  }
  func.func @transform_9(%arg0: i32) -> (i32, i32, i32) {
    %c0_i32 = arith.constant 0 : i32
    %c0_i32_0 = arith.constant 0 : i32
    %c0_i32_1 = arith.constant 0 : i32
    return %c0_i32, %arg0, %c0_i32_0 : i32, i32, i32
  }
  func.func @transform_10(%arg0: i32) -> (i32, i32, i32) {
    %c0_i32 = arith.constant 0 : i32
    %c0_i32_0 = arith.constant 0 : i32
    %c0_i32_1 = arith.constant 0 : i32
    return %c0_i32, %arg0, %c0_i32_0 : i32, i32, i32
  }
  func.func @transform_11(%arg0: i32) -> (i32, i32, i32) {
    %c0_i32 = arith.constant 0 : i32
    %c0_i32_0 = arith.constant 0 : i32
    %c0_i32_1 = arith.constant 0 : i32
    return %c0_i32, %arg0, %c0_i32_0 : i32, i32, i32
  }
}

</mosaic_0001>

<llo_original>
// kernel: tpu_custom_call.1
$region0: #{tpu_custom_call.1}
  #allocation0 [shape = 'u32[]', space=smem, size = 0x4, offset = 0x4, fixed_abs, tag = 'smem constant byte address 0x4 - core index']
  #allocation1 [shape = 'u32[144,128]{1,0:T(1,128)}', space=vmem, size = 0x12000, scoped, tag = 'internal scratch']
  #allocation2 [shape = 'f32[64,32]{1,0:T(8,128)}', space=vmem, size = 0x8000, scoped, tag = 'scratch operand']
  #allocation3 [shape = 'f32[64,128]{1,0:T(8,128)}', space=vmem, size = 0x8000, scoped, tag = 'scratch operand']
  %s0 = inlined_call_operand.vmem [shape: s32[8,1], index: 0, kind: input, shape index: {}]
  %s1 = inlined_call_operand.hbm [shape: f32[8,8,16], index: 1, kind: input, shape index: {}]
  %s2 = inlined_call_operand.hbm [shape: f32[16,32], index: 2, kind: input, shape index: {}]
  %s3 = inlined_call_operand.vmem [shape: f32[1,32], index: 3, kind: input, shape index: {}]
  %s4 = inlined_call_operand.hbm [shape: f32[2,32,128], index: 4, kind: input, shape index: {}]
  %s5 = inlined_call_operand.hbm [shape: f32[2,32,128], index: 5, kind: input, shape index: {}]
  %s6 = inlined_call_operand.vmem [shape: f32[2,1,128], index: 6, kind: input, shape index: {}]
  %s7 = inlined_call_operand.vmem [shape: f32[32,128], index: 7, kind: input, shape index: {}]
  %s8 = inlined_call_operand.vmem [shape: f32[1,128], index: 8, kind: input, shape index: {}]
  %s9 = inlined_call_operand.hbm [shape: f32[8,8,128], index: 9, kind: output, shape index: {0}]
  %s10 = inlined_call_operand.hbm [shape: f32[2,8,32], index: 10, kind: output, shape index: {1}]
  %s11 = inlined_call_operand.hbm [shape: f32[2,8,32], index: 11, kind: output, shape index: {2}]
  %12 = xla_tuple %s9, %s10, %s11
  %s13 = sld [smem:[#allocation0]]
  $region78: #{tpu_custom_call.1} parent=0
    _
  %s15 = ssub.s32 1, %s13
  %s16 = scalar_select 0, %s15, %s13
  $region1: #{tpu_custom_call.1} parent=0
    #allocation4 [shape = 'u8[32768]{0}', space=vmem, size = 0x8000, scoped, tag = 'input window, operand 1, single buffered']
    #allocation5 [shape = 's32[1]{0}', space=sflag, size = 0x4, scoped, tag = 'scoped memory for tpu_custom_call.1']
    #allocation6 [shape = 's32[1]{0}', space=sflag, size = 0x4, scoped, tag = 'scoped memory for tpu_custom_call.1']
    #allocation7 [shape = 'u8[8192]{0}', space=vmem, size = 0x2000, scoped, tag = 'input window, operand 2, single buffered']
    #allocation8 [shape = 's32[1]{0}', space=sflag, size = 0x4, scoped, tag = 'scoped memory for tpu_custom_call.1']
    #allocation9 [shape = 'u8[32768]{0}', space=vmem, size = 0x8000, scoped, tag = 'input window, operand 4, single buffered']
    #allocation10 [shape = 'u8[32768]{0}', space=vmem, size = 0x8000, scoped, tag = 'input window, operand 5, single buffered']
    #allocation11 [shape = 's32[1]{0}', space=sflag, size = 0x4, scoped, tag = 'scoped memory for tpu_custom_call.1']
    #allocation12 [shape = 'u8[32768]{0}', space=vmem, size = 0x8000, scoped, tag = 'output window, operand 0, single buffered']
    #allocation13 [shape = 'u8[8192]{0}', space=vmem, size = 0x2000, scoped, tag = 'output window, operand 1, single buffered']
    #allocation14 [shape = 's32[1]{0}', space=sflag, size = 0x4, scoped, tag = 'scoped memory for tpu_custom_call.1']
    #allocation15 [shape = 'u8[8192]{0}', space=vmem, size = 0x2000, scoped, tag = 'output window, operand 2, single buffered']
    %17 = vsyncpa [#allocation5], 0
    %18 = vsyncpa [#allocation8], 0
    %19 = vsyncpa [#allocation11], 0
    %20 = vsyncpa [#allocation6], 0
    %21 = vsyncpa [#allocation14], 0
    // Predicated region
    $region2: #{tpu_custom_call.1} parent=1 // pred_check
      _
    $region3: #{tpu_custom_call.1} parent=1 // pred_check_branch
      %23 = sbr.rel (0) target = $region5
    $region4: #{tpu_custom_call.1} parent=1 // pred_region
      _
    $region5: #{tpu_custom_call.1} parent=1 // pred_fallthru
      _
    // Predicated region
    $region6: #{tpu_custom_call.1} parent=1 // pred_check
      _
    $region7: #{tpu_custom_call.1} parent=1 // pred_check_branch
      %25 = sbr.rel (0) target = $region9
    $region8: #{tpu_custom_call.1} parent=1 // pred_region
      %s27 = ssub.s32 1024, 1024
      %28 = vsyncadd [#allocation5], %s27
      %s29 = sshll.u32 [#allocation4], 4
      %s30 = int_to_ptr.vmem [resolvable:$true] %s29
      %35 = dma.hbm_to_vmem [thread:$0]  %s1, 1024, %s30, [#allocation5], 128, 128, 8
    $region9: #{tpu_custom_call.1} parent=1 // pred_fallthru
      _
    // Predicated region
    $region10: #{tpu_custom_call.1} parent=1 // pred_check
      _
    $region11: #{tpu_custom_call.1} parent=1 // pred_check_branch
      %37 = sbr.rel (0) target = $region13
    $region12: #{tpu_custom_call.1} parent=1 // pred_region
      %s39 = ssub.s32 256, 256
      %40 = vsyncadd [#allocation8], %s39
      %s41 = sshll.u32 [#allocation7], 4
      %s42 = int_to_ptr.vmem [resolvable:$true] %s41
      %47 = dma.hbm_to_vmem [thread:$0]  %s2, 256, %s42, [#allocation8], 128, 128, 8
    $region13: #{tpu_custom_call.1} parent=1 // pred_fallthru
      _
    // Predicated region
    $region14: #{tpu_custom_call.1} parent=1 // pred_check
      _
    $region15: #{tpu_custom_call.1} parent=1 // pred_check_branch
      %49 = sbr.rel (0) target = $region17
    $region16: #{tpu_custom_call.1} parent=1 // pred_region
      _
    $region17: #{tpu_custom_call.1} parent=1 // pred_fallthru
      _
    // Predicated region
    $region18: #{tpu_custom_call.1} parent=1 // pred_check
      _
    $region19: #{tpu_custom_call.1} parent=1 // pred_check_branch
      %51 = sbr.rel (0) target = $region21
    $region20: #{tpu_custom_call.1} parent=1 // pred_region
      %s53 = ssub.s32 1024, 1024
      %54 = vsyncadd [#allocation8], %s53
      %s55 = sshll.u32 [#allocation9], 4
      %s56 = int_to_ptr.vmem [resolvable:$true] %s55
      %61 = dma.hbm_to_vmem [thread:$0]  %s4, 1024, %s56, [#allocation8], 128, 128, 8
    $region21: #{tpu_custom_call.1} parent=1 // pred_fallthru
      _
    // Predicated region
    $region22: #{tpu_custom_call.1} parent=1 // pred_check
      _
    $region23: #{tpu_custom_call.1} parent=1 // pred_check_branch
      %63 = sbr.rel (0) target = $region25
    $region24: #{tpu_custom_call.1} parent=1 // pred_region
      %s65 = ssub.s32 1024, 1024
      %66 = vsyncadd [#allocation11], %s65
      %s67 = sshll.u32 [#allocation10], 4
      %s68 = int_to_ptr.vmem [resolvable:$true] %s67
      %73 = dma.hbm_to_vmem [thread:$0]  %s5, 1024, %s68, [#allocation11], 128, 128, 8
    $region25: #{tpu_custom_call.1} parent=1 // pred_fallthru
      _
    // Predicated region
    $region26: #{tpu_custom_call.1} parent=1 // pred_check
      _
    $region27: #{tpu_custom_call.1} parent=1 // pred_check_branch
      %75 = sbr.rel (0) target = $region29
    $region28: #{tpu_custom_call.1} parent=1 // pred_region
      _
    $region29: #{tpu_custom_call.1} parent=1 // pred_fallthru
      _
    // Predicated region
    $region30: #{tpu_custom_call.1} parent=1 // pred_check
      _
    $region31: #{tpu_custom_call.1} parent=1 // pred_check_branch
      %77 = sbr.rel (0) target = $region33
    $region32: #{tpu_custom_call.1} parent=1 // pred_region
      _
    $region33: #{tpu_custom_call.1} parent=1 // pred_fallthru
      _
    // Predicated region
    $region34: #{tpu_custom_call.1} parent=1 // pred_check
      _
    $region35: #{tpu_custom_call.1} parent=1 // pred_check_branch
      %79 = sbr.rel (0) target = $region37
    $region36: #{tpu_custom_call.1} parent=1 // pred_region
      _
    $region37: #{tpu_custom_call.1} parent=1 // pred_fallthru
      _
    // Predicated region
    $region38: #{tpu_custom_call.1} parent=1 // pred_check
      _
    $region39: #{tpu_custom_call.1} parent=1 // pred_check_branch
      %81 = sbr.rel (0) target = $region41
    $region40: #{tpu_custom_call.1} parent=1 // pred_region
      %82 = dma.done [#allocation5], 1024
    $region41: #{tpu_custom_call.1} parent=1 // pred_fallthru
      _
    // Predicated region
    $region42: #{tpu_custom_call.1} parent=1 // pred_check
      _
    $region43: #{tpu_custom_call.1} parent=1 // pred_check_branch
      %84 = sbr.rel (0) target = $region45
    $region44: #{tpu_custom_call.1} parent=1 // pred_region
      %85 = dma.done [#allocation8], 256
    $region45: #{tpu_custom_call.1} parent=1 // pred_fallthru
      _
    // Predicated region
    $region46: #{tpu_custom_call.1} parent=1 // pred_check
      _
    $region47: #{tpu_custom_call.1} parent=1 // pred_check_branch
      %87 = sbr.rel (0) target = $region49
    $region48: #{tpu_custom_call.1} parent=1 // pred_region
      %88 = dma.done [#allocation8], 1024
    $region49: #{tpu_custom_call.1} parent=1 // pred_fallthru
      _
    // Predicated region
    $region50: #{tpu_custom_call.1} parent=1 // pred_check
      _
    $region51: #{tpu_custom_call.1} parent=1 // pred_check_branch
      %90 = sbr.rel (0) target = $region53
    $region52: #{tpu_custom_call.1} parent=1 // pred_region
      %91 = dma.done [#allocation11], 1024
    $region53: #{tpu_custom_call.1} parent=1 // pred_fallthru
      _
    %v92 = vld [vmem:[#allocation4] sm:$0xff]
    %v93 = vld [vmem:[#allocation4 + $0x8] sm:$0xff]
    %v94 = vld [vmem:[#allocation4 + $0x10] sm:$0xff]
    %v95 = vld [vmem:[#allocation4 + $0x18] sm:$0xff]
    %v96 = vld [vmem:[#allocation4 + $0x20] sm:$0xff]
    %v97 = vld [vmem:[#allocation4 + $0x28] sm:$0xff]
    %v98 = vld [vmem:[#allocation4 + $0x30] sm:$0xff]
    %v99 = vld [vmem:[#allocation4 + $0x38] sm:$0xff]
    %v100 = vld [vmem:[#allocation7] sm:$0xff]
    %v101 = vld [vmem:[#allocation7 + $0x8] sm:$0xff]
    %v102 = vld [vmem:[%s3] sm:$0x1]
    %v104 = vlaneseq
    %v105 = vshrl.u32 %v104, 7
    %v106 = vsub.s32 0, %v105
    %v107 = vrot.slane %v102, %v106
    %vm109 = vcmask 130048
    %v111 = vsel %vm109, %v92, 0
    %v114 = vsel %vm109, %v93, 0
    %v117 = vsel %vm109, %v94, 0
    %v120 = vsel %vm109, %v95, 0
    %v123 = vsel %vm109, %v96, 0
    %v126 = vsel %vm109, %v97, 0
    %v129 = vsel %vm109, %v98, 0
    %v132 = vsel %vm109, %v99, 0
    %134 = vmatprep.subr.mxu0 0.0
    %135 = vmatpush1.msra.mxu0 %v100
    %136 = vmatprep.subr.mxu0 0.0
    %137 = vmatpush1.msra.mxu0 %v101
    %138 = vmatprep.subr.mxu0 0.0
    %139 = vmatpush1.msra.mxu0 0.0
    %140 = vmatprep.subr.mxu0 0.0
    %141 = vmatpush1.msra.mxu0 0.0
    %142 = vmatprep.subr.mxu0 0.0
    %143 = vmatpush1.msra.mxu0 0.0
    %144 = vmatprep.subr.mxu0 0.0
    %145 = vmatpush1.msra.mxu0 0.0
    %146 = vmatprep.subr.mxu0 0.0
    %147 = vmatpush1.msra.mxu0 0.0
    %148 = vmatprep.subr.mxu0 0.0
    %149 = vmatpush1.msra.mxu0 0.0
    %150 = vmatprep.subr.mxu0 0.0
    %151 = vmatpush1.msra.mxu0 0.0
    %152 = vmatprep.subr.mxu0 0.0
    %153 = vmatpush1.msra.mxu0 0.0
    %154 = vmatprep.subr.mxu0 0.0
    %155 = vmatpush1.msra.mxu0 0.0
    %156 = vmatprep.subr.mxu0 0.0
    %157 = vmatpush1.msra.mxu0 0.0
    %158 = vmatprep.subr.mxu0 0.0
    %159 = vmatpush1.msra.mxu0 0.0
    %160 = vmatprep.subr.mxu0 0.0
    %161 = vmatpush1.msra.mxu0 0.0
    %162 = vmatprep.subr.mxu0 0.0
    %163 = vmatpush1.msra.mxu0 0.0
    %164 = vmatprep.subr.mxu0 0.0
    %165 = vmatpush1.msra.mxu0 0.0
    %166 = vmatprep.subr.mxu0 0.0
    %167 = vmatpush1.msra.mxu0 0.0
    %168 = vmatprep.subr.mxu0 0.0
    %169 = vmatpush1.msra.mxu0 0.0
    %170 = vmatprep.subr.mxu0 0.0
    %171 = vmatpush1.msra.mxu0 0.0
    %172 = vmatprep.subr.mxu0 0.0
    %173 = vmatpush1.msra.mxu0 0.0
    %174 = vmatprep.subr.mxu0 0.0
    %175 = vmatpush1.msra.mxu0 0.0
    %176 = vmatprep.subr.mxu0 0.0
    %177 = vmatpush1.msra.mxu0 0.0
    %178 = vmatprep.subr.mxu0 0.0
    %179 = vmatpush1.msra.mxu0 0.0
    %180 = vmatprep.subr.mxu0 0.0
    %181 = vmatpush1.msra.mxu0 0.0
    %182 = vmatprep.subr.mxu0 0.0
    %183 = vmatpush1.msra.mxu0 0.0
    %184 = vmatprep.subr.mxu0 0.0
    %185 = vmatpush1.msra.mxu0 0.0
    %186 = vmatprep.subr.mxu0 0.0
    %187 = vmatpush1.msra.mxu0 0.0
    %188 = vmatprep.subr.mxu0 0.0
    %189 = vmatpush1.msra.mxu0 0.0
    %190 = vmatprep.subr.mxu0 0.0
    %191 = vmatpush1.msra.mxu0 0.0
    %192 = vmatprep.subr.mxu0 0.0
    %193 = vmatpush1.msra.mxu0 0.0
    %194 = vmatprep.subr.mxu0 0.0
    %195 = vmatpush1.msra.mxu0 0.0
    %196 = vmatprep.subr.mxu0 0.0
    %197 = vmatpush1.msra.mxu0 0.0
    %198 = vmatprep.mubr.f32.mxu0 0.0
    %199 = vmatmul.mubr.f32.gmra.mrb[0].mxu0 %v111
    %v200 = vpop.f32.mrb[0].mxu0
    %v201 = vadd.f32 %v107, %v200
    %v202 = vpop.f32.mrb[0].mxu0
    %203 = vmatprep.mubr.f32.mxu0 0.0
    %204 = vmatmul.mubr.f32.gmra.mrb[0].mxu0 %v114
    %v205 = vpop.f32.mrb[0].mxu0
    %v206 = vadd.f32 %v107, %v205
    %v207 = vpop.f32.mrb[0].mxu0
    %208 = vmatprep.mubr.f32.mxu0 0.0
    %209 = vmatmul.mubr.f32.gmra.mrb[0].mxu0 %v117
    %v210 = vpop.f32.mrb[0].mxu0
    %v211 = vadd.f32 %v107, %v210
    %v212 = vpop.f32.mrb[0].mxu0
    %213 = vmatprep.mubr.f32.mxu0 0.0
    %214 = vmatmul.mubr.f32.gmra.mrb[0].mxu0 %v120
    %v215 = vpop.f32.mrb[0].mxu0
    %v216 = vadd.f32 %v107, %v215
    %v217 = vpop.f32.mrb[0].mxu0
    %218 = vmatprep.mubr.f32.mxu0 0.0
    %219 = vmatmul.mubr.f32.gmra.mrb[0].mxu0 %v123
    %v220 = vpop.f32.mrb[0].mxu0
    %v221 = vadd.f32 %v107, %v220
    %v222 = vpop.f32.mrb[0].mxu0
    %223 = vmatprep.mubr.f32.mxu0 0.0
    %224 = vmatmul.mubr.f32.gmra.mrb[0].mxu0 %v126
    %v225 = vpop.f32.mrb[0].mxu0
    %v226 = vadd.f32 %v107, %v225
    %v227 = vpop.f32.mrb[0].mxu0
    %228 = vmatprep.mubr.f32.mxu0 0.0
    %229 = vmatmul.mubr.f32.gmra.mrb[0].mxu0 %v129
    %v230 = vpop.f32.mrb[0].mxu0
    %v231 = vadd.f32 %v107, %v230
    %v232 = vpop.f32.mrb[0].mxu0
    %233 = vmatprep.mubr.f32.mxu0 0.0
    %234 = vmatmul.mubr.f32.gmra.mrb[0].mxu0 %v132
    %v235 = vpop.f32.mrb[0].mxu0
    %v236 = vadd.f32 %v107, %v235
    %v237 = vpop.f32.mrb[0].mxu0
    %238 = vdwg.mxu0
    %vm239 = vcmask 261120
    %240 = vst.msk [vmem:[#allocation2] sm:$0xff] %vm239, %v201
    %241 = vst.msk [vmem:[#allocation2 + $0x8] sm:$0xff] %vm239, %v206
    %242 = vst.msk [vmem:[#allocation2 + $0x10] sm:$0xff] %vm239, %v211
    %243 = vst.msk [vmem:[#allocation2 + $0x18] sm:$0xff] %vm239, %v216
    %244 = vst.msk [vmem:[#allocation2 + $0x20] sm:$0xff] %vm239, %v221
    %245 = vst.msk [vmem:[#allocation2 + $0x28] sm:$0xff] %vm239, %v226
    %246 = vst.msk [vmem:[#allocation2 + $0x30] sm:$0xff] %vm239, %v231
    %247 = vst.msk [vmem:[#allocation2 + $0x38] sm:$0xff] %vm239, %v236
    %v248 = vld [vmem:[%s0] sm:$0xff]
    %v249 = vlaneseq
    %v250 = vand.u32 %v249, 127
    %vm251 = vcmp.ge.s32.totalorder %v250, 64
    %vm252 = vcmp.lt.s32.totalorder %v250, 96
    %vm253 = vmand %vm251, %vm252
    %v254 = vld [vmem:[#allocation2] sm:$0xff]
    %v255 = vld [vmem:[#allocation2 + $0x8] sm:$0xff]
    %v256 = vld [vmem:[#allocation2 + $0x10] sm:$0xff]
    %v257 = vld [vmem:[#allocation2 + $0x18] sm:$0xff]
    %v258 = vld [vmem:[#allocation2 + $0x20] sm:$0xff]
    %v259 = vld [vmem:[#allocation2 + $0x28] sm:$0xff]
    %v260 = vld [vmem:[#allocation2 + $0x30] sm:$0xff]
    %v261 = vld [vmem:[#allocation2 + $0x38] sm:$0xff]
    %v262 = vld [vmem:[#allocation9] sm:$0xff]
    %v263 = vld [vmem:[#allocation9 + $0x8] sm:$0xff]
    %v264 = vld [vmem:[#allocation9 + $0x10] sm:$0xff]
    %v265 = vld [vmem:[#allocation9 + $0x18] sm:$0xff]
    %v266 = vld [vmem:[%s6] sm:$0x1]
    %v268 = vlaneseq
    %v269 = vshrl.u32 %v268, 7
    %v270 = vsub.s32 0, %v269
    %v271 = vrot.slane %v266, %v270
    %v274 = vsel %vm239, %v254, 0
    %v277 = vsel %vm239, %v255, 0
    %v280 = vsel %vm239, %v256, 0
    %v283 = vsel %vm239, %v257, 0
    %v286 = vsel %vm239, %v258, 0
    %v289 = vsel %vm239, %v259, 0
    %v292 = vsel %vm239, %v260, 0
    %v295 = vsel %vm239, %v261, 0
    %297 = vmatprep.subr.mxu0 0.0
    %298 = vmatpush1.msra.mxu0 %v262
    %299 = vmatprep.subr.mxu0 0.0
    %300 = vmatpush1.msra.mxu0 %v263
    %301 = vmatprep.subr.mxu0 0.0
    %302 = vmatpush1.msra.mxu0 %v264
    %303 = vmatprep.subr.mxu0 0.0
    %304 = vmatpush1.msra.mxu0 %v265
    %305 = vmatprep.subr.mxu0 0.0
    %306 = vmatpush1.msra.mxu0 0.0
    %307 = vmatprep.subr.mxu0 0.0
    %308 = vmatpush1.msra.mxu0 0.0
    %309 = vmatprep.subr.mxu0 0.0
    %310 = vmatpush1.msra.mxu0 0.0
    %311 = vmatprep.subr.mxu0 0.0
    %312 = vmatpush1.msra.mxu0 0.0
    %313 = vmatprep.subr.mxu0 0.0
    %314 = vmatpush1.msra.mxu0 0.0
    %315 = vmatprep.subr.mxu0 0.0
    %316 = vmatpush1.msra.mxu0 0.0
    %317 = vmatprep.subr.mxu0 0.0
    %318 = vmatpush1.msra.mxu0 0.0
    %319 = vmatprep.subr.mxu0 0.0
    %320 = vmatpush1.msra.mxu0 0.0
    %321 = vmatprep.subr.mxu0 0.0
    %322 = vmatpush1.msra.mxu0 0.0
    %323 = vmatprep.subr.mxu0 0.0
    %324 = vmatpush1.msra.mxu0 0.0
    %325 = vmatprep.subr.mxu0 0.0
    %326 = vmatpush1.msra.mxu0 0.0
    %327 = vmatprep.subr.mxu0 0.0
    %328 = vmatpush1.msra.mxu0 0.0
    %329 = vmatprep.subr.mxu0 0.0
    %330 = vmatpush1.msra.mxu0 0.0
    %331 = vmatprep.subr.mxu0 0.0
    %332 = vmatpush1.msra.mxu0 0.0
    %333 = vmatprep.subr.mxu0 0.0
    %334 = vmatpush1.msra.mxu0 0.0
    %335 = vmatprep.subr.mxu0 0.0
    %336 = vmatpush1.msra.mxu0 0.0
    %337 = vmatprep.subr.mxu0 0.0
    %338 = vmatpush1.msra.mxu0 0.0
    %339 = vmatprep.subr.mxu0 0.0
    %340 = vmatpush1.msra.mxu0 0.0
    %341 = vmatprep.subr.mxu0 0.0
    %342 = vmatpush1.msra.mxu0 0.0
    %343 = vmatprep.subr.mxu0 0.0
    %344 = vmatpush1.msra.mxu0 0.0
    %345 = vmatprep.subr.mxu0 0.0
    %346 = vmatpush1.msra.mxu0 0.0
    %347 = vmatprep.subr.mxu0 0.0
    %348 = vmatpush1.msra.mxu0 0.0
    %349 = vmatprep.subr.mxu0 0.0
    %350 = vmatpush1.msra.mxu0 0.0
    %351 = vmatprep.subr.mxu0 0.0
    %352 = vmatpush1.msra.mxu0 0.0
    %353 = vmatprep.subr.mxu0 0.0
    %354 = vmatpush1.msra.mxu0 0.0
    %355 = vmatprep.subr.mxu0 0.0
    %356 = vmatpush1.msra.mxu0 0.0
    %357 = vmatprep.subr.mxu0 0.0
    %358 = vmatpush1.msra.mxu0 0.0
    %359 = vmatprep.subr.mxu0 0.0
    %360 = vmatpush1.msra.mxu0 0.0
    %361 = vmatprep.mubr.f32.mxu0 0.0
    %362 = vmatmul.mubr.f32.gmra.mrb[0].mxu0 %v274
    %v363 = vpop.f32.mrb[0].mxu0
    %v364 = vadd.f32 %v271, %v363
    %v365 = vpop.f32.mrb[0].mxu0
    %366 = vmatprep.mubr.f32.mxu0 0.0
    %367 = vmatmul.mubr.f32.gmra.mrb[0].mxu0 %v277
    %v368 = vpop.f32.mrb[0].mxu0
    %v369 = vadd.f32 %v271, %v368
    %v370 = vpop.f32.mrb[0].mxu0
    %371 = vmatprep.mubr.f32.mxu0 0.0
    %372 = vmatmul.mubr.f32.gmra.mrb[0].mxu0 %v280
    %v373 = vpop.f32.mrb[0].mxu0
    %v374 = vadd.f32 %v271, %v373
    %v375 = vpop.f32.mrb[0].mxu0
    %376 = vmatprep.mubr.f32.mxu0 0.0
    %377 = vmatmul.mubr.f32.gmra.mrb[0].mxu0 %v283
    %v378 = vpop.f32.mrb[0].mxu0
    %v379 = vadd.f32 %v271, %v378
    %v380 = vpop.f32.mrb[0].mxu0
    %381 = vmatprep.mubr.f32.mxu0 0.0
    %382 = vmatmul.mubr.f32.gmra.mrb[0].mxu0 %v286
    %v383 = vpop.f32.mrb[0].mxu0
    %v384 = vadd.f32 %v271, %v383
    %v385 = vpop.f32.mrb[0].mxu0
    %386 = vmatprep.mubr.f32.mxu0 0.0
    %387 = vmatmul.mubr.f32.gmra.mrb[0].mxu0 %v289
    %v388 = vpop.f32.mrb[0].mxu0
    %v389 = vadd.f32 %v271, %v388
    %v390 = vpop.f32.mrb[0].mxu0
    %391 = vmatprep.mubr.f32.mxu0 0.0
    %392 = vmatmul.mubr.f32.gmra.mrb[0].mxu0 %v292
    %v393 = vpop.f32.mrb[0].mxu0
    %v394 = vadd.f32 %v271, %v393
    %v395 = vpop.f32.mrb[0].mxu0
    %396 = vmatprep.mubr.f32.mxu0 0.0
    %397 = vmatmul.mubr.f32.gmra.mrb[0].mxu0 %v295
    %v398 = vpop.f32.mrb[0].mxu0
    %v399 = vadd.f32 %v271, %v398
    %v400 = vpop.f32.mrb[0].mxu0
    %401 = vdwg.mxu0
    %402 = vst [vmem:[#allocation3] sm:$0xff] %v364
    %403 = vst [vmem:[#allocation3 + $0x8] sm:$0xff] %v369
    %404 = vst [vmem:[#allocation3 + $0x10] sm:$0xff] %v374
    %405 = vst [vmem:[#allocation3 + $0x18] sm:$0xff] %v379
    %406 = vst [vmem:[#allocation3 + $0x20] sm:$0xff] %v384
    %407 = vst [vmem:[#allocation3 + $0x28] sm:$0xff] %v389
    %408 = vst [vmem:[#allocation3 + $0x30] sm:$0xff] %v394
    %409 = vst [vmem:[#allocation3 + $0x38] sm:$0xff] %v399
    %v410 = vld [vmem:[#allocation10] sm:$0xff]
    %v411 = vld [vmem:[#allocation10 + $0x8] sm:$0xff]
    %v412 = vld [vmem:[#allocation10 + $0x10] sm:$0xff]
    %v413 = vld [vmem:[#allocation10 + $0x18] sm:$0xff]
    %v414 = vld [vmem:[#allocation3] sm:$0xff]
    %v416 = vsel %vm239, 0.0, 0
    %418 = vmatprep.subr.mxu0 0.0
    %419 = vmatpush1.msra.mxu0 %v410
    %420 = vmatprep.subr.mxu0 0.0
    %421 = vmatpush1.msra.mxu0 %v411
    %422 = vmatprep.subr.mxu0 0.0
    %423 = vmatpush1.msra.mxu0 %v412
    %424 = vmatprep.subr.mxu0 0.0
    %425 = vmatpush1.msra.mxu0 %v413
    %426 = vmatprep.subr.mxu0 0.0
    %427 = vmatpush1.msra.mxu0 0.0
    %428 = vmatprep.subr.mxu0 0.0
    %429 = vmatpush1.msra.mxu0 0.0
    %430 = vmatprep.subr.mxu0 0.0
    %431 = vmatpush1.msra.mxu0 0.0
    %432 = vmatprep.subr.mxu0 0.0
    %433 = vmatpush1.msra.mxu0 0.0
    %434 = vmatprep.subr.mxu0 0.0
    %435 = vmatpush1.msra.mxu0 0.0
    %436 = vmatprep.subr.mxu0 0.0
    %437 = vmatpush1.msra.mxu0 0.0
    %438 = vmatprep.subr.mxu0 0.0
    %439 = vmatpush1.msra.mxu0 0.0
    %440 = vmatprep.subr.mxu0 0.0
    %441 = vmatpush1.msra.mxu0 0.0
    %442 = vmatprep.subr.mxu0 0.0
    %443 = vmatpush1.msra.mxu0 0.0
    %444 = vmatprep.subr.mxu0 0.0
    %445 = vmatpush1.msra.mxu0 0.0
    %446 = vmatprep.subr.mxu0 0.0
    %447 = vmatpush1.msra.mxu0 0.0
    %448 = vmatprep.subr.mxu0 0.0
    %449 = vmatpush1.msra.mxu0 0.0
    %450 = vmatprep.subr.mxu0 0.0
    %451 = vmatpush1.msra.mxu0 0.0
    %452 = vmatprep.subr.mxu0 0.0
    %453 = vmatpush1.msra.mxu0 0.0
    %454 = vmatprep.subr.mxu0 0.0
    %455 = vmatpush1.msra.mxu0 0.0
    %456 = vmatprep.subr.mxu0 0.0
    %457 = vmatpush1.msra.mxu0 0.0
    %458 = vmatprep.subr.mxu0 0.0
    %459 = vmatpush1.msra.mxu0 0.0
    %460 = vmatprep.subr.mxu0 0.0
    %461 = vmatpush1.msra.mxu0 0.0
    %462 = vmatprep.subr.mxu0 0.0
    %463 = vmatpush1.msra.mxu0 0.0
    %464 = vmatprep.subr.mxu0 0.0
    %465 = vmatpush1.msra.mxu0 0.0
    %466 = vmatprep.subr.mxu0 0.0
    %467 = vmatpush1.msra.mxu0 0.0
    %468 = vmatprep.subr.mxu0 0.0
    %469 = vmatpush1.msra.mxu0 0.0
    %470 = vmatprep.subr.mxu0 0.0
    %471 = vmatpush1.msra.mxu0 0.0
    %472 = vmatprep.subr.mxu0 0.0
    %473 = vmatpush1.msra.mxu0 0.0
    %474 = vmatprep.subr.mxu0 0.0
    %475 = vmatpush1.msra.mxu0 0.0
    %476 = vmatprep.subr.mxu0 0.0
    %477 = vmatpush1.msra.mxu0 0.0
    %478 = vmatprep.subr.mxu0 0.0
    %479 = vmatpush1.msra.mxu0 0.0
    %480 = vmatprep.subr.mxu0 0.0
    %481 = vmatpush1.msra.mxu0 0.0
    %482 = vmatprep.mubr.f32.mxu0 0.0
    %483 = vmatmul.mubr.f32.gmra.mrb[0].mxu0 %v416
    %v484 = vpop.f32.mrb[0].mxu0
    %v485 = vadd.f32 0.0, %v484
    %v486 = vpop.f32.mrb[0].mxu0
    %487 = vdwg.mxu0
    %v488 = vadd.f32 %v414, %v485
    %v489 = vxor.u32 %v488, 2147483648
    %v490 = vmul.f32 %v489, 1.442695
    %v491 = vpow.pop %v490
    %v492 = vadd.f32 %v491, 1.0
    %v493 = vrcp.pop %v492
    %v494 = vmul.f32 1.0, %v493
    %v495 = vtanh.pop %v488
    %v496 = vsel %vm253, %v495, %v494
    %v497 = vmul.f32 %v496, 0.0
    %499 = vrot.lane.b32.xlu0 %v496, 64
    %v500 = vpop.permute.xlu0 %499
    %v502 = vmul.f32 %v496, %v500
    %504 = vrot.lane.b32.xlu0 %v502, 32
    %v505 = vpop.permute.xlu0 %504
    %v507 = vadd.f32 %v497, %v505
    %v508 = vtanh.pop %v507
    %510 = vrot.lane.b32.xlu0 %v508, 64
    %v511 = vpop.permute.xlu0 %510
    %v513 = vmul.f32 %v496, %v511
    %vm514 = vcmp.gt.s32.totalorder %v248, 0
    %v515 = vsel %vm514, 1, 0
    %516 = vset.pattern.permute.xlu0 0
    %517 = vperm.xlu0 %516, %v515
    %v518 = vpop.permute.xlu0 %517
    %vm519 = vcmp.eq.s32.totalorder %v518, 1
    %v520 = vsel %vm519, %v513, 0.0
    %v521 = vsel %vm519, %v507, 0.0
    %523 = vrot.lane.b32.xlu0 %v520, 32
    %v524 = vpop.permute.xlu0 %523
    %526 = vst.msk [vmem:[#allocation2] sm:$0xff] %vm239, %v524
    %s527 = scalar_lea.vmem [#allocation3], 8
    %v528 = vld [vmem:[%s527] sm:$0xff]
    %v529 = vsel %vm239, %v524, 0
    %531 = vmatprep.subr.mxu0 0.0
    %532 = vmatpush1.msra.mxu0 %v410
    %533 = vmatprep.subr.mxu0 0.0
    %534 = vmatpush1.msra.mxu0 %v411
    %535 = vmatprep.subr.mxu0 0.0
    %536 = vmatpush1.msra.mxu0 %v412
    %537 = vmatprep.subr.mxu0 0.0
    %538 = vmatpush1.msra.mxu0 %v413
    %539 = vmatprep.subr.mxu0 0.0
    %540 = vmatpush1.msra.mxu0 0.0
    %541 = vmatprep.subr.mxu0 0.0
    %542 = vmatpush1.msra.mxu0 0.0
    %543 = vmatprep.subr.mxu0 0.0
    %544 = vmatpush1.msra.mxu0 0.0
    %545 = vmatprep.subr.mxu0 0.0
    %546 = vmatpush1.msra.mxu0 0.0
    %547 = vmatprep.subr.mxu0 0.0
    %548 = vmatpush1.msra.mxu0 0.0
    %549 = vmatprep.subr.mxu0 0.0
    %550 = vmatpush1.msra.mxu0 0.0
    %551 = vmatprep.subr.mxu0 0.0
    %552 = vmatpush1.msra.mxu0 0.0
    %553 = vmatprep.subr.mxu0 0.0
    %554 = vmatpush1.msra.mxu0 0.0
    %555 = vmatprep.subr.mxu0 0.0
    %556 = vmatpush1.msra.mxu0 0.0
    %557 = vmatprep.subr.mxu0 0.0
    %558 = vmatpush1.msra.mxu0 0.0
    %559 = vmatprep.subr.mxu0 0.0
    %560 = vmatpush1.msra.mxu0 0.0
    %561 = vmatprep.subr.mxu0 0.0
    %562 = vmatpush1.msra.mxu0 0.0
    %563 = vmatprep.subr.mxu0 0.0
    %564 = vmatpush1.msra.mxu0 0.0
    %565 = vmatprep.subr.mxu0 0.0
    %566 = vmatpush1.msra.mxu0 0.0
    %567 = vmatprep.subr.mxu0 0.0
    %568 = vmatpush1.msra.mxu0 0.0
    %569 = vmatprep.subr.mxu0 0.0
    %570 = vmatpush1.msra.mxu0 0.0
    %571 = vmatprep.subr.mxu0 0.0
    %572 = vmatpush1.msra.mxu0 0.0
    %573 = vmatprep.subr.mxu0 0.0
    %574 = vmatpush1.msra.mxu0 0.0
    %575 = vmatprep.subr.mxu0 0.0
    %576 = vmatpush1.msra.mxu0 0.0
    %577 = vmatprep.subr.mxu0 0.0
    %578 = vmatpush1.msra.mxu0 0.0
    %579 = vmatprep.subr.mxu0 0.0
    %580 = vmatpush1.msra.mxu0 0.0
    %581 = vmatprep.subr.mxu0 0.0
    %582 = vmatpush1.msra.mxu0 0.0
    %583 = vmatprep.subr.mxu0 0.0
    %584 = vmatpush1.msra.mxu0 0.0
    %585 = vmatprep.subr.mxu0 0.0
    %586 = vmatpush1.msra.mxu0 0.0
    %587 = vmatprep.subr.mxu0 0.0
    %588 = vmatpush1.msra.mxu0 0.0
    %589 = vmatprep.subr.mxu0 0.0
    %590 = vmatpush1.msra.mxu0 0.0
    %591 = vmatprep.subr.mxu0 0.0
    %592 = vmatpush1.msra.mxu0 0.0
    %593 = vmatprep.subr.mxu0 0.0
    %594 = vmatpush1.msra.mxu0 0.0
    %595 = vmatprep.mubr.f32.mxu0 0.0
    %596 = vmatmul.mubr.f32.gmra.mrb[0].mxu0 %v529
    %v597 = vpop.f32.mrb[0].mxu0
    %v598 = vadd.f32 0.0, %v597
    %v599 = vpop.f32.mrb[0].mxu0
    %600 = vdwg.mxu0
    %v601 = vadd.f32 %v528, %v598
    %v602 = vxor.u32 %v601, 2147483648
    %v603 = vmul.f32 %v602, 1.442695
    %v604 = vpow.pop %v603
    %v605 = vadd.f32 %v604, 1.0
    %v606 = vrcp.pop %v605
    %v607 = vmul.f32 1.0, %v606
    %v608 = vtanh.pop %v601
    %v609 = vsel %vm253, %v608, %v607
    %v610 = vmul.f32 %v609, %v521
    %612 = vrot.lane.b32.xlu0 %v609, 64
    %v613 = vpop.permute.xlu0 %612
    %v615 = vmul.f32 %v609, %v613
    %617 = vrot.lane.b32.xlu0 %v615, 32
    %v618 = vpop.permute.xlu0 %617
    %v620 = vadd.f32 %v610, %v618
    %v621 = vtanh.pop %v620
    %623 = vrot.lane.b32.xlu0 %v621, 64
    %v624 = vpop.permute.xlu0 %623
    %v626 = vmul.f32 %v609, %v624
    %vm627 = vcmp.gt.s32.totalorder %v248, 1
    %v628 = vsel %vm627, 1, 0
    %629 = vset.pattern.permute.xlu0 0
    %630 = vperm.xlu0 %629, %v628
    %v631 = vpop.permute.xlu0 %630
    %vm632 = vcmp.eq.s32.totalorder %v631, 1
    %v633 = vsel %vm632, %v626, %v520
    %v634 = vsel %vm632, %v620, %v521
    %v635 = vsel %vm632, %v626, 0.0
    %637 = vrot.lane.b32.xlu0 %v635, 32
    %v638 = vpop.permute.xlu0 %637
    %s640 = scalar_lea.vmem [#allocation2], 8
    %641 = vst.msk [vmem:[%s640] sm:$0xff] %vm239, %v638
    %s642 = scalar_lea.vmem [#allocation3], 16
    %v643 = vld [vmem:[%s642] sm:$0xff]
    %645 = vrot.lane.b32.xlu0 %v633, 32
    %v646 = vpop.permute.xlu0 %645
    %v647 = vsel %vm239, %v646, 0
    %649 = vmatprep.subr.mxu0 0.0
    %650 = vmatpush1.msra.mxu0 %v410
    %651 = vmatprep.subr.mxu0 0.0
    %652 = vmatpush1.msra.mxu0 %v411
    %653 = vmatprep.subr.mxu0 0.0
    %654 = vmatpush1.msra.mxu0 %v412
    %655 = vmatprep.subr.mxu0 0.0
    %656 = vmatpush1.msra.mxu0 %v413
    %657 = vmatprep.subr.mxu0 0.0
    %658 = vmatpush1.msra.mxu0 0.0
    %659 = vmatprep.subr.mxu0 0.0
    %660 = vmatpush1.msra.mxu0 0.0
    %661 = vmatprep.subr.mxu0 0.0
    %662 = vmatpush1.msra.mxu0 0.0
    %663 = vmatprep.subr.mxu0 0.0
    %664 = vmatpush1.msra.mxu0 0.0
    %665 = vmatprep.subr.mxu0 0.0
    %666 = vmatpush1.msra.mxu0 0.0
    %667 = vmatprep.subr.mxu0 0.0
    %668 = vmatpush1.msra.mxu0 0.0
    %669 = vmatprep.subr.mxu0 0.0
    %670 = vmatpush1.msra.mxu0 0.0
    %671 = vmatprep.subr.mxu0 0.0
    %672 = vmatpush1.msra.mxu0 0.0
    %673 = vmatprep.subr.mxu0 0.0
    %674 = vmatpush1.msra.mxu0 0.0
    %675 = vmatprep.subr.mxu0 0.0
    %676 = vmatpush1.msra.mxu0 0.0
    %677 = vmatprep.subr.mxu0 0.0
    %678 = vmatpush1.msra.mxu0 0.0
    %679 = vmatprep.subr.mxu0 0.0
    %680 = vmatpush1.msra.mxu0 0.0
    %681 = vmatprep.subr.mxu0 0.0
    %682 = vmatpush1.msra.mxu0 0.0
    %683 = vmatprep.subr.mxu0 0.0
    %684 = vmatpush1.msra.mxu0 0.0
    %685 = vmatprep.subr.mxu0 0.0
    %686 = vmatpush1.msra.mxu0 0.0
    %687 = vmatprep.subr.mxu0 0.0
    %688 = vmatpush1.msra.mxu0 0.0
    %689 = vmatprep.subr.mxu0 0.0
    %690 = vmatpush1.msra.mxu0 0.0
    %691 = vmatprep.subr.mxu0 0.0
    %692 = vmatpush1.msra.mxu0 0.0
    %693 = vmatprep.subr.mxu0 0.0
    %694 = vmatpush1.msra.mxu0 0.0
    %695 = vmatprep.subr.mxu0 0.0
    %696 = vmatpush1.msra.mxu0 0.0
    %697 = vmatprep.subr.mxu0 0.0
    %698 = vmatpush1.msra.mxu0 0.0
    %699 = vmatprep.subr.mxu0 0.0
    %700 = vmatpush1.msra.mxu0 0.0
    %701 = vmatprep.subr.mxu0 0.0
    %702 = vmatpush1.msra.mxu0 0.0
    %703 = vmatprep.subr.mxu0 0.0
    %704 = vmatpush1.msra.mxu0 0.0
    %705 = vmatprep.subr.mxu0 0.0
    %706 = vmatpush1.msra.mxu0 0.0
    %707 = vmatprep.subr.mxu0 0.0
    %708 = vmatpush1.msra.mxu0 0.0
    %709 = vmatprep.subr.mxu0 0.0
    %710 = vmatpush1.msra.mxu0 0.0
    %711 = vmatprep.subr.mxu0 0.0
    %712 = vmatpush1.msra.mxu0 0.0
    %713 = vmatprep.mubr.f32.mxu0 0.0
    %714 = vmatmul.mubr.f32.gmra.mrb[0].mxu0 %v647
    %v715 = vpop.f32.mrb[0].mxu0
    %v716 = vadd.f32 0.0, %v715
    %v717 = vpop.f32.mrb[0].mxu0
    %718 = vdwg.mxu0
    %v719 = vadd.f32 %v643, %v716
    %v720 = vxor.u32 %v719, 2147483648
    %v721 = vmul.f32 %v720, 1.442695
    %v722 = vpow.pop %v721
    %v723 = vadd.f32 %v722, 1.0
    %v724 = vrcp.pop %v723
    %v725 = vmul.f32 1.0, %v724
    %v726 = vtanh.pop %v719
    %v727 = vsel %vm253, %v726, %v725
    %v728 = vmul.f32 %v727, %v634
    %730 = vrot.lane.b32.xlu0 %v727, 64
    %v731 = vpop.permute.xlu0 %730
    %v733 = vmul.f32 %v727, %v731
    %735 = vrot.lane.b32.xlu0 %v733, 32
    %v736 = vpop.permute.xlu0 %735
    %v738 = vadd.f32 %v728, %v736
    %v739 = vtanh.pop %v738
    %741 = vrot.lane.b32.xlu0 %v739, 64
    %v742 = vpop.permute.xlu0 %741
    %v744 = vmul.f32 %v727, %v742
    %vm745 = vcmp.gt.s32.totalorder %v248, 2
    %v746 = vsel %vm745, 1, 0
    %747 = vset.pattern.permute.xlu0 0
    %748 = vperm.xlu0 %747, %v746
    %v749 = vpop.permute.xlu0 %748
    %vm750 = vcmp.eq.s32.totalorder %v749, 1
    %v751 = vsel %vm750, %v744, %v633
    %v752 = vsel %vm750, %v738, %v634
    %v753 = vsel %vm750, %v744, 0.0
    %755 = vrot.lane.b32.xlu0 %v753, 32
    %v756 = vpop.permute.xlu0 %755
    %s758 = scalar_lea.vmem [#allocation2], 16
    %759 = vst.msk [vmem:[%s758] sm:$0xff] %vm239, %v756
    %s760 = scalar_lea.vmem [#allocation3], 24
    %v761 = vld [vmem:[%s760] sm:$0xff]
    %763 = vrot.lane.b32.xlu0 %v751, 32
    %v764 = vpop.permute.xlu0 %763
    %v765 = vsel %vm239, %v764, 0
    %767 = vmatprep.subr.mxu0 0.0
    %768 = vmatpush1.msra.mxu0 %v410
    %769 = vmatprep.subr.mxu0 0.0
    %770 = vmatpush1.msra.mxu0 %v411
    %771 = vmatprep.subr.mxu0 0.0
    %772 = vmatpush1.msra.mxu0 %v412
    %773 = vmatprep.subr.mxu0 0.0
    %774 = vmatpush1.msra.mxu0 %v413
    %775 = vmatprep.subr.mxu0 0.0
    %776 = vmatpush1.msra.mxu0 0.0
    %777 = vmatprep.subr.mxu0 0.0
    %778 = vmatpush1.msra.mxu0 0.0
    %779 = vmatprep.subr.mxu0 0.0
    %780 = vmatpush1.msra.mxu0 0.0
    %781 = vmatprep.subr.mxu0 0.0
    %782 = vmatpush1.msra.mxu0 0.0
    %783 = vmatprep.subr.mxu0 0.0
    %784 = vmatpush1.msra.mxu0 0.0
    %785 = vmatprep.subr.mxu0 0.0
    %786 = vmatpush1.msra.mxu0 0.0
    %787 = vmatprep.subr.mxu0 0.0
    %788 = vmatpush1.msra.mxu0 0.0
    %789 = vmatprep.subr.mxu0 0.0
    %790 = vmatpush1.msra.mxu0 0.0
    %791 = vmatprep.subr.mxu0 0.0
    %792 = vmatpush1.msra.mxu0 0.0
    %793 = vmatprep.subr.mxu0 0.0
    %794 = vmatpush1.msra.mxu0 0.0
    %795 = vmatprep.subr.mxu0 0.0
    %796 = vmatpush1.msra.mxu0 0.0
    %797 = vmatprep.subr.mxu0 0.0
    %798 = vmatpush1.msra.mxu0 0.0
    %799 = vmatprep.subr.mxu0 0.0
    %800 = vmatpush1.msra.mxu0 0.0
    %801 = vmatprep.subr.mxu0 0.0
    %802 = vmatpush1.msra.mxu0 0.0
    %803 = vmatprep.subr.mxu0 0.0
    %804 = vmatpush1.msra.mxu0 0.0
    %805 = vmatprep.subr.mxu0 0.0
    %806 = vmatpush1.msra.mxu0 0.0
    %807 = vmatprep.subr.mxu0 0.0
    %808 = vmatpush1.msra.mxu0 0.0
    %809 = vmatprep.subr.mxu0 0.0
    %810 = vmatpush1.msra.mxu0 0.0
    %811 = vmatprep.subr.mxu0 0.0
    %812 = vmatpush1.msra.mxu0 0.0
    %813 = vmatprep.subr.mxu0 0.0
    %814 = vmatpush1.msra.mxu0 0.0
    %815 = vmatprep.subr.mxu0 0.0
    %816 = vmatpush1.msra.mxu0 0.0
    %817 = vmatprep.subr.mxu0 0.0
    %818 = vmatpush1.msra.mxu0 0.0
    %819 = vmatprep.subr.mxu0 0.0
    %820 = vmatpush1.msra.mxu0 0.0
    %821 = vmatprep.subr.mxu0 0.0
    %822 = vmatpush1.msra.mxu0 0.0
    %823 = vmatprep.subr.mxu0 0.0
    %824 = vmatpush1.msra.mxu0 0.0
    %825 = vmatprep.subr.mxu0 0.0
    %826 = vmatpush1.msra.mxu0 0.0
    %827 = vmatprep.subr.mxu0 0.0
    %828 = vmatpush1.msra.mxu0 0.0
    %829 = vmatprep.subr.mxu0 0.0
    %830 = vmatpush1.msra.mxu0 0.0
    %831 = vmatprep.mubr.f32.mxu0 0.0
    %832 = vmatmul.mubr.f32.gmra.mrb[0].mxu0 %v765
    %v833 = vpop.f32.mrb[0].mxu0
    %v834 = vadd.f32 0.0, %v833
    %v835 = vpop.f32.mrb[0].mxu0
    %836 = vdwg.mxu0
    %v837 = vadd.f32 %v761, %v834
    %v838 = vxor.u32 %v837, 2147483648
    %v839 = vmul.f32 %v838, 1.442695
    %v840 = vpow.pop %v839
    %v841 = vadd.f32 %v840, 1.0
    %v842 = vrcp.pop %v841
    %v843 = vmul.f32 1.0, %v842
    %v844 = vtanh.pop %v837
    %v845 = vsel %vm253, %v844, %v843
    %v846 = vmul.f32 %v845, %v752
    %848 = vrot.lane.b32.xlu0 %v845, 64
    %v849 = vpop.permute.xlu0 %848
    %v851 = vmul.f32 %v845, %v849
    %853 = vrot.lane.b32.xlu0 %v851, 32
    %v854 = vpop.permute.xlu0 %853
    %v856 = vadd.f32 %v846, %v854
    %v857 = vtanh.pop %v856
    %859 = vrot.lane.b32.xlu0 %v857, 64
    %v860 = vpop.permute.xlu0 %859
    %v862 = vmul.f32 %v845, %v860
    %vm863 = vcmp.gt.s32.totalorder %v248, 3
    %v864 = vsel %vm863, 1, 0
    %865 = vset.pattern.permute.xlu0 0
    %866 = vperm.xlu0 %865, %v864
    %v867 = vpop.permute.xlu0 %866
    %vm868 = vcmp.eq.s32.totalorder %v867, 1
    %v869 = vsel %vm868, %v862, %v751
    %v870 = vsel %vm868, %v856, %v752
    %v871 = vsel %vm868, %v862, 0.0
    %873 = vrot.lane.b32.xlu0 %v871, 32
    %v874 = vpop.permute.xlu0 %873
    %s876 = scalar_lea.vmem [#allocation2], 24
    %877 = vst.msk [vmem:[%s876] sm:$0xff] %vm239, %v874
    %s878 = scalar_lea.vmem [#allocation3], 32
    %v879 = vld [vmem:[%s878] sm:$0xff]
    %881 = vrot.lane.b32.xlu0 %v869, 32
    %v882 = vpop.permute.xlu0 %881
    %v883 = vsel %vm239, %v882, 0
    %885 = vmatprep.subr.mxu0 0.0
    %886 = vmatpush1.msra.mxu0 %v410
    %887 = vmatprep.subr.mxu0 0.0
    %888 = vmatpush1.msra.mxu0 %v411
    %889 = vmatprep.subr.mxu0 0.0
    %890 = vmatpush1.msra.mxu0 %v412
    %891 = vmatprep.subr.mxu0 0.0
    %892 = vmatpush1.msra.mxu0 %v413
    %893 = vmatprep.subr.mxu0 0.0
    %894 = vmatpush1.msra.mxu0 0.0
    %895 = vmatprep.subr.mxu0 0.0
    %896 = vmatpush1.msra.mxu0 0.0
    %897 = vmatprep.subr.mxu0 0.0
    %898 = vmatpush1.msra.mxu0 0.0
    %899 = vmatprep.subr.mxu0 0.0
    %900 = vmatpush1.msra.mxu0 0.0
    %901 = vmatprep.subr.mxu0 0.0
    %902 = vmatpush1.msra.mxu0 0.0
    %903 = vmatprep.subr.mxu0 0.0
    %904 = vmatpush1.msra.mxu0 0.0
    %905 = vmatprep.subr.mxu0 0.0
    %906 = vmatpush1.msra.mxu0 0.0
    %907 = vmatprep.subr.mxu0 0.0
    %908 = vmatpush1.msra.mxu0 0.0
    %909 = vmatprep.subr.mxu0 0.0
    %910 = vmatpush1.msra.mxu0 0.0
    %911 = vmatprep.subr.mxu0 0.0
    %912 = vmatpush1.msra.mxu0 0.0
    %913 = vmatprep.subr.mxu0 0.0
    %914 = vmatpush1.msra.mxu0 0.0
    %915 = vmatprep.subr.mxu0 0.0
    %916 = vmatpush1.msra.mxu0 0.0
    %917 = vmatprep.subr.mxu0 0.0
    %918 = vmatpush1.msra.mxu0 0.0
    %919 = vmatprep.subr.mxu0 0.0
    %920 = vmatpush1.msra.mxu0 0.0
    %921 = vmatprep.subr.mxu0 0.0
    %922 = vmatpush1.msra.mxu0 0.0
    %923 = vmatprep.subr.mxu0 0.0
    %924 = vmatpush1.msra.mxu0 0.0
    %925 = vmatprep.subr.mxu0 0.0
    %926 = vmatpush1.msra.mxu0 0.0
    %927 = vmatprep.subr.mxu0 0.0
    %928 = vmatpush1.msra.mxu0 0.0
    %929 = vmatprep.subr.mxu0 0.0
    %930 = vmatpush1.msra.mxu0 0.0
    %931 = vmatprep.subr.mxu0 0.0
    %932 = vmatpush1.msra.mxu0 0.0
    %933 = vmatprep.subr.mxu0 0.0
    %934 = vmatpush1.msra.mxu0 0.0
    %935 = vmatprep.subr.mxu0 0.0
    %936 = vmatpush1.msra.mxu0 0.0
    %937 = vmatprep.subr.mxu0 0.0
    %938 = vmatpush1.msra.mxu0 0.0
    %939 = vmatprep.subr.mxu0 0.0
    %940 = vmatpush1.msra.mxu0 0.0
    %941 = vmatprep.subr.mxu0 0.0
    %942 = vmatpush1.msra.mxu0 0.0
    %943 = vmatprep.subr.mxu0 0.0
    %944 = vmatpush1.msra.mxu0 0.0
    %945 = vmatprep.subr.mxu0 0.0
    %946 = vmatpush1.msra.mxu0 0.0
    %947 = vmatprep.subr.mxu0 0.0
    %948 = vmatpush1.msra.mxu0 0.0
    %949 = vmatprep.mubr.f32.mxu0 0.0
    %950 = vmatmul.mubr.f32.gmra.mrb[0].mxu0 %v883
    %v951 = vpop.f32.mrb[0].mxu0
    %v952 = vadd.f32 0.0, %v951
    %v953 = vpop.f32.mrb[0].mxu0
    %954 = vdwg.mxu0
    %v955 = vadd.f32 %v879, %v952
    %v956 = vxor.u32 %v955, 2147483648
    %v957 = vmul.f32 %v956, 1.442695
    %v958 = vpow.pop %v957
    %v959 = vadd.f32 %v958, 1.0
    %v960 = vrcp.pop %v959
    %v961 = vmul.f32 1.0, %v960
    %v962 = vtanh.pop %v955
    %v963 = vsel %vm253, %v962, %v961
    %v964 = vmul.f32 %v963, %v870
    %966 = vrot.lane.b32.xlu0 %v963, 64
    %v967 = vpop.permute.xlu0 %966
    %v969 = vmul.f32 %v963, %v967
    %971 = vrot.lane.b32.xlu0 %v969, 32
    %v972 = vpop.permute.xlu0 %971
    %v974 = vadd.f32 %v964, %v972
    %v975 = vtanh.pop %v974
    %977 = vrot.lane.b32.xlu0 %v975, 64
    %v978 = vpop.permute.xlu0 %977
    %v980 = vmul.f32 %v963, %v978
    %vm981 = vcmp.gt.s32.totalorder %v248, 4
    %v982 = vsel %vm981, 1, 0
    %983 = vset.pattern.permute.xlu0 0
    %984 = vperm.xlu0 %983, %v982
    %v985 = vpop.permute.xlu0 %984
    %vm986 = vcmp.eq.s32.totalorder %v985, 1
    %v987 = vsel %vm986, %v980, %v869
    %v988 = vsel %vm986, %v974, %v870
    %v989 = vsel %vm986, %v980, 0.0
    %991 = vrot.lane.b32.xlu0 %v989, 32
    %v992 = vpop.permute.xlu0 %991
    %s994 = scalar_lea.vmem [#allocation2], 32
    %995 = vst.msk [vmem:[%s994] sm:$0xff] %vm239, %v992
    %s996 = scalar_lea.vmem [#allocation3], 40
    %v997 = vld [vmem:[%s996] sm:$0xff]
    %999 = vrot.lane.b32.xlu0 %v987, 32
    %v1000 = vpop.permute.xlu0 %999
    %v1001 = vsel %vm239, %v1000, 0
    %1003 = vmatprep.subr.mxu0 0.0
    %1004 = vmatpush1.msra.mxu0 %v410
    %1005 = vmatprep.subr.mxu0 0.0
    %1006 = vmatpush1.msra.mxu0 %v411
    %1007 = vmatprep.subr.mxu0 0.0
    %1008 = vmatpush1.msra.mxu0 %v412
    %1009 = vmatprep.subr.mxu0 0.0
    %1010 = vmatpush1.msra.mxu0 %v413
    %1011 = vmatprep.subr.mxu0 0.0
    %1012 = vmatpush1.msra.mxu0 0.0
    %1013 = vmatprep.subr.mxu0 0.0
    %1014 = vmatpush1.msra.mxu0 0.0
    %1015 = vmatprep.subr.mxu0 0.0
    %1016 = vmatpush1.msra.mxu0 0.0
    %1017 = vmatprep.subr.mxu0 0.0
    %1018 = vmatpush1.msra.mxu0 0.0
    %1019 = vmatprep.subr.mxu0 0.0
    %1020 = vmatpush1.msra.mxu0 0.0
    %1021 = vmatprep.subr.mxu0 0.0
    %1022 = vmatpush1.msra.mxu0 0.0
    %1023 = vmatprep.subr.mxu0 0.0
    %1024 = vmatpush1.msra.mxu0 0.0
    %1025 = vmatprep.subr.mxu0 0.0
    %1026 = vmatpush1.msra.mxu0 0.0
    %1027 = vmatprep.subr.mxu0 0.0
    %1028 = vmatpush1.msra.mxu0 0.0
    %1029 = vmatprep.subr.mxu0 0.0
    %1030 = vmatpush1.msra.mxu0 0.0
    %1031 = vmatprep.subr.mxu0 0.0
    %1032 = vmatpush1.msra.mxu0 0.0
    %1033 = vmatprep.subr.mxu0 0.0
    %1034 = vmatpush1.msra.mxu0 0.0
    %1035 = vmatprep.subr.mxu0 0.0
    %1036 = vmatpush1.msra.mxu0 0.0
    %1037 = vmatprep.subr.mxu0 0.0
    %1038 = vmatpush1.msra.mxu0 0.0
    %1039 = vmatprep.subr.mxu0 0.0
    %1040 = vmatpush1.msra.mxu0 0.0
    %1041 = vmatprep.subr.mxu0 0.0
    %1042 = vmatpush1.msra.mxu0 0.0
    %1043 = vmatprep.subr.mxu0 0.0
    %1044 = vmatpush1.msra.mxu0 0.0
    %1045 = vmatprep.subr.mxu0 0.0
    %1046 = vmatpush1.msra.mxu0 0.0
    %1047 = vmatprep.subr.mxu0 0.0
    %1048 = vmatpush1.msra.mxu0 0.0
    %1049 = vmatprep.subr.mxu0 0.0
    %1050 = vmatpush1.msra.mxu0 0.0
    %1051 = vmatprep.subr.mxu0 0.0
    %1052 = vmatpush1.msra.mxu0 0.0
    %1053 = vmatprep.subr.mxu0 0.0
    %1054 = vmatpush1.msra.mxu0 0.0
    %1055 = vmatprep.subr.mxu0 0.0
    %1056 = vmatpush1.msra.mxu0 0.0
    %1057 = vmatprep.subr.mxu0 0.0
    %1058 = vmatpush1.msra.mxu0 0.0
    %1059 = vmatprep.subr.mxu0 0.0
    %1060 = vmatpush1.msra.mxu0 0.0
    %1061 = vmatprep.subr.mxu0 0.0
    %1062 = vmatpush1.msra.mxu0 0.0
    %1063 = vmatprep.subr.mxu0 0.0
    %1064 = vmatpush1.msra.mxu0 0.0
    %1065 = vmatprep.subr.mxu0 0.0
    %1066 = vmatpush1.msra.mxu0 0.0
    %1067 = vmatprep.mubr.f32.mxu0 0.0
    %1068 = vmatmul.mubr.f32.gmra.mrb[0].mxu0 %v1001
    %v1069 = vpop.f32.mrb[0].mxu0
    %v1070 = vadd.f32 0.0, %v1069
    %v1071 = vpop.f32.mrb[0].mxu0
    %1072 = vdwg.mxu0
    %v1073 = vadd.f32 %v997, %v1070
    %v1074 = vxor.u32 %v1073, 2147483648
    %v1075 = vmul.f32 %v1074, 1.442695
    %v1076 = vpow.pop %v1075
    %v1077 = vadd.f32 %v1076, 1.0
    %v1078 = vrcp.pop %v1077
    %v1079 = vmul.f32 1.0, %v1078
    %v1080 = vtanh.pop %v1073
    %v1081 = vsel %vm253, %v1080, %v1079
    %v1082 = vmul.f32 %v1081, %v988
    %1084 = vrot.lane.b32.xlu0 %v1081, 64
    %v1085 = vpop.permute.xlu0 %1084
    %v1087 = vmul.f32 %v1081, %v1085
    %1089 = vrot.lane.b32.xlu0 %v1087, 32
    %v1090 = vpop.permute.xlu0 %1089
    %v1092 = vadd.f32 %v1082, %v1090
    %v1093 = vtanh.pop %v1092
    %1095 = vrot.lane.b32.xlu0 %v1093, 64
    %v1096 = vpop.permute.xlu0 %1095
    %v1098 = vmul.f32 %v1081, %v1096
    %vm1099 = vcmp.gt.s32.totalorder %v248, 5
    %v1100 = vsel %vm1099, 1, 0
    %1101 = vset.pattern.permute.xlu0 0
    %1102 = vperm.xlu0 %1101, %v1100
    %v1103 = vpop.permute.xlu0 %1102
    %vm1104 = vcmp.eq.s32.totalorder %v1103, 1
    %v1105 = vsel %vm1104, %v1098, %v987
    %v1106 = vsel %vm1104, %v1092, %v988
    %v1107 = vsel %vm1104, %v1098, 0.0
    %1109 = vrot.lane.b32.xlu0 %v1107, 32
    %v1110 = vpop.permute.xlu0 %1109
    %s1112 = scalar_lea.vmem [#allocation2], 40
    %1113 = vst.msk [vmem:[%s1112] sm:$0xff] %vm239, %v1110
    %s1114 = scalar_lea.vmem [#allocation3], 48
    %v1115 = vld [vmem:[%s1114] sm:$0xff]
    %1117 = vrot.lane.b32.xlu0 %v1105, 32
    %v1118 = vpop.permute.xlu0 %1117
    %v1119 = vsel %vm239, %v1118, 0
    %1121 = vmatprep.subr.mxu0 0.0
    %1122 = vmatpush1.msra.mxu0 %v410
    %1123 = vmatprep.subr.mxu0 0.0
    %1124 = vmatpush1.msra.mxu0 %v411
    %1125 = vmatprep.subr.mxu0 0.0
    %1126 = vmatpush1.msra.mxu0 %v412
    %1127 = vmatprep.subr.mxu0 0.0
    %1128 = vmatpush1.msra.mxu0 %v413
    %1129 = vmatprep.subr.mxu0 0.0
    %1130 = vmatpush1.msra.mxu0 0.0
    %1131 = vmatprep.subr.mxu0 0.0
    %1132 = vmatpush1.msra.mxu0 0.0
    %1133 = vmatprep.subr.mxu0 0.0
    %1134 = vmatpush1.msra.mxu0 0.0
    %1135 = vmatprep.subr.mxu0 0.0
    %1136 = vmatpush1.msra.mxu0 0.0
    %1137 = vmatprep.subr.mxu0 0.0
    %1138 = vmatpush1.msra.mxu0 0.0
    %1139 = vmatprep.subr.mxu0 0.0
    %1140 = vmatpush1.msra.mxu0 0.0
    %1141 = vmatprep.subr.mxu0 0.0
    %1142 = vmatpush1.msra.mxu0 0.0
    %1143 = vmatprep.subr.mxu0 0.0
    %1144 = vmatpush1.msra.mxu0 0.0
    %1145 = vmatprep.subr.mxu0 0.0
    %1146 = vmatpush1.msra.mxu0 0.0
    %1147 = vmatprep.subr.mxu0 0.0
    %1148 = vmatpush1.msra.mxu0 0.0
    %1149 = vmatprep.subr.mxu0 0.0
    %1150 = vmatpush1.msra.mxu0 0.0
    %1151 = vmatprep.subr.mxu0 0.0
    %1152 = vmatpush1.msra.mxu0 0.0
    %1153 = vmatprep.subr.mxu0 0.0
    %1154 = vmatpush1.msra.mxu0 0.0
    %1155 = vmatprep.subr.mxu0 0.0
    %1156 = vmatpush1.msra.mxu0 0.0
    %1157 = vmatprep.subr.mxu0 0.0
    %1158 = vmatpush1.msra.mxu0 0.0
    %1159 = vmatprep.subr.mxu0 0.0
    %1160 = vmatpush1.msra.mxu0 0.0
    %1161 = vmatprep.subr.mxu0 0.0
    %1162 = vmatpush1.msra.mxu0 0.0
    %1163 = vmatprep.subr.mxu0 0.0
    %1164 = vmatpush1.msra.mxu0 0.0
    %1165 = vmatprep.subr.mxu0 0.0
    %1166 = vmatpush1.msra.mxu0 0.0
    %1167 = vmatprep.subr.mxu0 0.0
    %1168 = vmatpush1.msra.mxu0 0.0
    %1169 = vmatprep.subr.mxu0 0.0
    %1170 = vmatpush1.msra.mxu0 0.0
    %1171 = vmatprep.subr.mxu0 0.0
    %1172 = vmatpush1.msra.mxu0 0.0
    %1173 = vmatprep.subr.mxu0 0.0
    %1174 = vmatpush1.msra.mxu0 0.0
    %1175 = vmatprep.subr.mxu0 0.0
    %1176 = vmatpush1.msra.mxu0 0.0
    %1177 = vmatprep.subr.mxu0 0.0
    %1178 = vmatpush1.msra.mxu0 0.0
    %1179 = vmatprep.subr.mxu0 0.0
    %1180 = vmatpush1.msra.mxu0 0.0
    %1181 = vmatprep.subr.mxu0 0.0
    %1182 = vmatpush1.msra.mxu0 0.0
    %1183 = vmatprep.subr.mxu0 0.0
    %1184 = vmatpush1.msra.mxu0 0.0
    %1185 = vmatprep.mubr.f32.mxu0 0.0
    %1186 = vmatmul.mubr.f32.gmra.mrb[0].mxu0 %v1119
    %v1187 = vpop.f32.mrb[0].mxu0
    %v1188 = vadd.f32 0.0, %v1187
    %v1189 = vpop.f32.mrb[0].mxu0
    %1190 = vdwg.mxu0
    %v1191 = vadd.f32 %v1115, %v1188
    %v1192 = vxor.u32 %v1191, 2147483648
    %v1193 = vmul.f32 %v1192, 1.442695
    %v1194 = vpow.pop %v1193
    %v1195 = vadd.f32 %v1194, 1.0
    %v1196 = vrcp.pop %v1195
    %v1197 = vmul.f32 1.0, %v1196
    %v1198 = vtanh.pop %v1191
    %v1199 = vsel %vm253, %v1198, %v1197
    %v1200 = vmul.f32 %v1199, %v1106
    %1202 = vrot.lane.b32.xlu0 %v1199, 64
    %v1203 = vpop.permute.xlu0 %1202
    %v1205 = vmul.f32 %v1199, %v1203
    %1207 = vrot.lane.b32.xlu0 %v1205, 32
    %v1208 = vpop.permute.xlu0 %1207
    %v1210 = vadd.f32 %v1200, %v1208
    %v1211 = vtanh.pop %v1210
    %1213 = vrot.lane.b32.xlu0 %v1211, 64
    %v1214 = vpop.permute.xlu0 %1213
    %v1216 = vmul.f32 %v1199, %v1214
    %vm1217 = vcmp.gt.s32.totalorder %v248, 6
    %v1218 = vsel %vm1217, 1, 0
    %1219 = vset.pattern.permute.xlu0 0
    %1220 = vperm.xlu0 %1219, %v1218
    %v1221 = vpop.permute.xlu0 %1220
    %vm1222 = vcmp.eq.s32.totalorder %v1221, 1
    %v1223 = vsel %vm1222, %v1216, %v1105
    %v1224 = vsel %vm1222, %v1210, %v1106
    %v1225 = vsel %vm1222, %v1216, 0.0
    %1227 = vrot.lane.b32.xlu0 %v1225, 32
    %v1228 = vpop.permute.xlu0 %1227
    %s1230 = scalar_lea.vmem [#allocation2], 48
    %1231 = vst.msk [vmem:[%s1230] sm:$0xff] %vm239, %v1228
    %s1232 = scalar_lea.vmem [#allocation3], 56
    %v1233 = vld [vmem:[%s1232] sm:$0xff]
    %1235 = vrot.lane.b32.xlu0 %v1223, 32
    %v1236 = vpop.permute.xlu0 %1235
    %v1237 = vsel %vm239, %v1236, 0
    %1239 = vmatprep.subr.mxu0 0.0
    %1240 = vmatpush1.msra.mxu0 %v410
    %1241 = vmatprep.subr.mxu0 0.0
    %1242 = vmatpush1.msra.mxu0 %v411
    %1243 = vmatprep.subr.mxu0 0.0
    %1244 = vmatpush1.msra.mxu0 %v412
    %1245 = vmatprep.subr.mxu0 0.0
    %1246 = vmatpush1.msra.mxu0 %v413
    %1247 = vmatprep.subr.mxu0 0.0
    %1248 = vmatpush1.msra.mxu0 0.0
    %1249 = vmatprep.subr.mxu0 0.0
    %1250 = vmatpush1.msra.mxu0 0.0
    %1251 = vmatprep.subr.mxu0 0.0
    %1252 = vmatpush1.msra.mxu0 0.0
    %1253 = vmatprep.subr.mxu0 0.0
    %1254 = vmatpush1.msra.mxu0 0.0
    %1255 = vmatprep.subr.mxu0 0.0
    %1256 = vmatpush1.msra.mxu0 0.0
    %1257 = vmatprep.subr.mxu0 0.0
    %1258 = vmatpush1.msra.mxu0 0.0
    %1259 = vmatprep.subr.mxu0 0.0
    %1260 = vmatpush1.msra.mxu0 0.0
    %1261 = vmatprep.subr.mxu0 0.0
    %1262 = vmatpush1.msra.mxu0 0.0
    %1263 = vmatprep.subr.mxu0 0.0
    %1264 = vmatpush1.msra.mxu0 0.0
    %1265 = vmatprep.subr.mxu0 0.0
    %1266 = vmatpush1.msra.mxu0 0.0
    %1267 = vmatprep.subr.mxu0 0.0
    %1268 = vmatpush1.msra.mxu0 0.0
    %1269 = vmatprep.subr.mxu0 0.0
    %1270 = vmatpush1.msra.mxu0 0.0
    %1271 = vmatprep.subr.mxu0 0.0
    %1272 = vmatpush1.msra.mxu0 0.0
    %1273 = vmatprep.subr.mxu0 0.0
    %1274 = vmatpush1.msra.mxu0 0.0
    %1275 = vmatprep.subr.mxu0 0.0
    %1276 = vmatpush1.msra.mxu0 0.0
    %1277 = vmatprep.subr.mxu0 0.0
    %1278 = vmatpush1.msra.mxu0 0.0
    %1279 = vmatprep.subr.mxu0 0.0
    %1280 = vmatpush1.msra.mxu0 0.0
    %1281 = vmatprep.subr.mxu0 0.0
    %1282 = vmatpush1.msra.mxu0 0.0
    %1283 = vmatprep.subr.mxu0 0.0
    %1284 = vmatpush1.msra.mxu0 0.0
    %1285 = vmatprep.subr.mxu0 0.0
    %1286 = vmatpush1.msra.mxu0 0.0
    %1287 = vmatprep.subr.mxu0 0.0
    %1288 = vmatpush1.msra.mxu0 0.0
    %1289 = vmatprep.subr.mxu0 0.0
    %1290 = vmatpush1.msra.mxu0 0.0
    %1291 = vmatprep.subr.mxu0 0.0
    %1292 = vmatpush1.msra.mxu0 0.0
    %1293 = vmatprep.subr.mxu0 0.0
    %1294 = vmatpush1.msra.mxu0 0.0
    %1295 = vmatprep.subr.mxu0 0.0
    %1296 = vmatpush1.msra.mxu0 0.0
    %1297 = vmatprep.subr.mxu0 0.0
    %1298 = vmatpush1.msra.mxu0 0.0
    %1299 = vmatprep.subr.mxu0 0.0
    %1300 = vmatpush1.msra.mxu0 0.0
    %1301 = vmatprep.subr.mxu0 0.0
    %1302 = vmatpush1.msra.mxu0 0.0
    %1303 = vmatprep.mubr.f32.mxu0 0.0
    %1304 = vmatmul.mubr.f32.gmra.mrb[0].mxu0 %v1237
    %v1305 = vpop.f32.mrb[0].mxu0
    %v1306 = vadd.f32 0.0, %v1305
    %v1307 = vpop.f32.mrb[0].mxu0
    %1308 = vdwg.mxu0
    %v1309 = vadd.f32 %v1233, %v1306
    %v1310 = vxor.u32 %v1309, 2147483648
    %v1311 = vmul.f32 %v1310, 1.442695
    %v1312 = vpow.pop %v1311
    %v1313 = vadd.f32 %v1312, 1.0
    %v1314 = vrcp.pop %v1313
    %v1315 = vmul.f32 1.0, %v1314
    %v1316 = vtanh.pop %v1309
    %v1317 = vsel %vm253, %v1316, %v1315
    %v1318 = vmul.f32 %v1317, %v1224
    %1320 = vrot.lane.b32.xlu0 %v1317, 64
    %v1321 = vpop.permute.xlu0 %1320
    %v1323 = vmul.f32 %v1317, %v1321
    %1325 = vrot.lane.b32.xlu0 %v1323, 32
    %v1326 = vpop.permute.xlu0 %1325
    %v1328 = vadd.f32 %v1318, %v1326
    %v1329 = vtanh.pop %v1328
    %1331 = vrot.lane.b32.xlu0 %v1329, 64
    %v1332 = vpop.permute.xlu0 %1331
    %v1334 = vmul.f32 %v1317, %v1332
    %vm1335 = vcmp.gt.s32.totalorder %v248, 7
    %v1336 = vsel %vm1335, 1, 0
    %1337 = vset.pattern.permute.xlu0 0
    %1338 = vperm.xlu0 %1337, %v1336
    %v1339 = vpop.permute.xlu0 %1338
    %vm1340 = vcmp.eq.s32.totalorder %v1339, 1
    %v1341 = vsel %vm1340, %v1334, %v1223
    %v1342 = vsel %vm1340, %v1328, %v1224
    %v1343 = vsel %vm1340, %v1334, 0.0
    %1345 = vrot.lane.b32.xlu0 %v1343, 32
    %v1346 = vpop.permute.xlu0 %1345
    %s1348 = scalar_lea.vmem [#allocation2], 56
    %1349 = vst.msk [vmem:[%s1348] sm:$0xff] %vm239, %v1346
    %1351 = vrot.lane.b32.xlu0 %v1341, 32
    %v1352 = vpop.permute.xlu0 %1351
    %1354 = vst.msk [vmem:[#allocation13] sm:$0xff] %vm239, %v1352
    %1356 = vrot.lane.b32.xlu0 %v1342, 96
    %v1357 = vpop.permute.xlu0 %1356
    %1359 = vst.msk [vmem:[#allocation15] sm:$0xff] %vm239, %v1357
    %v1360 = vld [vmem:[#allocation2] sm:$0xff]
    %v1361 = vld [vmem:[#allocation2 + $0x8] sm:$0xff]
    %v1362 = vld [vmem:[#allocation2 + $0x10] sm:$0xff]
    %v1363 = vld [vmem:[#allocation2 + $0x18] sm:$0xff]
    %v1364 = vld [vmem:[#allocation2 + $0x20] sm:$0xff]
    %v1365 = vld [vmem:[#allocation2 + $0x28] sm:$0xff]
    %v1366 = vld [vmem:[#allocation2 + $0x30] sm:$0xff]
    %v1367 = vld [vmem:[#allocation2 + $0x38] sm:$0xff]
    %s1368 = scalar_lea.vmem [#allocation9], 32
    %v1369 = vld [vmem:[%s1368] sm:$0xff]
    %v1370 = vld [vmem:[%s1368 + $0x8] sm:$0xff]
    %v1371 = vld [vmem:[%s1368 + $0x10] sm:$0xff]
    %v1372 = vld [vmem:[%s1368 + $0x18] sm:$0xff]
    %s1373 = scalar_lea.vmem %s6, 1
    %v1374 = vld [vmem:[%s1373] sm:$0x1]
    %v1376 = vlaneseq
    %v1377 = vshrl.u32 %v1376, 7
    %v1378 = vsub.s32 0, %v1377
    %v1379 = vrot.slane %v1374, %v1378
    %v1382 = vsel %vm239, %v1360, 0
    %v1385 = vsel %vm239, %v1361, 0
    %v1388 = vsel %vm239, %v1362, 0
    %v1391 = vsel %vm239, %v1363, 0
    %v1394 = vsel %vm239, %v1364, 0
    %v1397 = vsel %vm239, %v1365, 0
    %v1400 = vsel %vm239, %v1366, 0
    %v1403 = vsel %vm239, %v1367, 0
    %1405 = vmatprep.subr.mxu0 0.0
    %1406 = vmatpush1.msra.mxu0 %v1369
    %1407 = vmatprep.subr.mxu0 0.0
    %1408 = vmatpush1.msra.mxu0 %v1370
    %1409 = vmatprep.subr.mxu0 0.0
    %1410 = vmatpush1.msra.mxu0 %v1371
    %1411 = vmatprep.subr.mxu0 0.0
    %1412 = vmatpush1.msra.mxu0 %v1372
    %1413 = vmatprep.subr.mxu0 0.0
    %1414 = vmatpush1.msra.mxu0 0.0
    %1415 = vmatprep.subr.mxu0 0.0
    %1416 = vmatpush1.msra.mxu0 0.0
    %1417 = vmatprep.subr.mxu0 0.0
    %1418 = vmatpush1.msra.mxu0 0.0
    %1419 = vmatprep.subr.mxu0 0.0
    %1420 = vmatpush1.msra.mxu0 0.0
    %1421 = vmatprep.subr.mxu0 0.0
    %1422 = vmatpush1.msra.mxu0 0.0
    %1423 = vmatprep.subr.mxu0 0.0
    %1424 = vmatpush1.msra.mxu0 0.0
    %1425 = vmatprep.subr.mxu0 0.0
    %1426 = vmatpush1.msra.mxu0 0.0
    %1427 = vmatprep.subr.mxu0 0.0
    %1428 = vmatpush1.msra.mxu0 0.0
    %1429 = vmatprep.subr.mxu0 0.0
    %1430 = vmatpush1.msra.mxu0 0.0
    %1431 = vmatprep.subr.mxu0 0.0
    %1432 = vmatpush1.msra.mxu0 0.0
    %1433 = vmatprep.subr.mxu0 0.0
    %1434 = vmatpush1.msra.mxu0 0.0
    %1435 = vmatprep.subr.mxu0 0.0
    %1436 = vmatpush1.msra.mxu0 0.0
    %1437 = vmatprep.subr.mxu0 0.0
    %1438 = vmatpush1.msra.mxu0 0.0
    %1439 = vmatprep.subr.mxu0 0.0
    %1440 = vmatpush1.msra.mxu0 0.0
    %1441 = vmatprep.subr.mxu0 0.0
    %1442 = vmatpush1.msra.mxu0 0.0
    %1443 = vmatprep.subr.mxu0 0.0
    %1444 = vmatpush1.msra.mxu0 0.0
    %1445 = vmatprep.subr.mxu0 0.0
    %1446 = vmatpush1.msra.mxu0 0.0
    %1447 = vmatprep.subr.mxu0 0.0
    %1448 = vmatpush1.msra.mxu0 0.0
    %1449 = vmatprep.subr.mxu0 0.0
    %1450 = vmatpush1.msra.mxu0 0.0
    %1451 = vmatprep.subr.mxu0 0.0
    %1452 = vmatpush1.msra.mxu0 0.0
    %1453 = vmatprep.subr.mxu0 0.0
    %1454 = vmatpush1.msra.mxu0 0.0
    %1455 = vmatprep.subr.mxu0 0.0
    %1456 = vmatpush1.msra.mxu0 0.0
    %1457 = vmatprep.subr.mxu0 0.0
    %1458 = vmatpush1.msra.mxu0 0.0
    %1459 = vmatprep.subr.mxu0 0.0
    %1460 = vmatpush1.msra.mxu0 0.0
    %1461 = vmatprep.subr.mxu0 0.0
    %1462 = vmatpush1.msra.mxu0 0.0
    %1463 = vmatprep.subr.mxu0 0.0
    %1464 = vmatpush1.msra.mxu0 0.0
    %1465 = vmatprep.subr.mxu0 0.0
    %1466 = vmatpush1.msra.mxu0 0.0
    %1467 = vmatprep.subr.mxu0 0.0
    %1468 = vmatpush1.msra.mxu0 0.0
    %1469 = vmatprep.mubr.f32.mxu0 0.0
    %1470 = vmatmul.mubr.f32.gmra.mrb[0].mxu0 %v1382
    %v1471 = vpop.f32.mrb[0].mxu0
    %v1472 = vadd.f32 %v1379, %v1471
    %v1473 = vpop.f32.mrb[0].mxu0
    %1474 = vmatprep.mubr.f32.mxu0 0.0
    %1475 = vmatmul.mubr.f32.gmra.mrb[0].mxu0 %v1385
    %v1476 = vpop.f32.mrb[0].mxu0
    %v1477 = vadd.f32 %v1379, %v1476
    %v1478 = vpop.f32.mrb[0].mxu0
    %1479 = vmatprep.mubr.f32.mxu0 0.0
    %1480 = vmatmul.mubr.f32.gmra.mrb[0].mxu0 %v1388
    %v1481 = vpop.f32.mrb[0].mxu0
    %v1482 = vadd.f32 %v1379, %v1481
    %v1483 = vpop.f32.mrb[0].mxu0
    %1484 = vmatprep.mubr.f32.mxu0 0.0
    %1485 = vmatmul.mubr.f32.gmra.mrb[0].mxu0 %v1391
    %v1486 = vpop.f32.mrb[0].mxu0
    %v1487 = vadd.f32 %v1379, %v1486
    %v1488 = vpop.f32.mrb[0].mxu0
    %1489 = vmatprep.mubr.f32.mxu0 0.0
    %1490 = vmatmul.mubr.f32.gmra.mrb[0].mxu0 %v1394
    %v1491 = vpop.f32.mrb[0].mxu0
    %v1492 = vadd.f32 %v1379, %v1491
    %v1493 = vpop.f32.mrb[0].mxu0
    %1494 = vmatprep.mubr.f32.mxu0 0.0
    %1495 = vmatmul.mubr.f32.gmra.mrb[0].mxu0 %v1397
    %v1496 = vpop.f32.mrb[0].mxu0
    %v1497 = vadd.f32 %v1379, %v1496
    %v1498 = vpop.f32.mrb[0].mxu0
    %1499 = vmatprep.mubr.f32.mxu0 0.0
    %1500 = vmatmul.mubr.f32.gmra.mrb[0].mxu0 %v1400
    %v1501 = vpop.f32.mrb[0].mxu0
    %v1502 = vadd.f32 %v1379, %v1501
    %v1503 = vpop.f32.mrb[0].mxu0
    %1504 = vmatprep.mubr.f32.mxu0 0.0
    %1505 = vmatmul.mubr.f32.gmra.mrb[0].mxu0 %v1403
    %v1506 = vpop.f32.mrb[0].mxu0
    %v1507 = vadd.f32 %v1379, %v1506
    %v1508 = vpop.f32.mrb[0].mxu0
    %1509 = vdwg.mxu0
    %1510 = vst [vmem:[#allocation3] sm:$0xff] %v1472
    %1511 = vst [vmem:[#allocation3 + $0x8] sm:$0xff] %v1477
    %1512 = vst [vmem:[#allocation3 + $0x10] sm:$0xff] %v1482
    %1513 = vst [vmem:[#allocation3 + $0x18] sm:$0xff] %v1487
    %1514 = vst [vmem:[#allocation3 + $0x20] sm:$0xff] %v1492
    %1515 = vst [vmem:[#allocation3 + $0x28] sm:$0xff] %v1497
    %1516 = vst [vmem:[#allocation3 + $0x30] sm:$0xff] %v1502
    %1517 = vst [vmem:[#allocation3 + $0x38] sm:$0xff] %v1507
    %s1518 = scalar_lea.vmem [#allocation10], 32
    %v1519 = vld [vmem:[%s1518] sm:$0xff]
    %v1520 = vld [vmem:[%s1518 + $0x8] sm:$0xff]
    %v1521 = vld [vmem:[%s1518 + $0x10] sm:$0xff]
    %v1522 = vld [vmem:[%s1518 + $0x18] sm:$0xff]
    %v1523 = vld [vmem:[#allocation3] sm:$0xff]
    %1524 = vmatprep.subr.mxu0 0.0
    %1525 = vmatpush1.msra.mxu0 %v1519
    %1526 = vmatprep.subr.mxu0 0.0
    %1527 = vmatpush1.msra.mxu0 %v1520
    %1528 = vmatprep.subr.mxu0 0.0
    %1529 = vmatpush1.msra.mxu0 %v1521
    %1530 = vmatprep.subr.mxu0 0.0
    %1531 = vmatpush1.msra.mxu0 %v1522
    %1532 = vmatprep.subr.mxu0 0.0
    %1533 = vmatpush1.msra.mxu0 0.0
    %1534 = vmatprep.subr.mxu0 0.0
    %1535 = vmatpush1.msra.mxu0 0.0
    %1536 = vmatprep.subr.mxu0 0.0
    %1537 = vmatpush1.msra.mxu0 0.0
    %1538 = vmatprep.subr.mxu0 0.0
    %1539 = vmatpush1.msra.mxu0 0.0
    %1540 = vmatprep.subr.mxu0 0.0
    %1541 = vmatpush1.msra.mxu0 0.0
    %1542 = vmatprep.subr.mxu0 0.0
    %1543 = vmatpush1.msra.mxu0 0.0
    %1544 = vmatprep.subr.mxu0 0.0
    %1545 = vmatpush1.msra.mxu0 0.0
    %1546 = vmatprep.subr.mxu0 0.0
    %1547 = vmatpush1.msra.mxu0 0.0
    %1548 = vmatprep.subr.mxu0 0.0
    %1549 = vmatpush1.msra.mxu0 0.0
    %1550 = vmatprep.subr.mxu0 0.0
    %1551 = vmatpush1.msra.mxu0 0.0
    %1552 = vmatprep.subr.mxu0 0.0
    %1553 = vmatpush1.msra.mxu0 0.0
    %1554 = vmatprep.subr.mxu0 0.0
    %1555 = vmatpush1.msra.mxu0 0.0
    %1556 = vmatprep.subr.mxu0 0.0
    %1557 = vmatpush1.msra.mxu0 0.0
    %1558 = vmatprep.subr.mxu0 0.0
    %1559 = vmatpush1.msra.mxu0 0.0
    %1560 = vmatprep.subr.mxu0 0.0
    %1561 = vmatpush1.msra.mxu0 0.0
    %1562 = vmatprep.subr.mxu0 0.0
    %1563 = vmatpush1.msra.mxu0 0.0
    %1564 = vmatprep.subr.mxu0 0.0
    %1565 = vmatpush1.msra.mxu0 0.0
    %1566 = vmatprep.subr.mxu0 0.0
    %1567 = vmatpush1.msra.mxu0 0.0
    %1568 = vmatprep.subr.mxu0 0.0
    %1569 = vmatpush1.msra.mxu0 0.0
    %1570 = vmatprep.subr.mxu0 0.0
    %1571 = vmatpush1.msra.mxu0 0.0
    %1572 = vmatprep.subr.mxu0 0.0
    %1573 = vmatpush1.msra.mxu0 0.0
    %1574 = vmatprep.subr.mxu0 0.0
    %1575 = vmatpush1.msra.mxu0 0.0
    %1576 = vmatprep.subr.mxu0 0.0
    %1577 = vmatpush1.msra.mxu0 0.0
    %1578 = vmatprep.subr.mxu0 0.0
    %1579 = vmatpush1.msra.mxu0 0.0
    %1580 = vmatprep.subr.mxu0 0.0
    %1581 = vmatpush1.msra.mxu0 0.0
    %1582 = vmatprep.subr.mxu0 0.0
    %1583 = vmatpush1.msra.mxu0 0.0
    %1584 = vmatprep.subr.mxu0 0.0
    %1585 = vmatpush1.msra.mxu0 0.0
    %1586 = vmatprep.subr.mxu0 0.0
    %1587 = vmatpush1.msra.mxu0 0.0
    %1588 = vmatprep.mubr.f32.mxu0 0.0
    %1589 = vmatmul.mubr.f32.gmra.mrb[0].mxu0 %v416
    %v1590 = vpop.f32.mrb[0].mxu0
    %v1591 = vadd.f32 0.0, %v1590
    %v1592 = vpop.f32.mrb[0].mxu0
    %1593 = vdwg.mxu0
    %v1594 = vadd.f32 %v1523, %v1591
    %v1595 = vxor.u32 %v1594, 2147483648
    %v1596 = vmul.f32 %v1595, 1.442695
    %v1597 = vpow.pop %v1596
    %v1598 = vadd.f32 %v1597, 1.0
    %v1599 = vrcp.pop %v1598
    %v1600 = vmul.f32 1.0, %v1599
    %v1601 = vtanh.pop %v1594
    %v1602 = vsel %vm253, %v1601, %v1600
    %v1603 = vmul.f32 %v1602, 0.0
    %1605 = vrot.lane.b32.xlu0 %v1602, 64
    %v1606 = vpop.permute.xlu0 %1605
    %v1608 = vmul.f32 %v1602, %v1606
    %1610 = vrot.lane.b32.xlu0 %v1608, 32
    %v1611 = vpop.permute.xlu0 %1610
    %v1613 = vadd.f32 %v1603, %v1611
    %v1614 = vtanh.pop %v1613
    %1616 = vrot.lane.b32.xlu0 %v1614, 64
    %v1617 = vpop.permute.xlu0 %1616
    %v1619 = vmul.f32 %v1602, %v1617
    %v1620 = vsel %vm519, %v1619, 0.0
    %v1621 = vsel %vm519, %v1613, 0.0
    %1623 = vrot.lane.b32.xlu0 %v1620, 32
    %v1624 = vpop.permute.xlu0 %1623
    %1626 = vst.msk [vmem:[#allocation2] sm:$0xff] %vm239, %v1624
    %v1627 = vld [vmem:[%s527] sm:$0xff]
    %v1628 = vsel %vm239, %v1624, 0
    %1630 = vmatprep.subr.mxu0 0.0
    %1631 = vmatpush1.msra.mxu0 %v1519
    %1632 = vmatprep.subr.mxu0 0.0
    %1633 = vmatpush1.msra.mxu0 %v1520
    %1634 = vmatprep.subr.mxu0 0.0
    %1635 = vmatpush1.msra.mxu0 %v1521
    %1636 = vmatprep.subr.mxu0 0.0
    %1637 = vmatpush1.msra.mxu0 %v1522
    %1638 = vmatprep.subr.mxu0 0.0
    %1639 = vmatpush1.msra.mxu0 0.0
    %1640 = vmatprep.subr.mxu0 0.0
    %1641 = vmatpush1.msra.mxu0 0.0
    %1642 = vmatprep.subr.mxu0 0.0
    %1643 = vmatpush1.msra.mxu0 0.0
    %1644 = vmatprep.subr.mxu0 0.0
    %1645 = vmatpush1.msra.mxu0 0.0
    %1646 = vmatprep.subr.mxu0 0.0
    %1647 = vmatpush1.msra.mxu0 0.0
    %1648 = vmatprep.subr.mxu0 0.0
    %1649 = vmatpush1.msra.mxu0 0.0
    %1650 = vmatprep.subr.mxu0 0.0
    %1651 = vmatpush1.msra.mxu0 0.0
    %1652 = vmatprep.subr.mxu0 0.0
    %1653 = vmatpush1.msra.mxu0 0.0
    %1654 = vmatprep.subr.mxu0 0.0
    %1655 = vmatpush1.msra.mxu0 0.0
    %1656 = vmatprep.subr.mxu0 0.0
    %1657 = vmatpush1.msra.mxu0 0.0
    %1658 = vmatprep.subr.mxu0 0.0
    %1659 = vmatpush1.msra.mxu0 0.0
    %1660 = vmatprep.subr.mxu0 0.0
    %1661 = vmatpush1.msra.mxu0 0.0
    %1662 = vmatprep.subr.mxu0 0.0
    %1663 = vmatpush1.msra.mxu0 0.0
    %1664 = vmatprep.subr.mxu0 0.0
    %1665 = vmatpush1.msra.mxu0 0.0
    %1666 = vmatprep.subr.mxu0 0.0
    %1667 = vmatpush1.msra.mxu0 0.0
    %1668 = vmatprep.subr.mxu0 0.0
    %1669 = vmatpush1.msra.mxu0 0.0
    %1670 = vmatprep.subr.mxu0 0.0
    %1671 = vmatpush1.msra.mxu0 0.0
    %1672 = vmatprep.subr.mxu0 0.0
    %1673 = vmatpush1.msra.mxu0 0.0
    %1674 = vmatprep.subr.mxu0 0.0
    %1675 = vmatpush1.msra.mxu0 0.0
    %1676 = vmatprep.subr.mxu0 0.0
    %1677 = vmatpush1.msra.mxu0 0.0
    %1678 = vmatprep.subr.mxu0 0.0
    %1679 = vmatpush1.msra.mxu0 0.0
    %1680 = vmatprep.subr.mxu0 0.0
    %1681 = vmatpush1.msra.mxu0 0.0
    %1682 = vmatprep.subr.mxu0 0.0
    %1683 = vmatpush1.msra.mxu0 0.0
    %1684 = vmatprep.subr.mxu0 0.0
    %1685 = vmatpush1.msra.mxu0 0.0
    %1686 = vmatprep.subr.mxu0 0.0
    %1687 = vmatpush1.msra.mxu0 0.0
    %1688 = vmatprep.subr.mxu0 0.0
    %1689 = vmatpush1.msra.mxu0 0.0
    %1690 = vmatprep.subr.mxu0 0.0
    %1691 = vmatpush1.msra.mxu0 0.0
    %1692 = vmatprep.subr.mxu0 0.0
    %1693 = vmatpush1.msra.mxu0 0.0
    %1694 = vmatprep.mubr.f32.mxu0 0.0
    %1695 = vmatmul.mubr.f32.gmra.mrb[0].mxu0 %v1628
    %v1696 = vpop.f32.mrb[0].mxu0
    %v1697 = vadd.f32 0.0, %v1696
    %v1698 = vpop.f32.mrb[0].mxu0
    %1699 = vdwg.mxu0
    %v1700 = vadd.f32 %v1627, %v1697
    %v1701 = vxor.u32 %v1700, 2147483648
    %v1702 = vmul.f32 %v1701, 1.442695
    %v1703 = vpow.pop %v1702
    %v1704 = vadd.f32 %v1703, 1.0
    %v1705 = vrcp.pop %v1704
    %v1706 = vmul.f32 1.0, %v1705
    %v1707 = vtanh.pop %v1700
    %v1708 = vsel %vm253, %v1707, %v1706
    %v1709 = vmul.f32 %v1708, %v1621
    %1711 = vrot.lane.b32.xlu0 %v1708, 64
    %v1712 = vpop.permute.xlu0 %1711
    %v1714 = vmul.f32 %v1708, %v1712
    %1716 = vrot.lane.b32.xlu0 %v1714, 32
    %v1717 = vpop.permute.xlu0 %1716
    %v1719 = vadd.f32 %v1709, %v1717
    %v1720 = vtanh.pop %v1719
    %1722 = vrot.lane.b32.xlu0 %v1720, 64
    %v1723 = vpop.permute.xlu0 %1722
    %v1725 = vmul.f32 %v1708, %v1723
    %v1726 = vsel %vm632, %v1725, %v1620
    %v1727 = vsel %vm632, %v1719, %v1621
    %v1728 = vsel %vm632, %v1725, 0.0
    %1730 = vrot.lane.b32.xlu0 %v1728, 32
    %v1731 = vpop.permute.xlu0 %1730
    %1733 = vst.msk [vmem:[%s640] sm:$0xff] %vm239, %v1731
    %v1734 = vld [vmem:[%s642] sm:$0xff]
    %1736 = vrot.lane.b32.xlu0 %v1726, 32
    %v1737 = vpop.permute.xlu0 %1736
    %v1738 = vsel %vm239, %v1737, 0
    %1740 = vmatprep.subr.mxu0 0.0
    %1741 = vmatpush1.msra.mxu0 %v1519
    %1742 = vmatprep.subr.mxu0 0.0
    %1743 = vmatpush1.msra.mxu0 %v1520
    %1744 = vmatprep.subr.mxu0 0.0
    %1745 = vmatpush1.msra.mxu0 %v1521
    %1746 = vmatprep.subr.mxu0 0.0
    %1747 = vmatpush1.msra.mxu0 %v1522
    %1748 = vmatprep.subr.mxu0 0.0
    %1749 = vmatpush1.msra.mxu0 0.0
    %1750 = vmatprep.subr.mxu0 0.0
    %1751 = vmatpush1.msra.mxu0 0.0
    %1752 = vmatprep.subr.mxu0 0.0
    %1753 = vmatpush1.msra.mxu0 0.0
    %1754 = vmatprep.subr.mxu0 0.0
    %1755 = vmatpush1.msra.mxu0 0.0
    %1756 = vmatprep.subr.mxu0 0.0
    %1757 = vmatpush1.msra.mxu0 0.0
    %1758 = vmatprep.subr.mxu0 0.0
    %1759 = vmatpush1.msra.mxu0 0.0
    %1760 = vmatprep.subr.mxu0 0.0
    %1761 = vmatpush1.msra.mxu0 0.0
    %1762 = vmatprep.subr.mxu0 0.0
    %1763 = vmatpush1.msra.mxu0 0.0
    %1764 = vmatprep.subr.mxu0 0.0
    %1765 = vmatpush1.msra.mxu0 0.0
    %1766 = vmatprep.subr.mxu0 0.0
    %1767 = vmatpush1.msra.mxu0 0.0
    %1768 = vmatprep.subr.mxu0 0.0
    %1769 = vmatpush1.msra.mxu0 0.0
    %1770 = vmatprep.subr.mxu0 0.0
    %1771 = vmatpush1.msra.mxu0 0.0
    %1772 = vmatprep.subr.mxu0 0.0
    %1773 = vmatpush1.msra.mxu0 0.0
    %1774 = vmatprep.subr.mxu0 0.0
    %1775 = vmatpush1.msra.mxu0 0.0
    %1776 = vmatprep.subr.mxu0 0.0
    %1777 = vmatpush1.msra.mxu0 0.0
    %1778 = vmatprep.subr.mxu0 0.0
    %1779 = vmatpush1.msra.mxu0 0.0
    %1780 = vmatprep.subr.mxu0 0.0
    %1781 = vmatpush1.msra.mxu0 0.0
    %1782 = vmatprep.subr.mxu0 0.0
    %1783 = vmatpush1.msra.mxu0 0.0
    %1784 = vmatprep.subr.mxu0 0.0
    %1785 = vmatpush1.msra.mxu0 0.0
    %1786 = vmatprep.subr.mxu0 0.0
    %1787 = vmatpush1.msra.mxu0 0.0
    %1788 = vmatprep.subr.mxu0 0.0
    %1789 = vmatpush1.msra.mxu0 0.0
    %1790 = vmatprep.subr.mxu0 0.0
    %1791 = vmatpush1.msra.mxu0 0.0
    %1792 = vmatprep.subr.mxu0 0.0
    %1793 = vmatpush1.msra.mxu0 0.0
    %1794 = vmatprep.subr.mxu0 0.0
    %1795 = vmatpush1.msra.mxu0 0.0
    %1796 = vmatprep.subr.mxu0 0.0
    %1797 = vmatpush1.msra.mxu0 0.0
    %1798 = vmatprep.subr.mxu0 0.0
    %1799 = vmatpush1.msra.mxu0 0.0
    %1800 = vmatprep.subr.mxu0 0.0
    %1801 = vmatpush1.msra.mxu0 0.0
    %1802 = vmatprep.subr.mxu0 0.0
    %1803 = vmatpush1.msra.mxu0 0.0
    %1804 = vmatprep.mubr.f32.mxu0 0.0
    %1805 = vmatmul.mubr.f32.gmra.mrb[0].mxu0 %v1738
    %v1806 = vpop.f32.mrb[0].mxu0
    %v1807 = vadd.f32 0.0, %v1806
    %v1808 = vpop.f32.mrb[0].mxu0
    %1809 = vdwg.mxu0
    %v1810 = vadd.f32 %v1734, %v1807
    %v1811 = vxor.u32 %v1810, 2147483648
    %v1812 = vmul.f32 %v1811, 1.442695
    %v1813 = vpow.pop %v1812
    %v1814 = vadd.f32 %v1813, 1.0
    %v1815 = vrcp.pop %v1814
    %v1816 = vmul.f32 1.0, %v1815
    %v1817 = vtanh.pop %v1810
    %v1818 = vsel %vm253, %v1817, %v1816
    %v1819 = vmul.f32 %v1818, %v1727
    %1821 = vrot.lane.b32.xlu0 %v1818, 64
    %v1822 = vpop.permute.xlu0 %1821
    %v1824 = vmul.f32 %v1818, %v1822
    %1826 = vrot.lane.b32.xlu0 %v1824, 32
    %v1827 = vpop.permute.xlu0 %1826
    %v1829 = vadd.f32 %v1819, %v1827
    %v1830 = vtanh.pop %v1829
    %1832 = vrot.lane.b32.xlu0 %v1830, 64
    %v1833 = vpop.permute.xlu0 %1832
    %v1835 = vmul.f32 %v1818, %v1833
    %v1836 = vsel %vm750, %v1835, %v1726
    %v1837 = vsel %vm750, %v1829, %v1727
    %v1838 = vsel %vm750, %v1835, 0.0
    %1840 = vrot.lane.b32.xlu0 %v1838, 32
    %v1841 = vpop.permute.xlu0 %1840
    %1843 = vst.msk [vmem:[%s758] sm:$0xff] %vm239, %v1841
    %v1844 = vld [vmem:[%s760] sm:$0xff]
    %1846 = vrot.lane.b32.xlu0 %v1836, 32
    %v1847 = vpop.permute.xlu0 %1846
    %v1848 = vsel %vm239, %v1847, 0
    %1850 = vmatprep.subr.mxu0 0.0
    %1851 = vmatpush1.msra.mxu0 %v1519
    %1852 = vmatprep.subr.mxu0 0.0
    %1853 = vmatpush1.msra.mxu0 %v1520
    %1854 = vmatprep.subr.mxu0 0.0
    %1855 = vmatpush1.msra.mxu0 %v1521
    %1856 = vmatprep.subr.mxu0 0.0
    %1857 = vmatpush1.msra.mxu0 %v1522
    %1858 = vmatprep.subr.mxu0 0.0
    %1859 = vmatpush1.msra.mxu0 0.0
    %1860 = vmatprep.subr.mxu0 0.0
    %1861 = vmatpush1.msra.mxu0 0.0
    %1862 = vmatprep.subr.mxu0 0.0
    %1863 = vmatpush1.msra.mxu0 0.0
    %1864 = vmatprep.subr.mxu0 0.0
    %1865 = vmatpush1.msra.mxu0 0.0
    %1866 = vmatprep.subr.mxu0 0.0
    %1867 = vmatpush1.msra.mxu0 0.0
    %1868 = vmatprep.subr.mxu0 0.0
    %1869 = vmatpush1.msra.mxu0 0.0
    %1870 = vmatprep.subr.mxu0 0.0
    %1871 = vmatpush1.msra.mxu0 0.0
    %1872 = vmatprep.subr.mxu0 0.0
    %1873 = vmatpush1.msra.mxu0 0.0
    %1874 = vmatprep.subr.mxu0 0.0
    %1875 = vmatpush1.msra.mxu0 0.0
    %1876 = vmatprep.subr.mxu0 0.0
    %1877 = vmatpush1.msra.mxu0 0.0
    %1878 = vmatprep.subr.mxu0 0.0
    %1879 = vmatpush1.msra.mxu0 0.0
    %1880 = vmatprep.subr.mxu0 0.0
    %1881 = vmatpush1.msra.mxu0 0.0
    %1882 = vmatprep.subr.mxu0 0.0
    %1883 = vmatpush1.msra.mxu0 0.0
    %1884 = vmatprep.subr.mxu0 0.0
    %1885 = vmatpush1.msra.mxu0 0.0
    %1886 = vmatprep.subr.mxu0 0.0
    %1887 = vmatpush1.msra.mxu0 0.0
    %1888 = vmatprep.subr.mxu0 0.0
    %1889 = vmatpush1.msra.mxu0 0.0
    %1890 = vmatprep.subr.mxu0 0.0
    %1891 = vmatpush1.msra.mxu0 0.0
    %1892 = vmatprep.subr.mxu0 0.0
    %1893 = vmatpush1.msra.mxu0 0.0
    %1894 = vmatprep.subr.mxu0 0.0
    %1895 = vmatpush1.msra.mxu0 0.0
    %1896 = vmatprep.subr.mxu0 0.0
    %1897 = vmatpush1.msra.mxu0 0.0
    %1898 = vmatprep.subr.mxu0 0.0
    %1899 = vmatpush1.msra.mxu0 0.0
    %1900 = vmatprep.subr.mxu0 0.0
    %1901 = vmatpush1.msra.mxu0 0.0
    %1902 = vmatprep.subr.mxu0 0.0
    %1903 = vmatpush1.msra.mxu0 0.0
    %1904 = vmatprep.subr.mxu0 0.0
    %1905 = vmatpush1.msra.mxu0 0.0
    %1906 = vmatprep.subr.mxu0 0.0
    %1907 = vmatpush1.msra.mxu0 0.0
    %1908 = vmatprep.subr.mxu0 0.0
    %1909 = vmatpush1.msra.mxu0 0.0
    %1910 = vmatprep.subr.mxu0 0.0
    %1911 = vmatpush1.msra.mxu0 0.0
    %1912 = vmatprep.subr.mxu0 0.0
    %1913 = vmatpush1.msra.mxu0 0.0
    %1914 = vmatprep.mubr.f32.mxu0 0.0
    %1915 = vmatmul.mubr.f32.gmra.mrb[0].mxu0 %v1848
    %v1916 = vpop.f32.mrb[0].mxu0
    %v1917 = vadd.f32 0.0, %v1916
    %v1918 = vpop.f32.mrb[0].mxu0
    %1919 = vdwg.mxu0
    %v1920 = vadd.f32 %v1844, %v1917
    %v1921 = vxor.u32 %v1920, 2147483648
    %v1922 = vmul.f32 %v1921, 1.442695
    %v1923 = vpow.pop %v1922
    %v1924 = vadd.f32 %v1923, 1.0
    %v1925 = vrcp.pop %v1924
    %v1926 = vmul.f32 1.0, %v1925
    %v1927 = vtanh.pop %v1920
    %v1928 = vsel %vm253, %v1927, %v1926
    %v1929 = vmul.f32 %v1928, %v1837
    %1931 = vrot.lane.b32.xlu0 %v1928, 64
    %v1932 = vpop.permute.xlu0 %1931
    %v1934 = vmul.f32 %v1928, %v1932
    %1936 = vrot.lane.b32.xlu0 %v1934, 32
    %v1937 = vpop.permute.xlu0 %1936
    %v1939 = vadd.f32 %v1929, %v1937
    %v1940 = vtanh.pop %v1939
    %1942 = vrot.lane.b32.xlu0 %v1940, 64
    %v1943 = vpop.permute.xlu0 %1942
    %v1945 = vmul.f32 %v1928, %v1943
    %v1946 = vsel %vm868, %v1945, %v1836
    %v1947 = vsel %vm868, %v1939, %v1837
    %v1948 = vsel %vm868, %v1945, 0.0
    %1950 = vrot.lane.b32.xlu0 %v1948, 32
    %v1951 = vpop.permute.xlu0 %1950
    %1953 = vst.msk [vmem:[%s876] sm:$0xff] %vm239, %v1951
    %v1954 = vld [vmem:[%s878] sm:$0xff]
    %1956 = vrot.lane.b32.xlu0 %v1946, 32
    %v1957 = vpop.permute.xlu0 %1956
    %v1958 = vsel %vm239, %v1957, 0
    %1960 = vmatprep.subr.mxu0 0.0
    %1961 = vmatpush1.msra.mxu0 %v1519
    %1962 = vmatprep.subr.mxu0 0.0
    %1963 = vmatpush1.msra.mxu0 %v1520
    %1964 = vmatprep.subr.mxu0 0.0
    %1965 = vmatpush1.msra.mxu0 %v1521
    %1966 = vmatprep.subr.mxu0 0.0
    %1967 = vmatpush1.msra.mxu0 %v1522
    %1968 = vmatprep.subr.mxu0 0.0
    %1969 = vmatpush1.msra.mxu0 0.0
    %1970 = vmatprep.subr.mxu0 0.0
    %1971 = vmatpush1.msra.mxu0 0.0
    %1972 = vmatprep.subr.mxu0 0.0
    %1973 = vmatpush1.msra.mxu0 0.0
    %1974 = vmatprep.subr.mxu0 0.0
    %1975 = vmatpush1.msra.mxu0 0.0
    %1976 = vmatprep.subr.mxu0 0.0
    %1977 = vmatpush1.msra.mxu0 0.0
    %1978 = vmatprep.subr.mxu0 0.0
    %1979 = vmatpush1.msra.mxu0 0.0
    %1980 = vmatprep.subr.mxu0 0.0
    %1981 = vmatpush1.msra.mxu0 0.0
    %1982 = vmatprep.subr.mxu0 0.0
    %1983 = vmatpush1.msra.mxu0 0.0
    %1984 = vmatprep.subr.mxu0 0.0
    %1985 = vmatpush1.msra.mxu0 0.0
    %1986 = vmatprep.subr.mxu0 0.0
    %1987 = vmatpush1.msra.mxu0 0.0
    %1988 = vmatprep.subr.mxu0 0.0
    %1989 = vmatpush1.msra.mxu0 0.0
    %1990 = vmatprep.subr.mxu0 0.0
    %1991 = vmatpush1.msra.mxu0 0.0
    %1992 = vmatprep.subr.mxu0 0.0
    %1993 = vmatpush1.msra.mxu0 0.0
    %1994 = vmatprep.subr.mxu0 0.0
    %1995 = vmatpush1.msra.mxu0 0.0
    %1996 = vmatprep.subr.mxu0 0.0
    %1997 = vmatpush1.msra.mxu0 0.0
    %1998 = vmatprep.subr.mxu0 0.0
    %1999 = vmatpush1.msra.mxu0 0.0
    %2000 = vmatprep.subr.mxu0 0.0
    %2001 = vmatpush1.msra.mxu0 0.0
    %2002 = vmatprep.subr.mxu0 0.0
    %2003 = vmatpush1.msra.mxu0 0.0
    %2004 = vmatprep.subr.mxu0 0.0
    %2005 = vmatpush1.msra.mxu0 0.0
    %2006 = vmatprep.subr.mxu0 0.0
    %2007 = vmatpush1.msra.mxu0 0.0
    %2008 = vmatprep.subr.mxu0 0.0
    %2009 = vmatpush1.msra.mxu0 0.0
    %2010 = vmatprep.subr.mxu0 0.0
    %2011 = vmatpush1.msra.mxu0 0.0
    %2012 = vmatprep.subr.mxu0 0.0
    %2013 = vmatpush1.msra.mxu0 0.0
    %2014 = vmatprep.subr.mxu0 0.0
    %2015 = vmatpush1.msra.mxu0 0.0
    %2016 = vmatprep.subr.mxu0 0.0
    %2017 = vmatpush1.msra.mxu0 0.0
    %2018 = vmatprep.subr.mxu0 0.0
    %2019 = vmatpush1.msra.mxu0 0.0
    %2020 = vmatprep.subr.mxu0 0.0
    %2021 = vmatpush1.msra.mxu0 0.0
    %2022 = vmatprep.subr.mxu0 0.0
    %2023 = vmatpush1.msra.mxu0 0.0
    %2024 = vmatprep.mubr.f32.mxu0 0.0
    %2025 = vmatmul.mubr.f32.gmra.mrb[0].mxu0 %v1958
    %v2026 = vpop.f32.mrb[0].mxu0
    %v2027 = vadd.f32 0.0, %v2026
    %v2028 = vpop.f32.mrb[0].mxu0
    %2029 = vdwg.mxu0
    %v2030 = vadd.f32 %v1954, %v2027
    %v2031 = vxor.u32 %v2030, 2147483648
    %v2032 = vmul.f32 %v2031, 1.442695
    %v2033 = vpow.pop %v2032
    %v2034 = vadd.f32 %v2033, 1.0
    %v2035 = vrcp.pop %v2034
    %v2036 = vmul.f32 1.0, %v2035
    %v2037 = vtanh.pop %v2030
    %v2038 = vsel %vm253, %v2037, %v2036
    %v2039 = vmul.f32 %v2038, %v1947
    %2041 = vrot.lane.b32.xlu0 %v2038, 64
    %v2042 = vpop.permute.xlu0 %2041
    %v2044 = vmul.f32 %v2038, %v2042
    %2046 = vrot.lane.b32.xlu0 %v2044, 32
    %v2047 = vpop.permute.xlu0 %2046
    %v2049 = vadd.f32 %v2039, %v2047
    %v2050 = vtanh.pop %v2049
    %2052 = vrot.lane.b32.xlu0 %v2050, 64
    %v2053 = vpop.permute.xlu0 %2052
    %v2055 = vmul.f32 %v2038, %v2053
    %v2056 = vsel %vm986, %v2055, %v1946
    %v2057 = vsel %vm986, %v2049, %v1947
    %v2058 = vsel %vm986, %v2055, 0.0
    %2060 = vrot.lane.b32.xlu0 %v2058, 32
    %v2061 = vpop.permute.xlu0 %2060
    %2063 = vst.msk [vmem:[%s994] sm:$0xff] %vm239, %v2061
    %v2064 = vld [vmem:[%s996] sm:$0xff]
    %2066 = vrot.lane.b32.xlu0 %v2056, 32
    %v2067 = vpop.permute.xlu0 %2066
    %v2068 = vsel %vm239, %v2067, 0
    %2070 = vmatprep.subr.mxu0 0.0
    %2071 = vmatpush1.msra.mxu0 %v1519
    %2072 = vmatprep.subr.mxu0 0.0
    %2073 = vmatpush1.msra.mxu0 %v1520
    %2074 = vmatprep.subr.mxu0 0.0
    %2075 = vmatpush1.msra.mxu0 %v1521
    %2076 = vmatprep.subr.mxu0 0.0
    %2077 = vmatpush1.msra.mxu0 %v1522
    %2078 = vmatprep.subr.mxu0 0.0
    %2079 = vmatpush1.msra.mxu0 0.0
    %2080 = vmatprep.subr.mxu0 0.0
    %2081 = vmatpush1.msra.mxu0 0.0
    %2082 = vmatprep.subr.mxu0 0.0
    %2083 = vmatpush1.msra.mxu0 0.0
    %2084 = vmatprep.subr.mxu0 0.0
    %2085 = vmatpush1.msra.mxu0 0.0
    %2086 = vmatprep.subr.mxu0 0.0
    %2087 = vmatpush1.msra.mxu0 0.0
    %2088 = vmatprep.subr.mxu0 0.0
    %2089 = vmatpush1.msra.mxu0 0.0
    %2090 = vmatprep.subr.mxu0 0.0
    %2091 = vmatpush1.msra.mxu0 0.0
    %2092 = vmatprep.subr.mxu0 0.0
    %2093 = vmatpush1.msra.mxu0 0.0
    %2094 = vmatprep.subr.mxu0 0.0
    %2095 = vmatpush1.msra.mxu0 0.0
    %2096 = vmatprep.subr.mxu0 0.0
    %2097 = vmatpush1.msra.mxu0 0.0
    %2098 = vmatprep.subr.mxu0 0.0
    %2099 = vmatpush1.msra.mxu0 0.0
    %2100 = vmatprep.subr.mxu0 0.0
    %2101 = vmatpush1.msra.mxu0 0.0
    %2102 = vmatprep.subr.mxu0 0.0
    %2103 = vmatpush1.msra.mxu0 0.0
    %2104 = vmatprep.subr.mxu0 0.0
    %2105 = vmatpush1.msra.mxu0 0.0
    %2106 = vmatprep.subr.mxu0 0.0
    %2107 = vmatpush1.msra.mxu0 0.0
    %2108 = vmatprep.subr.mxu0 0.0
    %2109 = vmatpush1.msra.mxu0 0.0
    %2110 = vmatprep.subr.mxu0 0.0
    %2111 = vmatpush1.msra.mxu0 0.0
    %2112 = vmatprep.subr.mxu0 0.0
    %2113 = vmatpush1.msra.mxu0 0.0
    %2114 = vmatprep.subr.mxu0 0.0
    %2115 = vmatpush1.msra.mxu0 0.0
    %2116 = vmatprep.subr.mxu0 0.0
    %2117 = vmatpush1.msra.mxu0 0.0
    %2118 = vmatprep.subr.mxu0 0.0
    %2119 = vmatpush1.msra.mxu0 0.0
    %2120 = vmatprep.subr.mxu0 0.0
    %2121 = vmatpush1.msra.mxu0 0.0
    %2122 = vmatprep.subr.mxu0 0.0
    %2123 = vmatpush1.msra.mxu0 0.0
    %2124 = vmatprep.subr.mxu0 0.0
    %2125 = vmatpush1.msra.mxu0 0.0
    %2126 = vmatprep.subr.mxu0 0.0
    %2127 = vmatpush1.msra.mxu0 0.0
    %2128 = vmatprep.subr.mxu0 0.0
    %2129 = vmatpush1.msra.mxu0 0.0
    %2130 = vmatprep.subr.mxu0 0.0
    %2131 = vmatpush1.msra.mxu0 0.0
    %2132 = vmatprep.subr.mxu0 0.0
    %2133 = vmatpush1.msra.mxu0 0.0
    %2134 = vmatprep.mubr.f32.mxu0 0.0
    %2135 = vmatmul.mubr.f32.gmra.mrb[0].mxu0 %v2068
    %v2136 = vpop.f32.mrb[0].mxu0
    %v2137 = vadd.f32 0.0, %v2136
    %v2138 = vpop.f32.mrb[0].mxu0
    %2139 = vdwg.mxu0
    %v2140 = vadd.f32 %v2064, %v2137
    %v2141 = vxor.u32 %v2140, 2147483648
    %v2142 = vmul.f32 %v2141, 1.442695
    %v2143 = vpow.pop %v2142
    %v2144 = vadd.f32 %v2143, 1.0
    %v2145 = vrcp.pop %v2144
    %v2146 = vmul.f32 1.0, %v2145
    %v2147 = vtanh.pop %v2140
    %v2148 = vsel %vm253, %v2147, %v2146
    %v2149 = vmul.f32 %v2148, %v2057
    %2151 = vrot.lane.b32.xlu0 %v2148, 64
    %v2152 = vpop.permute.xlu0 %2151
    %v2154 = vmul.f32 %v2148, %v2152
    %2156 = vrot.lane.b32.xlu0 %v2154, 32
    %v2157 = vpop.permute.xlu0 %2156
    %v2159 = vadd.f32 %v2149, %v2157
    %v2160 = vtanh.pop %v2159
    %2162 = vrot.lane.b32.xlu0 %v2160, 64
    %v2163 = vpop.permute.xlu0 %2162
    %v2165 = vmul.f32 %v2148, %v2163
    %v2166 = vsel %vm1104, %v2165, %v2056
    %v2167 = vsel %vm1104, %v2159, %v2057
    %v2168 = vsel %vm1104, %v2165, 0.0
    %2170 = vrot.lane.b32.xlu0 %v2168, 32
    %v2171 = vpop.permute.xlu0 %2170
    %2173 = vst.msk [vmem:[%s1112] sm:$0xff] %vm239, %v2171
    %v2174 = vld [vmem:[%s1114] sm:$0xff]
    %2176 = vrot.lane.b32.xlu0 %v2166, 32
    %v2177 = vpop.permute.xlu0 %2176
    %v2178 = vsel %vm239, %v2177, 0
    %2180 = vmatprep.subr.mxu0 0.0
    %2181 = vmatpush1.msra.mxu0 %v1519
    %2182 = vmatprep.subr.mxu0 0.0
    %2183 = vmatpush1.msra.mxu0 %v1520
    %2184 = vmatprep.subr.mxu0 0.0
    %2185 = vmatpush1.msra.mxu0 %v1521
    %2186 = vmatprep.subr.mxu0 0.0
    %2187 = vmatpush1.msra.mxu0 %v1522
    %2188 = vmatprep.subr.mxu0 0.0
    %2189 = vmatpush1.msra.mxu0 0.0
    %2190 = vmatprep.subr.mxu0 0.0
    %2191 = vmatpush1.msra.mxu0 0.0
    %2192 = vmatprep.subr.mxu0 0.0
    %2193 = vmatpush1.msra.mxu0 0.0
    %2194 = vmatprep.subr.mxu0 0.0
    %2195 = vmatpush1.msra.mxu0 0.0
    %2196 = vmatprep.subr.mxu0 0.0
    %2197 = vmatpush1.msra.mxu0 0.0
    %2198 = vmatprep.subr.mxu0 0.0
    %2199 = vmatpush1.msra.mxu0 0.0
    %2200 = vmatprep.subr.mxu0 0.0
    %2201 = vmatpush1.msra.mxu0 0.0
    %2202 = vmatprep.subr.mxu0 0.0
    %2203 = vmatpush1.msra.mxu0 0.0
    %2204 = vmatprep.subr.mxu0 0.0
    %2205 = vmatpush1.msra.mxu0 0.0
    %2206 = vmatprep.subr.mxu0 0.0
    %2207 = vmatpush1.msra.mxu0 0.0
    %2208 = vmatprep.subr.mxu0 0.0
    %2209 = vmatpush1.msra.mxu0 0.0
    %2210 = vmatprep.subr.mxu0 0.0
    %2211 = vmatpush1.msra.mxu0 0.0
    %2212 = vmatprep.subr.mxu0 0.0
    %2213 = vmatpush1.msra.mxu0 0.0
    %2214 = vmatprep.subr.mxu0 0.0
    %2215 = vmatpush1.msra.mxu0 0.0
    %2216 = vmatprep.subr.mxu0 0.0
    %2217 = vmatpush1.msra.mxu0 0.0
    %2218 = vmatprep.subr.mxu0 0.0
    %2219 = vmatpush1.msra.mxu0 0.0
    %2220 = vmatprep.subr.mxu0 0.0
    %2221 = vmatpush1.msra.mxu0 0.0
    %2222 = vmatprep.subr.mxu0 0.0
    %2223 = vmatpush1.msra.mxu0 0.0
    %2224 = vmatprep.subr.mxu0 0.0
    %2225 = vmatpush1.msra.mxu0 0.0
    %2226 = vmatprep.subr.mxu0 0.0
    %2227 = vmatpush1.msra.mxu0 0.0
    %2228 = vmatprep.subr.mxu0 0.0
    %2229 = vmatpush1.msra.mxu0 0.0
    %2230 = vmatprep.subr.mxu0 0.0
    %2231 = vmatpush1.msra.mxu0 0.0
    %2232 = vmatprep.subr.mxu0 0.0
    %2233 = vmatpush1.msra.mxu0 0.0
    %2234 = vmatprep.subr.mxu0 0.0
    %2235 = vmatpush1.msra.mxu0 0.0
    %2236 = vmatprep.subr.mxu0 0.0
    %2237 = vmatpush1.msra.mxu0 0.0
    %2238 = vmatprep.subr.mxu0 0.0
    %2239 = vmatpush1.msra.mxu0 0.0
    %2240 = vmatprep.subr.mxu0 0.0
    %2241 = vmatpush1.msra.mxu0 0.0
    %2242 = vmatprep.subr.mxu0 0.0
    %2243 = vmatpush1.msra.mxu0 0.0
    %2244 = vmatprep.mubr.f32.mxu0 0.0
    %2245 = vmatmul.mubr.f32.gmra.mrb[0].mxu0 %v2178
    %v2246 = vpop.f32.mrb[0].mxu0
    %v2247 = vadd.f32 0.0, %v2246
    %v2248 = vpop.f32.mrb[0].mxu0
    %2249 = vdwg.mxu0
    %v2250 = vadd.f32 %v2174, %v2247
    %v2251 = vxor.u32 %v2250, 2147483648
    %v2252 = vmul.f32 %v2251, 1.442695
    %v2253 = vpow.pop %v2252
    %v2254 = vadd.f32 %v2253, 1.0
    %v2255 = vrcp.pop %v2254
    %v2256 = vmul.f32 1.0, %v2255
    %v2257 = vtanh.pop %v2250
    %v2258 = vsel %vm253, %v2257, %v2256
    %v2259 = vmul.f32 %v2258, %v2167
    %2261 = vrot.lane.b32.xlu0 %v2258, 64
    %v2262 = vpop.permute.xlu0 %2261
    %v2264 = vmul.f32 %v2258, %v2262
    %2266 = vrot.lane.b32.xlu0 %v2264, 32
    %v2267 = vpop.permute.xlu0 %2266
    %v2269 = vadd.f32 %v2259, %v2267
    %v2270 = vtanh.pop %v2269
    %2272 = vrot.lane.b32.xlu0 %v2270, 64
    %v2273 = vpop.permute.xlu0 %2272
    %v2275 = vmul.f32 %v2258, %v2273
    %v2276 = vsel %vm1222, %v2275, %v2166
    %v2277 = vsel %vm1222, %v2269, %v2167
    %v2278 = vsel %vm1222, %v2275, 0.0
    %2280 = vrot.lane.b32.xlu0 %v2278, 32
    %v2281 = vpop.permute.xlu0 %2280
    %2283 = vst.msk [vmem:[%s1230] sm:$0xff] %vm239, %v2281
    %v2284 = vld [vmem:[%s1232] sm:$0xff]
    %2286 = vrot.lane.b32.xlu0 %v2276, 32
    %v2287 = vpop.permute.xlu0 %2286
    %v2288 = vsel %vm239, %v2287, 0
    %2290 = vmatprep.subr.mxu0 0.0
    %2291 = vmatpush1.msra.mxu0 %v1519
    %2292 = vmatprep.subr.mxu0 0.0
    %2293 = vmatpush1.msra.mxu0 %v1520
    %2294 = vmatprep.subr.mxu0 0.0
    %2295 = vmatpush1.msra.mxu0 %v1521
    %2296 = vmatprep.subr.mxu0 0.0
    %2297 = vmatpush1.msra.mxu0 %v1522
    %2298 = vmatprep.subr.mxu0 0.0
    %2299 = vmatpush1.msra.mxu0 0.0
    %2300 = vmatprep.subr.mxu0 0.0
    %2301 = vmatpush1.msra.mxu0 0.0
    %2302 = vmatprep.subr.mxu0 0.0
    %2303 = vmatpush1.msra.mxu0 0.0
    %2304 = vmatprep.subr.mxu0 0.0
    %2305 = vmatpush1.msra.mxu0 0.0
    %2306 = vmatprep.subr.mxu0 0.0
    %2307 = vmatpush1.msra.mxu0 0.0
    %2308 = vmatprep.subr.mxu0 0.0
    %2309 = vmatpush1.msra.mxu0 0.0
    %2310 = vmatprep.subr.mxu0 0.0
    %2311 = vmatpush1.msra.mxu0 0.0
    %2312 = vmatprep.subr.mxu0 0.0
    %2313 = vmatpush1.msra.mxu0 0.0
    %2314 = vmatprep.subr.mxu0 0.0
    %2315 = vmatpush1.msra.mxu0 0.0
    %2316 = vmatprep.subr.mxu0 0.0
    %2317 = vmatpush1.msra.mxu0 0.0
    %2318 = vmatprep.subr.mxu0 0.0
    %2319 = vmatpush1.msra.mxu0 0.0
    %2320 = vmatprep.subr.mxu0 0.0
    %2321 = vmatpush1.msra.mxu0 0.0
    %2322 = vmatprep.subr.mxu0 0.0
    %2323 = vmatpush1.msra.mxu0 0.0
    %2324 = vmatprep.subr.mxu0 0.0
    %2325 = vmatpush1.msra.mxu0 0.0
    %2326 = vmatprep.subr.mxu0 0.0
    %2327 = vmatpush1.msra.mxu0 0.0
    %2328 = vmatprep.subr.mxu0 0.0
    %2329 = vmatpush1.msra.mxu0 0.0
    %2330 = vmatprep.subr.mxu0 0.0
    %2331 = vmatpush1.msra.mxu0 0.0
    %2332 = vmatprep.subr.mxu0 0.0
    %2333 = vmatpush1.msra.mxu0 0.0
    %2334 = vmatprep.subr.mxu0 0.0
    %2335 = vmatpush1.msra.mxu0 0.0
    %2336 = vmatprep.subr.mxu0 0.0
    %2337 = vmatpush1.msra.mxu0 0.0
    %2338 = vmatprep.subr.mxu0 0.0
    %2339 = vmatpush1.msra.mxu0 0.0
    %2340 = vmatprep.subr.mxu0 0.0
    %2341 = vmatpush1.msra.mxu0 0.0
    %2342 = vmatprep.subr.mxu0 0.0
    %2343 = vmatpush1.msra.mxu0 0.0
    %2344 = vmatprep.subr.mxu0 0.0
    %2345 = vmatpush1.msra.mxu0 0.0
    %2346 = vmatprep.subr.mxu0 0.0
    %2347 = vmatpush1.msra.mxu0 0.0
    %2348 = vmatprep.subr.mxu0 0.0
    %2349 = vmatpush1.msra.mxu0 0.0
    %2350 = vmatprep.subr.mxu0 0.0
    %2351 = vmatpush1.msra.mxu0 0.0
    %2352 = vmatprep.subr.mxu0 0.0
    %2353 = vmatpush1.msra.mxu0 0.0
    %2354 = vmatprep.mubr.f32.mxu0 0.0
    %2355 = vmatmul.mubr.f32.gmra.mrb[0].mxu0 %v2288
    %v2356 = vpop.f32.mrb[0].mxu0
    %v2357 = vadd.f32 0.0, %v2356
    %v2358 = vpop.f32.mrb[0].mxu0
    %2359 = vdwg.mxu0
    %v2360 = vadd.f32 %v2284, %v2357
    %v2361 = vxor.u32 %v2360, 2147483648
    %v2362 = vmul.f32 %v2361, 1.442695
    %v2363 = vpow.pop %v2362
    %v2364 = vadd.f32 %v2363, 1.0
    %v2365 = vrcp.pop %v2364
    %v2366 = vmul.f32 1.0, %v2365
    %v2367 = vtanh.pop %v2360
    %v2368 = vsel %vm253, %v2367, %v2366
    %v2369 = vmul.f32 %v2368, %v2277
    %2371 = vrot.lane.b32.xlu0 %v2368, 64
    %v2372 = vpop.permute.xlu0 %2371
    %v2374 = vmul.f32 %v2368, %v2372
    %2376 = vrot.lane.b32.xlu0 %v2374, 32
    %v2377 = vpop.permute.xlu0 %2376
    %v2379 = vadd.f32 %v2369, %v2377
    %v2380 = vtanh.pop %v2379
    %2382 = vrot.lane.b32.xlu0 %v2380, 64
    %v2383 = vpop.permute.xlu0 %2382
    %v2385 = vmul.f32 %v2368, %v2383
    %v2386 = vsel %vm1340, %v2385, %v2276
    %v2387 = vsel %vm1340, %v2379, %v2277
    %v2388 = vsel %vm1340, %v2385, 0.0
    %2390 = vrot.lane.b32.xlu0 %v2388, 32
    %v2391 = vpop.permute.xlu0 %2390
    %2393 = vst.msk [vmem:[%s1348] sm:$0xff] %vm239, %v2391
    %2395 = vrot.lane.b32.xlu0 %v2386, 32
    %v2396 = vpop.permute.xlu0 %2395
    %s2398 = scalar_lea.vmem [#allocation13], 8
    %2399 = vst.msk [vmem:[%s2398] sm:$0xff] %vm239, %v2396
    %2401 = vrot.lane.b32.xlu0 %v2387, 96
    %v2402 = vpop.permute.xlu0 %2401
    %s2404 = scalar_lea.vmem [#allocation15], 8
    %2405 = vst.msk [vmem:[%s2404] sm:$0xff] %vm239, %v2402
    %v2406 = vld [vmem:[#allocation2] sm:$0xff]
    %v2407 = vld [vmem:[#allocation2 + $0x8] sm:$0xff]
    %v2408 = vld [vmem:[#allocation2 + $0x10] sm:$0xff]
    %v2409 = vld [vmem:[#allocation2 + $0x18] sm:$0xff]
    %v2410 = vld [vmem:[#allocation2 + $0x20] sm:$0xff]
    %v2411 = vld [vmem:[#allocation2 + $0x28] sm:$0xff]
    %v2412 = vld [vmem:[#allocation2 + $0x30] sm:$0xff]
    %v2413 = vld [vmem:[#allocation2 + $0x38] sm:$0xff]
    %v2414 = vld [vmem:[%s7] sm:$0xff]
    %v2415 = vld [vmem:[%s7 + $0x8] sm:$0xff]
    %v2416 = vld [vmem:[%s7 + $0x10] sm:$0xff]
    %v2417 = vld [vmem:[%s7 + $0x18] sm:$0xff]
    %v2418 = vld [vmem:[%s8] sm:$0x1]
    %v2420 = vlaneseq
    %v2421 = vshrl.u32 %v2420, 7
    %v2422 = vsub.s32 0, %v2421
    %v2423 = vrot.slane %v2418, %v2422
    %v2426 = vsel %vm239, %v2406, 0
    %v2429 = vsel %vm239, %v2407, 0
    %v2432 = vsel %vm239, %v2408, 0
    %v2435 = vsel %vm239, %v2409, 0
    %v2438 = vsel %vm239, %v2410, 0
    %v2441 = vsel %vm239, %v2411, 0
    %v2444 = vsel %vm239, %v2412, 0
    %v2447 = vsel %vm239, %v2413, 0
    %2449 = vmatprep.subr.mxu0 0.0
    %2450 = vmatpush1.msra.mxu0 %v2414
    %2451 = vmatprep.subr.mxu0 0.0
    %2452 = vmatpush1.msra.mxu0 %v2415
    %2453 = vmatprep.subr.mxu0 0.0
    %2454 = vmatpush1.msra.mxu0 %v2416
    %2455 = vmatprep.subr.mxu0 0.0
    %2456 = vmatpush1.msra.mxu0 %v2417
    %2457 = vmatprep.subr.mxu0 0.0
    %2458 = vmatpush1.msra.mxu0 0.0
    %2459 = vmatprep.subr.mxu0 0.0
    %2460 = vmatpush1.msra.mxu0 0.0
    %2461 = vmatprep.subr.mxu0 0.0
    %2462 = vmatpush1.msra.mxu0 0.0
    %2463 = vmatprep.subr.mxu0 0.0
    %2464 = vmatpush1.msra.mxu0 0.0
    %2465 = vmatprep.subr.mxu0 0.0
    %2466 = vmatpush1.msra.mxu0 0.0
    %2467 = vmatprep.subr.mxu0 0.0
    %2468 = vmatpush1.msra.mxu0 0.0
    %2469 = vmatprep.subr.mxu0 0.0
    %2470 = vmatpush1.msra.mxu0 0.0
    %2471 = vmatprep.subr.mxu0 0.0
    %2472 = vmatpush1.msra.mxu0 0.0
    %2473 = vmatprep.subr.mxu0 0.0
    %2474 = vmatpush1.msra.mxu0 0.0
    %2475 = vmatprep.subr.mxu0 0.0
    %2476 = vmatpush1.msra.mxu0 0.0
    %2477 = vmatprep.subr.mxu0 0.0
    %2478 = vmatpush1.msra.mxu0 0.0
    %2479 = vmatprep.subr.mxu0 0.0
    %2480 = vmatpush1.msra.mxu0 0.0
    %2481 = vmatprep.subr.mxu0 0.0
    %2482 = vmatpush1.msra.mxu0 0.0
    %2483 = vmatprep.subr.mxu0 0.0
    %2484 = vmatpush1.msra.mxu0 0.0
    %2485 = vmatprep.subr.mxu0 0.0
    %2486 = vmatpush1.msra.mxu0 0.0
    %2487 = vmatprep.subr.mxu0 0.0
    %2488 = vmatpush1.msra.mxu0 0.0
    %2489 = vmatprep.subr.mxu0 0.0
    %2490 = vmatpush1.msra.mxu0 0.0
    %2491 = vmatprep.subr.mxu0 0.0
    %2492 = vmatpush1.msra.mxu0 0.0
    %2493 = vmatprep.subr.mxu0 0.0
    %2494 = vmatpush1.msra.mxu0 0.0
    %2495 = vmatprep.subr.mxu0 0.0
    %2496 = vmatpush1.msra.mxu0 0.0
    %2497 = vmatprep.subr.mxu0 0.0
    %2498 = vmatpush1.msra.mxu0 0.0
    %2499 = vmatprep.subr.mxu0 0.0
    %2500 = vmatpush1.msra.mxu0 0.0
    %2501 = vmatprep.subr.mxu0 0.0
    %2502 = vmatpush1.msra.mxu0 0.0
    %2503 = vmatprep.subr.mxu0 0.0
    %2504 = vmatpush1.msra.mxu0 0.0
    %2505 = vmatprep.subr.mxu0 0.0
    %2506 = vmatpush1.msra.mxu0 0.0
    %2507 = vmatprep.subr.mxu0 0.0
    %2508 = vmatpush1.msra.mxu0 0.0
    %2509 = vmatprep.subr.mxu0 0.0
    %2510 = vmatpush1.msra.mxu0 0.0
    %2511 = vmatprep.subr.mxu0 0.0
    %2512 = vmatpush1.msra.mxu0 0.0
    %2513 = vmatprep.mubr.f32.mxu0 0.0
    %2514 = vmatmul.mubr.f32.gmra.mrb[0].mxu0 %v2426
    %v2515 = vpop.f32.mrb[0].mxu0
    %v2516 = vadd.f32 %v2423, %v2515
    %v2517 = vpop.f32.mrb[0].mxu0
    %2518 = vmatprep.mubr.f32.mxu0 0.0
    %2519 = vmatmul.mubr.f32.gmra.mrb[0].mxu0 %v2429
    %v2520 = vpop.f32.mrb[0].mxu0
    %v2521 = vadd.f32 %v2423, %v2520
    %v2522 = vpop.f32.mrb[0].mxu0
    %2523 = vmatprep.mubr.f32.mxu0 0.0
    %2524 = vmatmul.mubr.f32.gmra.mrb[0].mxu0 %v2432
    %v2525 = vpop.f32.mrb[0].mxu0
    %v2526 = vadd.f32 %v2423, %v2525
    %v2527 = vpop.f32.mrb[0].mxu0
    %2528 = vmatprep.mubr.f32.mxu0 0.0
    %2529 = vmatmul.mubr.f32.gmra.mrb[0].mxu0 %v2435
    %v2530 = vpop.f32.mrb[0].mxu0
    %v2531 = vadd.f32 %v2423, %v2530
    %v2532 = vpop.f32.mrb[0].mxu0
    %2533 = vmatprep.mubr.f32.mxu0 0.0
    %2534 = vmatmul.mubr.f32.gmra.mrb[0].mxu0 %v2438
    %v2535 = vpop.f32.mrb[0].mxu0
    %v2536 = vadd.f32 %v2423, %v2535
    %v2537 = vpop.f32.mrb[0].mxu0
    %2538 = vmatprep.mubr.f32.mxu0 0.0
    %2539 = vmatmul.mubr.f32.gmra.mrb[0].mxu0 %v2441
    %v2540 = vpop.f32.mrb[0].mxu0
    %v2541 = vadd.f32 %v2423, %v2540
    %v2542 = vpop.f32.mrb[0].mxu0
    %2543 = vmatprep.mubr.f32.mxu0 0.0
    %2544 = vmatmul.mubr.f32.gmra.mrb[0].mxu0 %v2444
    %v2545 = vpop.f32.mrb[0].mxu0
    %v2546 = vadd.f32 %v2423, %v2545
    %v2547 = vpop.f32.mrb[0].mxu0
    %2548 = vmatprep.mubr.f32.mxu0 0.0
    %2549 = vmatmul.mubr.f32.gmra.mrb[0].mxu0 %v2447
    %v2550 = vpop.f32.mrb[0].mxu0
    %v2551 = vadd.f32 %v2423, %v2550
    %v2552 = vpop.f32.mrb[0].mxu0
    %2553 = vdwg.mxu0
    %2554 = vst [vmem:[#allocation12] sm:$0xff] %v2516
    %2555 = vst [vmem:[#allocation12 + $0x8] sm:$0xff] %v2521
    %2556 = vst [vmem:[#allocation12 + $0x10] sm:$0xff] %v2526
    %2557 = vst [vmem:[#allocation12 + $0x18] sm:$0xff] %v2531
    %2558 = vst [vmem:[#allocation12 + $0x20] sm:$0xff] %v2536
    %2559 = vst [vmem:[#allocation12 + $0x28] sm:$0xff] %v2541
    %2560 = vst [vmem:[#allocation12 + $0x30] sm:$0xff] %v2546
    %2561 = vst [vmem:[#allocation12 + $0x38] sm:$0xff] %v2551
    // Predicated region
    $region54: #{tpu_custom_call.1} parent=1 // pred_check
      _
    $region55: #{tpu_custom_call.1} parent=1 // pred_check_branch
      %2563 = sbr.rel (0) target = $region57
    $region56: #{tpu_custom_call.1} parent=1 // pred_region
      %s2565 = ssub.s32 1024, 1024
      %2566 = vsyncadd [#allocation6], %s2565
      %s2567 = sshll.u32 [#allocation12], 4
      %s2568 = int_to_ptr.vmem [resolvable:$true] %s2567
      %2573 = dma.vmem_to_hbm [thread:$0]  %s2568, 1024, %s9, [#allocation6], 128, 128, 8
    $region57: #{tpu_custom_call.1} parent=1 // pred_fallthru
      _
    // Predicated region
    $region58: #{tpu_custom_call.1} parent=1 // pred_check
      _
    $region59: #{tpu_custom_call.1} parent=1 // pred_check_branch
      %2575 = sbr.rel (0) target = $region61
    $region60: #{tpu_custom_call.1} parent=1 // pred_region
      %s2577 = ssub.s32 256, 256
      %2578 = vsyncadd [#allocation14], %s2577
      %s2579 = sshll.u32 [#allocation13], 4
      %s2580 = int_to_ptr.vmem [resolvable:$true] %s2579
      %2585 = dma.vmem_to_hbm [thread:$0]  %s2580, 256, %s10, [#allocation14], 128, 128, 8
    $region61: #{tpu_custom_call.1} parent=1 // pred_fallthru
      _
    // Predicated region
    $region62: #{tpu_custom_call.1} parent=1 // pred_check
      _
    $region63: #{tpu_custom_call.1} parent=1 // pred_check_branch
      %2587 = sbr.rel (0) target = $region65
    $region64: #{tpu_custom_call.1} parent=1 // pred_region
      %s2589 = ssub.s32 256, 256
      %2590 = vsyncadd [#allocation14], %s2589
      %s2591 = sshll.u32 [#allocation15], 4
      %s2592 = int_to_ptr.vmem [resolvable:$true] %s2591
      %2597 = dma.vmem_to_hbm [thread:$0]  %s2592, 256, %s11, [#allocation14], 128, 128, 8
    $region65: #{tpu_custom_call.1} parent=1 // pred_fallthru
      _
    // Predicated region
    $region66: #{tpu_custom_call.1} parent=1 // pred_check
      _
    $region67: #{tpu_custom_call.1} parent=1 // pred_check_branch
      %2599 = sbr.rel (0) target = $region69
    $region68: #{tpu_custom_call.1} parent=1 // pred_region
      %2600 = dma.done [#allocation6], 1024
    $region69: #{tpu_custom_call.1} parent=1 // pred_fallthru
      _
    // Predicated region
    $region70: #{tpu_custom_call.1} parent=1 // pred_check
      _
    $region71: #{tpu_custom_call.1} parent=1 // pred_check_branch
      %2602 = sbr.rel (0) target = $region73
    $region72: #{tpu_custom_call.1} parent=1 // pred_region
      %2603 = dma.done [#allocation14], 256
    $region73: #{tpu_custom_call.1} parent=1 // pred_fallthru
      _
    // Predicated region
    $region74: #{tpu_custom_call.1} parent=1 // pred_check
      _
    $region75: #{tpu_custom_call.1} parent=1 // pred_check_branch
      %2605 = sbr.rel (0) target = $region77
    $region76: #{tpu_custom_call.1} parent=1 // pred_region
      %2606 = dma.done [#allocation14], 256
    $region77: #{tpu_custom_call.1} parent=1 // pred_fallthru
      _
    %2607 = vsyncpa [#allocation5], 1
    %2608 = vsyncpa [#allocation8], 1
    %2609 = vsyncpa [#allocation11], 1
    %2610 = vsyncpa [#allocation6], 1
    %2611 = vsyncpa [#allocation14], 1

</llo_original>
